<compile_context>
chip_gen: v6e
topology: v6e:2x2x1
jax: 0.10.0
libtpu: 0.0.40
codegen_flags: <defaults>
</compile_context>

<pallas_src>
import jax
import jax.numpy as jnp
from jax.experimental import pallas as pl
from jax.experimental.pallas import tpu as pltpu

B = 8           # batch
D_IN = 8192     # fc1 in_features
D_H1 = 256      # fc1 out_features
D_H2 = 32       # fc2 out_features
D_OUT = 5       # fc3 out_features

NEG_SLOPE = 0.01


def _leaky_relu(x):
    return jnp.where(x > 0, x, NEG_SLOPE * x)


def blend_kernel(x_ref, w1_ref, b1_ref, w2_ref, b2_ref, w3_ref, b3_ref,
                 out_ref):
    # fc1: bf16 x bf16 -> f32 accumulation on the MXU (the HBM-bound stream).
    h1 = jnp.dot(x_ref[...], w1_ref[...], preferred_element_type=jnp.float32)
    h1 = _leaky_relu(h1 + b1_ref[...])

    # fc2 / fc3: tiny f32 matmuls, fused into the same invocation.
    h2 = _leaky_relu(jnp.dot(h1, w2_ref[...],
                             preferred_element_type=jnp.float32) + b2_ref[...])
    h3 = _leaky_relu(jnp.dot(h2, w3_ref[...],
                             preferred_element_type=jnp.float32) + b3_ref[...])

    # softmax over dim=0 (the batch dimension), exactly as in the module.
    m = jnp.max(h3, axis=0, keepdims=True)
    e = jnp.exp(h3 - m)
    out_ref[...] = (e / jnp.sum(e, axis=0, keepdims=True)).astype(out_ref.dtype)


def blend_net_forward(x, w1, b1, w2, b2, w3, b3):
    assert x.shape == (B, D_IN)

    cost = pl.CostEstimate(
        flops=2 * B * D_IN * D_H1 + 2 * B * D_H1 * D_H2 + 2 * B * D_H2 * D_OUT,
        transcendentals=B * D_OUT,
        bytes_accessed=(B * D_IN * 2            # x  (bf16)
                        + D_IN * D_H1 * 2       # w1 (bf16) -- the bound stream
                        + D_H1 * 4              # b1
                        + D_H1 * D_H2 * 4 + D_H2 * 4   # w2, b2
                        + D_H2 * D_OUT * 4 + D_OUT * 4  # w3, b3
                        + B * D_OUT * 4),       # out
    )

    # Grid-free call: every operand is a whole-array VMEM block, DMA'd once.
    return pl.pallas_call(
        blend_kernel,
        out_shape=jax.ShapeDtypeStruct((B, D_OUT), jnp.float32),
        compiler_params=pltpu.CompilerParams(vmem_limit_bytes=32 << 20),
        cost_estimate=cost,
    )(x, w1, b1, w2, b2, w3, b3)


def reference_forward(x, w1, b1, w2, b2, w3, b3):
    h = _leaky_relu(jnp.dot(x, w1, preferred_element_type=jnp.float32) + b1)
    h = _leaky_relu(jnp.dot(h, w2, preferred_element_type=jnp.float32) + b2)
    h = _leaky_relu(jnp.dot(h, w3, preferred_element_type=jnp.float32) + b3)
    return jax.nn.softmax(h, axis=0)


def init_params(key):
    ks = jax.random.split(key, 6)

    def linear(kw, kb, fan_in, fan_out, w_dtype=jnp.float32):
        bound = 1.0 / jnp.sqrt(fan_in)
        w = jax.random.uniform(kw, (fan_in, fan_out), jnp.float32, -bound, bound)
        b = jax.random.uniform(kb, (1, fan_out), jnp.float32, -bound, bound)
        return w.astype(w_dtype), b

    # fc1 weight is stored/streamed as bf16 (cast once here, not per call);
    # biases and the tiny fc2/fc3 weights stay f32.
    w1, b1 = linear(ks[0], ks[1], D_IN, D_H1, jnp.bfloat16)
    w2, b2 = linear(ks[2], ks[3], D_H1, D_H2)
    w3, b3 = linear(ks[4], ks[5], D_H2, D_OUT)
    return w1, b1, w2, b2, w3, b3


if __name__ == "__main__":
    key = jax.random.PRNGKey(0)
    kx, kp = jax.random.split(key)
    # x is streamed in bf16 alongside the bf16 fc1 weight (MXU-native format).
    # NOTE: bf16 x / w1 is an accepted accuracy tradeoff vs the f32 PyTorch
    # module; the reference below uses the same bf16 inputs.
    x = jax.random.normal(kx, (B, D_IN), jnp.float32).astype(jnp.bfloat16)
    params = init_params(kp)

    out = jax.block_until_ready(blend_net_forward(x, *params))
    ref = reference_forward(x, *params)

    assert out.shape == (B, D_OUT)
    assert jnp.allclose(out, ref, atol=1e-4, rtol=1e-4), \
        float(jnp.max(jnp.abs(out - ref)))

    print("KERNEL_OK")
</pallas_src>

<mosaic_0001>
module attributes {stable_mosaic.version = 11 : i64} {
  func.func @blend_kernel(%arg0: memref<8x8192xbf16, #tpu.memory_space<vmem>>, %arg1: memref<8192x256xbf16, #tpu.memory_space<vmem>>, %arg2: memref<1x256xf32, #tpu.memory_space<vmem>>, %arg3: memref<256x32xf32, #tpu.memory_space<vmem>>, %arg4: memref<1x32xf32, #tpu.memory_space<vmem>>, %arg5: memref<32x5xf32, #tpu.memory_space<vmem>>, %arg6: memref<1x5xf32, #tpu.memory_space<vmem>>, %arg7: memref<8x5xf32, #tpu.memory_space<vmem>>) attributes {dimension_semantics = [], scalar_prefetch = 0 : i64, scratch_operands = 0 : i64, tpu.core_type = #tpu.core_type<tc>} {
    %c0 = arith.constant 0 : index
    %c0_0 = arith.constant 0 : index
    %0 = vector.load %arg0[%c0, %c0_0] : memref<8x8192xbf16, #tpu.memory_space<vmem>>, vector<8x8192xbf16>
    %c0_1 = arith.constant 0 : index
    %c0_2 = arith.constant 0 : index
    %1 = vector.load %arg1[%c0_1, %c0_2] : memref<8192x256xbf16, #tpu.memory_space<vmem>>, vector<8192x256xbf16>
    %cst = arith.constant dense<0.000000e+00> : vector<8x256xf32>
    %2 = tpu.matmul %0, %1, %cst {dimension_numbers = #tpu.dot_dimension_numbers<[1], [0], [0], [1], [0, 0, 1, 1], [], []>} : vector<8x8192xbf16>, vector<8192x256xbf16>, vector<8x256xf32> -> vector<8x256xf32>
    %c0_3 = arith.constant 0 : index
    %c0_4 = arith.constant 0 : index
    %3 = vector.load %arg2[%c0_3, %c0_4] : memref<1x256xf32, #tpu.memory_space<vmem>>, vector<1x256xf32>
    %4 = vector.broadcast %3 : vector<1x256xf32> to vector<8x256xf32>
    %5 = arith.addf %2, %4 : vector<8x256xf32>
    %cst_5 = arith.constant 0.000000e+00 : f32
    %6 = vector.broadcast %cst_5 : f32 to vector<8x256xf32>
    %7 = arith.cmpf ogt, %5, %6 : vector<8x256xf32>
    %cst_6 = arith.constant 0.00999999977 : f32
    %8 = vector.broadcast %cst_6 : f32 to vector<8x256xf32>
    %9 = arith.mulf %8, %5 : vector<8x256xf32>
    %10 = arith.select %7, %5, %9 : vector<8x256xi1>, vector<8x256xf32>
    %c0_7 = arith.constant 0 : index
    %c0_8 = arith.constant 0 : index
    %11 = vector.load %arg3[%c0_7, %c0_8] : memref<256x32xf32, #tpu.memory_space<vmem>>, vector<256x32xf32>
    %cst_9 = arith.constant dense<0.000000e+00> : vector<8x32xf32>
    %12 = tpu.matmul %10, %11, %cst_9 {dimension_numbers = #tpu.dot_dimension_numbers<[1], [0], [0], [1], [0, 0, 1, 1], [], []>} : vector<8x256xf32>, vector<256x32xf32>, vector<8x32xf32> -> vector<8x32xf32>
    %c0_10 = arith.constant 0 : index
    %c0_11 = arith.constant 0 : index
    %13 = vector.load %arg4[%c0_10, %c0_11] : memref<1x32xf32, #tpu.memory_space<vmem>>, vector<1x32xf32>
    %14 = vector.broadcast %13 : vector<1x32xf32> to vector<8x32xf32>
    %15 = arith.addf %12, %14 : vector<8x32xf32>
    %cst_12 = arith.constant 0.000000e+00 : f32
    %16 = vector.broadcast %cst_12 : f32 to vector<8x32xf32>
    %17 = arith.cmpf ogt, %15, %16 : vector<8x32xf32>
    %cst_13 = arith.constant 0.00999999977 : f32
    %18 = vector.broadcast %cst_13 : f32 to vector<8x32xf32>
    %19 = arith.mulf %18, %15 : vector<8x32xf32>
    %20 = arith.select %17, %15, %19 : vector<8x32xi1>, vector<8x32xf32>
    %c0_14 = arith.constant 0 : index
    %c0_15 = arith.constant 0 : index
    %21 = vector.load %arg5[%c0_14, %c0_15] : memref<32x5xf32, #tpu.memory_space<vmem>>, vector<32x5xf32>
    %cst_16 = arith.constant dense<0.000000e+00> : vector<8x5xf32>
    %22 = tpu.matmul %20, %21, %cst_16 {dimension_numbers = #tpu.dot_dimension_numbers<[1], [0], [0], [1], [0, 0, 1, 1], [], []>} : vector<8x32xf32>, vector<32x5xf32>, vector<8x5xf32> -> vector<8x5xf32>
    %c0_17 = arith.constant 0 : index
    %c0_18 = arith.constant 0 : index
    %23 = vector.load %arg6[%c0_17, %c0_18] : memref<1x5xf32, #tpu.memory_space<vmem>>, vector<1x5xf32>
    %24 = vector.broadcast %23 : vector<1x5xf32> to vector<8x5xf32>
    %25 = arith.addf %22, %24 : vector<8x5xf32>
    %cst_19 = arith.constant 0.000000e+00 : f32
    %26 = vector.broadcast %cst_19 : f32 to vector<8x5xf32>
    %27 = arith.cmpf ogt, %25, %26 : vector<8x5xf32>
    %cst_20 = arith.constant 0.00999999977 : f32
    %28 = vector.broadcast %cst_20 : f32 to vector<8x5xf32>
    %29 = arith.mulf %28, %25 : vector<8x5xf32>
    %30 = arith.select %27, %25, %29 : vector<8x5xi1>, vector<8x5xf32>
    %cst_21 = arith.constant dense<0xFF800000> : vector<5xf32>
    %31 = vector.multi_reduction <maximumf>, %30, %cst_21 [0] : vector<8x5xf32> to vector<5xf32>
    %32 = vector.shape_cast %31 : vector<5xf32> to vector<1x5xf32>
    %33 = vector.broadcast %32 : vector<1x5xf32> to vector<8x5xf32>
    %34 = arith.subf %30, %33 : vector<8x5xf32>
    %35 = math.exp %34 : vector<8x5xf32>
    %cst_22 = arith.constant dense<0.000000e+00> : vector<5xf32>
    %36 = vector.multi_reduction <add>, %35, %cst_22 [0] : vector<8x5xf32> to vector<5xf32>
    %37 = vector.shape_cast %36 : vector<5xf32> to vector<1x5xf32>
    %38 = vector.broadcast %37 : vector<1x5xf32> to vector<8x5xf32>
    %39 = arith.divf %35, %38 : vector<8x5xf32>
    %c0_23 = arith.constant 0 : index
    %c0_24 = arith.constant 0 : index
    %40 = vector.load %arg7[%c0_23, %c0_24] : memref<8x5xf32, #tpu.memory_space<vmem>>, vector<8x5xf32>
    tpu.vector_store %arg7[%c0_23, %c0_24], %39 {strides = array<i32>} : memref<8x5xf32, #tpu.memory_space<vmem>>, vector<8x5xf32>,
    return
  }
}

</mosaic_0001>

<llo_original>
// kernel: tpu_custom_call.1
$region0: #{tpu_custom_call.1}
  #allocation0 [shape = 'u32[]', space=smem, size = 0x4, offset = 0x4, fixed_abs, tag = 'smem constant byte address 0x4 - core index']
  #allocation1 [shape = 'u32[144,128]{1,0:T(1,128)}', space=vmem, size = 0x12000, scoped, tag = 'internal scratch']
  %s0 = inlined_call_operand.hbm [shape: bf16[8,8192], index: 0, kind: input, shape index: {}]
  %s1 = inlined_call_operand.hbm [shape: bf16[8192,256], index: 1, kind: input, shape index: {}]
  %s2 = inlined_call_operand.hbm [shape: f32[1,256], index: 2, kind: input, shape index: {}]
  %s3 = inlined_call_operand.vmem [shape: f32[256,32], index: 3, kind: input, shape index: {}]
  %s4 = inlined_call_operand.hbm [shape: f32[1,32], index: 4, kind: input, shape index: {}]
  %s5 = inlined_call_operand.vmem [shape: f32[32,5], index: 5, kind: input, shape index: {}]
  %s6 = inlined_call_operand.hbm [shape: f32[1,5], index: 6, kind: input, shape index: {}]
  %s7 = inlined_call_operand.hbm [shape: f32[8,5], index: 7, kind: output, shape index: {}]
  %s8 = sld [smem:[#allocation0]]
  $region58: #{tpu_custom_call.1} parent=0
    _
  %s10 = ssub.s32 1, %s8
  %s11 = scalar_select 0, %s10, %s8
  $region1: #{tpu_custom_call.1} parent=0
    #allocation2 [shape = 'u8[131072]{0}', space=vmem, size = 0x20000, scoped, tag = 'input window, operand 0, single buffered']
    #allocation3 [shape = 's32[1]{0}', space=sflag, size = 0x4, scoped, tag = 'scoped memory for tpu_custom_call.1']
    #allocation4 [shape = 's32[1]{0}', space=sflag, size = 0x4, scoped, tag = 'scoped memory for tpu_custom_call.1']
    #allocation5 [shape = 'u8[4194304]{0}', space=vmem, size = 0x400000, scoped, tag = 'input window, operand 1, single buffered']
    #allocation6 [shape = 's32[1]{0}', space=sflag, size = 0x4, scoped, tag = 'scoped memory for tpu_custom_call.1']
    #allocation7 [shape = 'u8[1024]{0}', space=vmem, size = 0x400, scoped, tag = 'input window, operand 2, single buffered']
    #allocation8 [shape = 'u8[512]{0}', space=vmem, size = 0x400, scoped, tag = 'input window, operand 4, single buffered']
    #allocation9 [shape = 's32[1]{0}', space=sflag, size = 0x4, scoped, tag = 'scoped memory for tpu_custom_call.1']
    #allocation10 [shape = 'u8[512]{0}', space=vmem, size = 0x400, scoped, tag = 'input window, operand 6, single buffered']
    #allocation11 [shape = 'u8[4096]{0}', space=vmem, size = 0x1000, scoped, tag = 'output window, operand 0, single buffered']
    %12 = vsyncpa [#allocation3], 0
    %13 = vsyncpa [#allocation6], 0
    %14 = vsyncpa [#allocation9], 0
    %15 = vsyncpa [#allocation4], 0
    // Predicated region
    $region2: #{tpu_custom_call.1} parent=1 // pred_check
      _
    $region3: #{tpu_custom_call.1} parent=1 // pred_check_branch
      %17 = sbr.rel (0) target = $region5
    $region4: #{tpu_custom_call.1} parent=1 // pred_region
      %s19 = ssub.s32 4096, 4096
      %20 = vsyncadd [#allocation3], %s19
      %s22 = sshll.u32 [#allocation2], 4
      %s23 = int_to_ptr.vmem [resolvable:$true] %s22
      %25 = dma.hbm_to_vmem [thread:$0]  %s0, 4096, %s23, [#allocation3]
    $region5: #{tpu_custom_call.1} parent=1 // pred_fallthru
      _
    // Predicated region
    $region6: #{tpu_custom_call.1} parent=1 // pred_check
      _
    $region7: #{tpu_custom_call.1} parent=1 // pred_check_branch
      %27 = sbr.rel (0) target = $region9
    $region8: #{tpu_custom_call.1} parent=1 // pred_region
      %s29 = ssub.s32 131072, 131072
      %30 = vsyncadd [#allocation6], %s29
      %s31 = sshll.u32 [#allocation5], 4
      %s32 = int_to_ptr.vmem [resolvable:$true] %s31
      %37 = dma.hbm_to_vmem [thread:$0]  %s1, 131072, %s32, [#allocation6], 128, 128, 8
    $region9: #{tpu_custom_call.1} parent=1 // pred_fallthru
      _
    // Predicated region
    $region10: #{tpu_custom_call.1} parent=1 // pred_check
      _
    $region11: #{tpu_custom_call.1} parent=1 // pred_check_branch
      %39 = sbr.rel (0) target = $region13
    $region12: #{tpu_custom_call.1} parent=1 // pred_region
      %s41 = ssub.s32 32, 32
      %42 = vsyncadd [#allocation6], %s41
      %s44 = sshll.u32 [#allocation7], 4
      %s45 = int_to_ptr.vmem [resolvable:$true] %s44
      %47 = dma.hbm_to_vmem [thread:$0]  %s2, 32, %s45, [#allocation6]
    $region13: #{tpu_custom_call.1} parent=1 // pred_fallthru
      _
    // Predicated region
    $region14: #{tpu_custom_call.1} parent=1 // pred_check
      _
    $region15: #{tpu_custom_call.1} parent=1 // pred_check_branch
      %49 = sbr.rel (0) target = $region17
    $region16: #{tpu_custom_call.1} parent=1 // pred_region
      _
    $region17: #{tpu_custom_call.1} parent=1 // pred_fallthru
      _
    // Predicated region
    $region18: #{tpu_custom_call.1} parent=1 // pred_check
      _
    $region19: #{tpu_custom_call.1} parent=1 // pred_check_branch
      %51 = sbr.rel (0) target = $region21
    $region20: #{tpu_custom_call.1} parent=1 // pred_region
      %s53 = ssub.s32 16, 16
      %54 = vsyncadd [#allocation9], %s53
      %s56 = sshll.u32 [#allocation8], 4
      %s57 = int_to_ptr.vmem [resolvable:$true] %s56
      %59 = dma.hbm_to_vmem [thread:$0]  %s4, 16, %s57, [#allocation9]
    $region21: #{tpu_custom_call.1} parent=1 // pred_fallthru
      _
    // Predicated region
    $region22: #{tpu_custom_call.1} parent=1 // pred_check
      _
    $region23: #{tpu_custom_call.1} parent=1 // pred_check_branch
      %61 = sbr.rel (0) target = $region25
    $region24: #{tpu_custom_call.1} parent=1 // pred_region
      _
    $region25: #{tpu_custom_call.1} parent=1 // pred_fallthru
      _
    // Predicated region
    $region26: #{tpu_custom_call.1} parent=1 // pred_check
      _
    $region27: #{tpu_custom_call.1} parent=1 // pred_check_branch
      %63 = sbr.rel (0) target = $region29
    $region28: #{tpu_custom_call.1} parent=1 // pred_region
      %s65 = ssub.s32 16, 16
      %66 = vsyncadd [#allocation9], %s65
      %s68 = sshll.u32 [#allocation10], 4
      %s69 = int_to_ptr.vmem [resolvable:$true] %s68
      %71 = dma.hbm_to_vmem [thread:$0]  %s6, 16, %s69, [#allocation9]
    $region29: #{tpu_custom_call.1} parent=1 // pred_fallthru
      _
    // Predicated region
    $region30: #{tpu_custom_call.1} parent=1 // pred_check
      _
    $region31: #{tpu_custom_call.1} parent=1 // pred_check_branch
      %73 = sbr.rel (0) target = $region33
    $region32: #{tpu_custom_call.1} parent=1 // pred_region
      %74 = dma.done [#allocation3], 4096
    $region33: #{tpu_custom_call.1} parent=1 // pred_fallthru
      _
    // Predicated region
    $region34: #{tpu_custom_call.1} parent=1 // pred_check
      _
    $region35: #{tpu_custom_call.1} parent=1 // pred_check_branch
      %76 = sbr.rel (0) target = $region37
    $region36: #{tpu_custom_call.1} parent=1 // pred_region
      %77 = dma.done [#allocation6], 131072
    $region37: #{tpu_custom_call.1} parent=1 // pred_fallthru
      _
    // Predicated region
    $region38: #{tpu_custom_call.1} parent=1 // pred_check
      _
    $region39: #{tpu_custom_call.1} parent=1 // pred_check_branch
      %79 = sbr.rel (0) target = $region41
    $region40: #{tpu_custom_call.1} parent=1 // pred_region
      %80 = dma.done [#allocation6], 32
    $region41: #{tpu_custom_call.1} parent=1 // pred_fallthru
      _
    // Predicated region
    $region42: #{tpu_custom_call.1} parent=1 // pred_check
      _
    $region43: #{tpu_custom_call.1} parent=1 // pred_check_branch
      %82 = sbr.rel (0) target = $region45
    $region44: #{tpu_custom_call.1} parent=1 // pred_region
      %83 = dma.done [#allocation9], 16
    $region45: #{tpu_custom_call.1} parent=1 // pred_fallthru
      _
    // Predicated region
    $region46: #{tpu_custom_call.1} parent=1 // pred_check
      _
    $region47: #{tpu_custom_call.1} parent=1 // pred_check_branch
      %85 = sbr.rel (0) target = $region49
    $region48: #{tpu_custom_call.1} parent=1 // pred_region
      %86 = dma.done [#allocation9], 16
    $region49: #{tpu_custom_call.1} parent=1 // pred_fallthru
      _
    %v87 = vld [vmem:[#allocation2] sm:$0xff]
    %v88 = vld [vmem:[#allocation2 + $0x8] sm:$0xff]
    %v89 = vld [vmem:[#allocation2 + $0x10] sm:$0xff]
    %v90 = vld [vmem:[#allocation2 + $0x18] sm:$0xff]
    %v91 = vld [vmem:[#allocation2 + $0x20] sm:$0xff]
    %v92 = vld [vmem:[#allocation2 + $0x28] sm:$0xff]
    %v93 = vld [vmem:[#allocation2 + $0x30] sm:$0xff]
    %v94 = vld [vmem:[#allocation2 + $0x38] sm:$0xff]
    %v95 = vld [vmem:[#allocation2 + $0x40] sm:$0xff]
    %v96 = vld [vmem:[#allocation2 + $0x48] sm:$0xff]
    %v97 = vld [vmem:[#allocation2 + $0x50] sm:$0xff]
    %v98 = vld [vmem:[#allocation2 + $0x58] sm:$0xff]
    %v99 = vld [vmem:[#allocation2 + $0x60] sm:$0xff]
    %v100 = vld [vmem:[#allocation2 + $0x68] sm:$0xff]
    %v101 = vld [vmem:[#allocation2 + $0x70] sm:$0xff]
    %v102 = vld [vmem:[#allocation2 + $0x78] sm:$0xff]
    %v103 = vld [vmem:[#allocation2 + $0x80] sm:$0xff]
    %v104 = vld [vmem:[#allocation2 + $0x88] sm:$0xff]
    %v105 = vld [vmem:[#allocation2 + $0x90] sm:$0xff]
    %v106 = vld [vmem:[#allocation2 + $0x98] sm:$0xff]
    %v107 = vld [vmem:[#allocation2 + $0xa0] sm:$0xff]
    %v108 = vld [vmem:[#allocation2 + $0xa8] sm:$0xff]
    %v109 = vld [vmem:[#allocation2 + $0xb0] sm:$0xff]
    %v110 = vld [vmem:[#allocation2 + $0xb8] sm:$0xff]
    %v111 = vld [vmem:[#allocation2 + $0xc0] sm:$0xff]
    %v112 = vld [vmem:[#allocation2 + $0xc8] sm:$0xff]
    %v113 = vld [vmem:[#allocation2 + $0xd0] sm:$0xff]
    %v114 = vld [vmem:[#allocation2 + $0xd8] sm:$0xff]
    %v115 = vld [vmem:[#allocation2 + $0xe0] sm:$0xff]
    %v116 = vld [vmem:[#allocation2 + $0xe8] sm:$0xff]
    %v117 = vld [vmem:[#allocation2 + $0xf0] sm:$0xff]
    %v118 = vld [vmem:[#allocation2 + $0xf8] sm:$0xff]
    %v119 = vld [vmem:[#allocation5] sm:$0xff]
    %v120 = vld [vmem:[#allocation5 + $0x8] sm:$0xff]
    %v121 = vld [vmem:[#allocation5 + $0x10] sm:$0xff]
    %v122 = vld [vmem:[#allocation5 + $0x18] sm:$0xff]
    %v123 = vld [vmem:[#allocation5 + $0x20] sm:$0xff]
    %v124 = vld [vmem:[#allocation5 + $0x28] sm:$0xff]
    %v125 = vld [vmem:[#allocation5 + $0x30] sm:$0xff]
    %v126 = vld [vmem:[#allocation5 + $0x38] sm:$0xff]
    %v127 = vld [vmem:[#allocation5 + $0x40] sm:$0xff]
    %v128 = vld [vmem:[#allocation5 + $0x48] sm:$0xff]
    %v129 = vld [vmem:[#allocation5 + $0x50] sm:$0xff]
    %v130 = vld [vmem:[#allocation5 + $0x58] sm:$0xff]
    %v131 = vld [vmem:[#allocation5 + $0x60] sm:$0xff]
    %v132 = vld [vmem:[#allocation5 + $0x68] sm:$0xff]
    %v133 = vld [vmem:[#allocation5 + $0x70] sm:$0xff]
    %v134 = vld [vmem:[#allocation5 + $0x78] sm:$0xff]
    %v135 = vld [vmem:[#allocation5 + $0x80] sm:$0xff]
    %v136 = vld [vmem:[#allocation5 + $0x88] sm:$0xff]
    %v137 = vld [vmem:[#allocation5 + $0x90] sm:$0xff]
    %v138 = vld [vmem:[#allocation5 + $0x98] sm:$0xff]
    %v139 = vld [vmem:[#allocation5 + $0xa0] sm:$0xff]
    %v140 = vld [vmem:[#allocation5 + $0xa8] sm:$0xff]
    %v141 = vld [vmem:[#allocation5 + $0xb0] sm:$0xff]
    %v142 = vld [vmem:[#allocation5 + $0xb8] sm:$0xff]
    %v143 = vld [vmem:[#allocation5 + $0xc0] sm:$0xff]
    %v144 = vld [vmem:[#allocation5 + $0xc8] sm:$0xff]
    %v145 = vld [vmem:[#allocation5 + $0xd0] sm:$0xff]
    %v146 = vld [vmem:[#allocation5 + $0xd8] sm:$0xff]
    %v147 = vld [vmem:[#allocation5 + $0xe0] sm:$0xff]
    %v148 = vld [vmem:[#allocation5 + $0xe8] sm:$0xff]
    %v149 = vld [vmem:[#allocation5 + $0xf0] sm:$0xff]
    %v150 = vld [vmem:[#allocation5 + $0xf8] sm:$0xff]
    %v151 = vld [vmem:[#allocation5 + $0x100] sm:$0xff]
    %v152 = vld [vmem:[#allocation5 + $0x108] sm:$0xff]
    %v153 = vld [vmem:[#allocation5 + $0x110] sm:$0xff]
    %v154 = vld [vmem:[#allocation5 + $0x118] sm:$0xff]
    %v155 = vld [vmem:[#allocation5 + $0x120] sm:$0xff]
    %v156 = vld [vmem:[#allocation5 + $0x128] sm:$0xff]
    %v157 = vld [vmem:[#allocation5 + $0x130] sm:$0xff]
    %v158 = vld [vmem:[#allocation5 + $0x138] sm:$0xff]
    %v159 = vld [vmem:[#allocation5 + $0x140] sm:$0xff]
    %v160 = vld [vmem:[#allocation5 + $0x148] sm:$0xff]
    %v161 = vld [vmem:[#allocation5 + $0x150] sm:$0xff]
    %v162 = vld [vmem:[#allocation5 + $0x158] sm:$0xff]
    %v163 = vld [vmem:[#allocation5 + $0x160] sm:$0xff]
    %v164 = vld [vmem:[#allocation5 + $0x168] sm:$0xff]
    %v165 = vld [vmem:[#allocation5 + $0x170] sm:$0xff]
    %v166 = vld [vmem:[#allocation5 + $0x178] sm:$0xff]
    %v167 = vld [vmem:[#allocation5 + $0x180] sm:$0xff]
    %v168 = vld [vmem:[#allocation5 + $0x188] sm:$0xff]
    %v169 = vld [vmem:[#allocation5 + $0x190] sm:$0xff]
    %v170 = vld [vmem:[#allocation5 + $0x198] sm:$0xff]
    %v171 = vld [vmem:[#allocation5 + $0x1a0] sm:$0xff]
    %v172 = vld [vmem:[#allocation5 + $0x1a8] sm:$0xff]
    %v173 = vld [vmem:[#allocation5 + $0x1b0] sm:$0xff]
    %v174 = vld [vmem:[#allocation5 + $0x1b8] sm:$0xff]
    %v175 = vld [vmem:[#allocation5 + $0x1c0] sm:$0xff]
    %v176 = vld [vmem:[#allocation5 + $0x1c8] sm:$0xff]
    %v177 = vld [vmem:[#allocation5 + $0x1d0] sm:$0xff]
    %v178 = vld [vmem:[#allocation5 + $0x1d8] sm:$0xff]
    %v179 = vld [vmem:[#allocation5 + $0x1e0] sm:$0xff]
    %v180 = vld [vmem:[#allocation5 + $0x1e8] sm:$0xff]
    %v181 = vld [vmem:[#allocation5 + $0x1f0] sm:$0xff]
    %v182 = vld [vmem:[#allocation5 + $0x1f8] sm:$0xff]
    %v183 = vld [vmem:[#allocation5 + $0x200] sm:$0xff]
    %v184 = vld [vmem:[#allocation5 + $0x208] sm:$0xff]
    %v185 = vld [vmem:[#allocation5 + $0x210] sm:$0xff]
    %v186 = vld [vmem:[#allocation5 + $0x218] sm:$0xff]
    %v187 = vld [vmem:[#allocation5 + $0x220] sm:$0xff]
    %v188 = vld [vmem:[#allocation5 + $0x228] sm:$0xff]
    %v189 = vld [vmem:[#allocation5 + $0x230] sm:$0xff]
    %v190 = vld [vmem:[#allocation5 + $0x238] sm:$0xff]
    %v191 = vld [vmem:[#allocation5 + $0x240] sm:$0xff]
    %v192 = vld [vmem:[#allocation5 + $0x248] sm:$0xff]
    %v193 = vld [vmem:[#allocation5 + $0x250] sm:$0xff]
    %v194 = vld [vmem:[#allocation5 + $0x258] sm:$0xff]
    %v195 = vld [vmem:[#allocation5 + $0x260] sm:$0xff]
    %v196 = vld [vmem:[#allocation5 + $0x268] sm:$0xff]
    %v197 = vld [vmem:[#allocation5 + $0x270] sm:$0xff]
    %v198 = vld [vmem:[#allocation5 + $0x278] sm:$0xff]
    %v199 = vld [vmem:[#allocation5 + $0x280] sm:$0xff]
    %v200 = vld [vmem:[#allocation5 + $0x288] sm:$0xff]
    %v201 = vld [vmem:[#allocation5 + $0x290] sm:$0xff]
    %v202 = vld [vmem:[#allocation5 + $0x298] sm:$0xff]
    %v203 = vld [vmem:[#allocation5 + $0x2a0] sm:$0xff]
    %v204 = vld [vmem:[#allocation5 + $0x2a8] sm:$0xff]
    %v205 = vld [vmem:[#allocation5 + $0x2b0] sm:$0xff]
    %v206 = vld [vmem:[#allocation5 + $0x2b8] sm:$0xff]
    %v207 = vld [vmem:[#allocation5 + $0x2c0] sm:$0xff]
    %v208 = vld [vmem:[#allocation5 + $0x2c8] sm:$0xff]
    %v209 = vld [vmem:[#allocation5 + $0x2d0] sm:$0xff]
    %v210 = vld [vmem:[#allocation5 + $0x2d8] sm:$0xff]
    %v211 = vld [vmem:[#allocation5 + $0x2e0] sm:$0xff]
    %v212 = vld [vmem:[#allocation5 + $0x2e8] sm:$0xff]
    %v213 = vld [vmem:[#allocation5 + $0x2f0] sm:$0xff]
    %v214 = vld [vmem:[#allocation5 + $0x2f8] sm:$0xff]
    %v215 = vld [vmem:[#allocation5 + $0x300] sm:$0xff]
    %v216 = vld [vmem:[#allocation5 + $0x308] sm:$0xff]
    %v217 = vld [vmem:[#allocation5 + $0x310] sm:$0xff]
    %v218 = vld [vmem:[#allocation5 + $0x318] sm:$0xff]
    %v219 = vld [vmem:[#allocation5 + $0x320] sm:$0xff]
    %v220 = vld [vmem:[#allocation5 + $0x328] sm:$0xff]
    %v221 = vld [vmem:[#allocation5 + $0x330] sm:$0xff]
    %v222 = vld [vmem:[#allocation5 + $0x338] sm:$0xff]
    %v223 = vld [vmem:[#allocation5 + $0x340] sm:$0xff]
    %v224 = vld [vmem:[#allocation5 + $0x348] sm:$0xff]
    %v225 = vld [vmem:[#allocation5 + $0x350] sm:$0xff]
    %v226 = vld [vmem:[#allocation5 + $0x358] sm:$0xff]
    %v227 = vld [vmem:[#allocation5 + $0x360] sm:$0xff]
    %v228 = vld [vmem:[#allocation5 + $0x368] sm:$0xff]
    %v229 = vld [vmem:[#allocation5 + $0x370] sm:$0xff]
    %v230 = vld [vmem:[#allocation5 + $0x378] sm:$0xff]
    %v231 = vld [vmem:[#allocation5 + $0x380] sm:$0xff]
    %v232 = vld [vmem:[#allocation5 + $0x388] sm:$0xff]
    %v233 = vld [vmem:[#allocation5 + $0x390] sm:$0xff]
    %v234 = vld [vmem:[#allocation5 + $0x398] sm:$0xff]
    %v235 = vld [vmem:[#allocation5 + $0x3a0] sm:$0xff]
    %v236 = vld [vmem:[#allocation5 + $0x3a8] sm:$0xff]
    %v237 = vld [vmem:[#allocation5 + $0x3b0] sm:$0xff]
    %v238 = vld [vmem:[#allocation5 + $0x3b8] sm:$0xff]
    %v239 = vld [vmem:[#allocation5 + $0x3c0] sm:$0xff]
    %v240 = vld [vmem:[#allocation5 + $0x3c8] sm:$0xff]
    %v241 = vld [vmem:[#allocation5 + $0x3d0] sm:$0xff]
    %v242 = vld [vmem:[#allocation5 + $0x3d8] sm:$0xff]
    %v243 = vld [vmem:[#allocation5 + $0x3e0] sm:$0xff]
    %v244 = vld [vmem:[#allocation5 + $0x3e8] sm:$0xff]
    %v245 = vld [vmem:[#allocation5 + $0x3f0] sm:$0xff]
    %v246 = vld [vmem:[#allocation5 + $0x3f8] sm:$0xff]
    %v247 = vld [vmem:[#allocation5 + $0x400] sm:$0xff]
    %v248 = vld [vmem:[#allocation5 + $0x408] sm:$0xff]
    %v249 = vld [vmem:[#allocation5 + $0x410] sm:$0xff]
    %v250 = vld [vmem:[#allocation5 + $0x418] sm:$0xff]
    %v251 = vld [vmem:[#allocation5 + $0x420] sm:$0xff]
    %v252 = vld [vmem:[#allocation5 + $0x428] sm:$0xff]
    %v253 = vld [vmem:[#allocation5 + $0x430] sm:$0xff]
    %v254 = vld [vmem:[#allocation5 + $0x438] sm:$0xff]
    %v255 = vld [vmem:[#allocation5 + $0x440] sm:$0xff]
    %v256 = vld [vmem:[#allocation5 + $0x448] sm:$0xff]
    %v257 = vld [vmem:[#allocation5 + $0x450] sm:$0xff]
    %v258 = vld [vmem:[#allocation5 + $0x458] sm:$0xff]
    %v259 = vld [vmem:[#allocation5 + $0x460] sm:$0xff]
    %v260 = vld [vmem:[#allocation5 + $0x468] sm:$0xff]
    %v261 = vld [vmem:[#allocation5 + $0x470] sm:$0xff]
    %v262 = vld [vmem:[#allocation5 + $0x478] sm:$0xff]
    %v263 = vld [vmem:[#allocation5 + $0x480] sm:$0xff]
    %v264 = vld [vmem:[#allocation5 + $0x488] sm:$0xff]
    %v265 = vld [vmem:[#allocation5 + $0x490] sm:$0xff]
    %v266 = vld [vmem:[#allocation5 + $0x498] sm:$0xff]
    %v267 = vld [vmem:[#allocation5 + $0x4a0] sm:$0xff]
    %v268 = vld [vmem:[#allocation5 + $0x4a8] sm:$0xff]
    %v269 = vld [vmem:[#allocation5 + $0x4b0] sm:$0xff]
    %v270 = vld [vmem:[#allocation5 + $0x4b8] sm:$0xff]
    %v271 = vld [vmem:[#allocation5 + $0x4c0] sm:$0xff]
    %v272 = vld [vmem:[#allocation5 + $0x4c8] sm:$0xff]
    %v273 = vld [vmem:[#allocation5 + $0x4d0] sm:$0xff]
    %v274 = vld [vmem:[#allocation5 + $0x4d8] sm:$0xff]
    %v275 = vld [vmem:[#allocation5 + $0x4e0] sm:$0xff]
    %v276 = vld [vmem:[#allocation5 + $0x4e8] sm:$0xff]
    %v277 = vld [vmem:[#allocation5 + $0x4f0] sm:$0xff]
    %v278 = vld [vmem:[#allocation5 + $0x4f8] sm:$0xff]
    %v279 = vld [vmem:[#allocation5 + $0x500] sm:$0xff]
    %v280 = vld [vmem:[#allocation5 + $0x508] sm:$0xff]
    %v281 = vld [vmem:[#allocation5 + $0x510] sm:$0xff]
    %v282 = vld [vmem:[#allocation5 + $0x518] sm:$0xff]
    %v283 = vld [vmem:[#allocation5 + $0x520] sm:$0xff]
    %v284 = vld [vmem:[#allocation5 + $0x528] sm:$0xff]
    %v285 = vld [vmem:[#allocation5 + $0x530] sm:$0xff]
    %v286 = vld [vmem:[#allocation5 + $0x538] sm:$0xff]
    %v287 = vld [vmem:[#allocation5 + $0x540] sm:$0xff]
    %v288 = vld [vmem:[#allocation5 + $0x548] sm:$0xff]
    %v289 = vld [vmem:[#allocation5 + $0x550] sm:$0xff]
    %v290 = vld [vmem:[#allocation5 + $0x558] sm:$0xff]
    %v291 = vld [vmem:[#allocation5 + $0x560] sm:$0xff]
    %v292 = vld [vmem:[#allocation5 + $0x568] sm:$0xff]
    %v293 = vld [vmem:[#allocation5 + $0x570] sm:$0xff]
    %v294 = vld [vmem:[#allocation5 + $0x578] sm:$0xff]
    %v295 = vld [vmem:[#allocation5 + $0x580] sm:$0xff]
    %v296 = vld [vmem:[#allocation5 + $0x588] sm:$0xff]
    %v297 = vld [vmem:[#allocation5 + $0x590] sm:$0xff]
    %v298 = vld [vmem:[#allocation5 + $0x598] sm:$0xff]
    %v299 = vld [vmem:[#allocation5 + $0x5a0] sm:$0xff]
    %v300 = vld [vmem:[#allocation5 + $0x5a8] sm:$0xff]
    %v301 = vld [vmem:[#allocation5 + $0x5b0] sm:$0xff]
    %v302 = vld [vmem:[#allocation5 + $0x5b8] sm:$0xff]
    %v303 = vld [vmem:[#allocation5 + $0x5c0] sm:$0xff]
    %v304 = vld [vmem:[#allocation5 + $0x5c8] sm:$0xff]
    %v305 = vld [vmem:[#allocation5 + $0x5d0] sm:$0xff]
    %v306 = vld [vmem:[#allocation5 + $0x5d8] sm:$0xff]
    %v307 = vld [vmem:[#allocation5 + $0x5e0] sm:$0xff]
    %v308 = vld [vmem:[#allocation5 + $0x5e8] sm:$0xff]
    %v309 = vld [vmem:[#allocation5 + $0x5f0] sm:$0xff]
    %v310 = vld [vmem:[#allocation5 + $0x5f8] sm:$0xff]
    %v311 = vld [vmem:[#allocation5 + $0x600] sm:$0xff]
    %v312 = vld [vmem:[#allocation5 + $0x608] sm:$0xff]
    %v313 = vld [vmem:[#allocation5 + $0x610] sm:$0xff]
    %v314 = vld [vmem:[#allocation5 + $0x618] sm:$0xff]
    %v315 = vld [vmem:[#allocation5 + $0x620] sm:$0xff]
    %v316 = vld [vmem:[#allocation5 + $0x628] sm:$0xff]
    %v317 = vld [vmem:[#allocation5 + $0x630] sm:$0xff]
    %v318 = vld [vmem:[#allocation5 + $0x638] sm:$0xff]
    %v319 = vld [vmem:[#allocation5 + $0x640] sm:$0xff]
    %v320 = vld [vmem:[#allocation5 + $0x648] sm:$0xff]
    %v321 = vld [vmem:[#allocation5 + $0x650] sm:$0xff]
    %v322 = vld [vmem:[#allocation5 + $0x658] sm:$0xff]
    %v323 = vld [vmem:[#allocation5 + $0x660] sm:$0xff]
    %v324 = vld [vmem:[#allocation5 + $0x668] sm:$0xff]
    %v325 = vld [vmem:[#allocation5 + $0x670] sm:$0xff]
    %v326 = vld [vmem:[#allocation5 + $0x678] sm:$0xff]
    %v327 = vld [vmem:[#allocation5 + $0x680] sm:$0xff]
    %v328 = vld [vmem:[#allocation5 + $0x688] sm:$0xff]
    %v329 = vld [vmem:[#allocation5 + $0x690] sm:$0xff]
    %v330 = vld [vmem:[#allocation5 + $0x698] sm:$0xff]
    %v331 = vld [vmem:[#allocation5 + $0x6a0] sm:$0xff]
    %v332 = vld [vmem:[#allocation5 + $0x6a8] sm:$0xff]
    %v333 = vld [vmem:[#allocation5 + $0x6b0] sm:$0xff]
    %v334 = vld [vmem:[#allocation5 + $0x6b8] sm:$0xff]
    %v335 = vld [vmem:[#allocation5 + $0x6c0] sm:$0xff]
    %v336 = vld [vmem:[#allocation5 + $0x6c8] sm:$0xff]
    %v337 = vld [vmem:[#allocation5 + $0x6d0] sm:$0xff]
    %v338 = vld [vmem:[#allocation5 + $0x6d8] sm:$0xff]
    %v339 = vld [vmem:[#allocation5 + $0x6e0] sm:$0xff]
    %v340 = vld [vmem:[#allocation5 + $0x6e8] sm:$0xff]
    %v341 = vld [vmem:[#allocation5 + $0x6f0] sm:$0xff]
    %v342 = vld [vmem:[#allocation5 + $0x6f8] sm:$0xff]
    %v343 = vld [vmem:[#allocation5 + $0x700] sm:$0xff]
    %v344 = vld [vmem:[#allocation5 + $0x708] sm:$0xff]
    %v345 = vld [vmem:[#allocation5 + $0x710] sm:$0xff]
    %v346 = vld [vmem:[#allocation5 + $0x718] sm:$0xff]
    %v347 = vld [vmem:[#allocation5 + $0x720] sm:$0xff]
    %v348 = vld [vmem:[#allocation5 + $0x728] sm:$0xff]
    %v349 = vld [vmem:[#allocation5 + $0x730] sm:$0xff]
    %v350 = vld [vmem:[#allocation5 + $0x738] sm:$0xff]
    %v351 = vld [vmem:[#allocation5 + $0x740] sm:$0xff]
    %v352 = vld [vmem:[#allocation5 + $0x748] sm:$0xff]
    %v353 = vld [vmem:[#allocation5 + $0x750] sm:$0xff]
    %v354 = vld [vmem:[#allocation5 + $0x758] sm:$0xff]
    %v355 = vld [vmem:[#allocation5 + $0x760] sm:$0xff]
    %v356 = vld [vmem:[#allocation5 + $0x768] sm:$0xff]
    %v357 = vld [vmem:[#allocation5 + $0x770] sm:$0xff]
    %v358 = vld [vmem:[#allocation5 + $0x778] sm:$0xff]
    %v359 = vld [vmem:[#allocation5 + $0x780] sm:$0xff]
    %v360 = vld [vmem:[#allocation5 + $0x788] sm:$0xff]
    %v361 = vld [vmem:[#allocation5 + $0x790] sm:$0xff]
    %v362 = vld [vmem:[#allocation5 + $0x798] sm:$0xff]
    %v363 = vld [vmem:[#allocation5 + $0x7a0] sm:$0xff]
    %v364 = vld [vmem:[#allocation5 + $0x7a8] sm:$0xff]
    %v365 = vld [vmem:[#allocation5 + $0x7b0] sm:$0xff]
    %v366 = vld [vmem:[#allocation5 + $0x7b8] sm:$0xff]
    %v367 = vld [vmem:[#allocation5 + $0x7c0] sm:$0xff]
    %v368 = vld [vmem:[#allocation5 + $0x7c8] sm:$0xff]
    %v369 = vld [vmem:[#allocation5 + $0x7d0] sm:$0xff]
    %v370 = vld [vmem:[#allocation5 + $0x7d8] sm:$0xff]
    %v371 = vld [vmem:[#allocation5 + $0x7e0] sm:$0xff]
    %v372 = vld [vmem:[#allocation5 + $0x7e8] sm:$0xff]
    %v373 = vld [vmem:[#allocation5 + $0x7f0] sm:$0xff]
    %v374 = vld [vmem:[#allocation5 + $0x7f8] sm:$0xff]
    %v375 = vld [vmem:[#allocation5 + $0x800] sm:$0xff]
    %v376 = vld [vmem:[#allocation5 + $0x808] sm:$0xff]
    %v377 = vld [vmem:[#allocation5 + $0x810] sm:$0xff]
    %v378 = vld [vmem:[#allocation5 + $0x818] sm:$0xff]
    %v379 = vld [vmem:[#allocation5 + $0x820] sm:$0xff]
    %v380 = vld [vmem:[#allocation5 + $0x828] sm:$0xff]
    %v381 = vld [vmem:[#allocation5 + $0x830] sm:$0xff]
    %v382 = vld [vmem:[#allocation5 + $0x838] sm:$0xff]
    %v383 = vld [vmem:[#allocation5 + $0x840] sm:$0xff]
    %v384 = vld [vmem:[#allocation5 + $0x848] sm:$0xff]
    %v385 = vld [vmem:[#allocation5 + $0x850] sm:$0xff]
    %v386 = vld [vmem:[#allocation5 + $0x858] sm:$0xff]
    %v387 = vld [vmem:[#allocation5 + $0x860] sm:$0xff]
    %v388 = vld [vmem:[#allocation5 + $0x868] sm:$0xff]
    %v389 = vld [vmem:[#allocation5 + $0x870] sm:$0xff]
    %v390 = vld [vmem:[#allocation5 + $0x878] sm:$0xff]
    %v391 = vld [vmem:[#allocation5 + $0x880] sm:$0xff]
    %v392 = vld [vmem:[#allocation5 + $0x888] sm:$0xff]
    %v393 = vld [vmem:[#allocation5 + $0x890] sm:$0xff]
    %v394 = vld [vmem:[#allocation5 + $0x898] sm:$0xff]
    %v395 = vld [vmem:[#allocation5 + $0x8a0] sm:$0xff]
    %v396 = vld [vmem:[#allocation5 + $0x8a8] sm:$0xff]
    %v397 = vld [vmem:[#allocation5 + $0x8b0] sm:$0xff]
    %v398 = vld [vmem:[#allocation5 + $0x8b8] sm:$0xff]
    %v399 = vld [vmem:[#allocation5 + $0x8c0] sm:$0xff]
    %v400 = vld [vmem:[#allocation5 + $0x8c8] sm:$0xff]
    %v401 = vld [vmem:[#allocation5 + $0x8d0] sm:$0xff]
    %v402 = vld [vmem:[#allocation5 + $0x8d8] sm:$0xff]
    %v403 = vld [vmem:[#allocation5 + $0x8e0] sm:$0xff]
    %v404 = vld [vmem:[#allocation5 + $0x8e8] sm:$0xff]
    %v405 = vld [vmem:[#allocation5 + $0x8f0] sm:$0xff]
    %v406 = vld [vmem:[#allocation5 + $0x8f8] sm:$0xff]
    %v407 = vld [vmem:[#allocation5 + $0x900] sm:$0xff]
    %v408 = vld [vmem:[#allocation5 + $0x908] sm:$0xff]
    %v409 = vld [vmem:[#allocation5 + $0x910] sm:$0xff]
    %v410 = vld [vmem:[#allocation5 + $0x918] sm:$0xff]
    %v411 = vld [vmem:[#allocation5 + $0x920] sm:$0xff]
    %v412 = vld [vmem:[#allocation5 + $0x928] sm:$0xff]
    %v413 = vld [vmem:[#allocation5 + $0x930] sm:$0xff]
    %v414 = vld [vmem:[#allocation5 + $0x938] sm:$0xff]
    %v415 = vld [vmem:[#allocation5 + $0x940] sm:$0xff]
    %v416 = vld [vmem:[#allocation5 + $0x948] sm:$0xff]
    %v417 = vld [vmem:[#allocation5 + $0x950] sm:$0xff]
    %v418 = vld [vmem:[#allocation5 + $0x958] sm:$0xff]
    %v419 = vld [vmem:[#allocation5 + $0x960] sm:$0xff]
    %v420 = vld [vmem:[#allocation5 + $0x968] sm:$0xff]
    %v421 = vld [vmem:[#allocation5 + $0x970] sm:$0xff]
    %v422 = vld [vmem:[#allocation5 + $0x978] sm:$0xff]
    %v423 = vld [vmem:[#allocation5 + $0x980] sm:$0xff]
    %v424 = vld [vmem:[#allocation5 + $0x988] sm:$0xff]
    %v425 = vld [vmem:[#allocation5 + $0x990] sm:$0xff]
    %v426 = vld [vmem:[#allocation5 + $0x998] sm:$0xff]
    %v427 = vld [vmem:[#allocation5 + $0x9a0] sm:$0xff]
    %v428 = vld [vmem:[#allocation5 + $0x9a8] sm:$0xff]
    %v429 = vld [vmem:[#allocation5 + $0x9b0] sm:$0xff]
    %v430 = vld [vmem:[#allocation5 + $0x9b8] sm:$0xff]
    %v431 = vld [vmem:[#allocation5 + $0x9c0] sm:$0xff]
    %v432 = vld [vmem:[#allocation5 + $0x9c8] sm:$0xff]
    %v433 = vld [vmem:[#allocation5 + $0x9d0] sm:$0xff]
    %v434 = vld [vmem:[#allocation5 + $0x9d8] sm:$0xff]
    %v435 = vld [vmem:[#allocation5 + $0x9e0] sm:$0xff]
    %v436 = vld [vmem:[#allocation5 + $0x9e8] sm:$0xff]
    %v437 = vld [vmem:[#allocation5 + $0x9f0] sm:$0xff]
    %v438 = vld [vmem:[#allocation5 + $0x9f8] sm:$0xff]
    %v439 = vld [vmem:[#allocation5 + $0xa00] sm:$0xff]
    %v440 = vld [vmem:[#allocation5 + $0xa08] sm:$0xff]
    %v441 = vld [vmem:[#allocation5 + $0xa10] sm:$0xff]
    %v442 = vld [vmem:[#allocation5 + $0xa18] sm:$0xff]
    %v443 = vld [vmem:[#allocation5 + $0xa20] sm:$0xff]
    %v444 = vld [vmem:[#allocation5 + $0xa28] sm:$0xff]
    %v445 = vld [vmem:[#allocation5 + $0xa30] sm:$0xff]
    %v446 = vld [vmem:[#allocation5 + $0xa38] sm:$0xff]
    %v447 = vld [vmem:[#allocation5 + $0xa40] sm:$0xff]
    %v448 = vld [vmem:[#allocation5 + $0xa48] sm:$0xff]
    %v449 = vld [vmem:[#allocation5 + $0xa50] sm:$0xff]
    %v450 = vld [vmem:[#allocation5 + $0xa58] sm:$0xff]
    %v451 = vld [vmem:[#allocation5 + $0xa60] sm:$0xff]
    %v452 = vld [vmem:[#allocation5 + $0xa68] sm:$0xff]
    %v453 = vld [vmem:[#allocation5 + $0xa70] sm:$0xff]
    %v454 = vld [vmem:[#allocation5 + $0xa78] sm:$0xff]
    %v455 = vld [vmem:[#allocation5 + $0xa80] sm:$0xff]
    %v456 = vld [vmem:[#allocation5 + $0xa88] sm:$0xff]
    %v457 = vld [vmem:[#allocation5 + $0xa90] sm:$0xff]
    %v458 = vld [vmem:[#allocation5 + $0xa98] sm:$0xff]
    %v459 = vld [vmem:[#allocation5 + $0xaa0] sm:$0xff]
    %v460 = vld [vmem:[#allocation5 + $0xaa8] sm:$0xff]
    %v461 = vld [vmem:[#allocation5 + $0xab0] sm:$0xff]
    %v462 = vld [vmem:[#allocation5 + $0xab8] sm:$0xff]
    %v463 = vld [vmem:[#allocation5 + $0xac0] sm:$0xff]
    %v464 = vld [vmem:[#allocation5 + $0xac8] sm:$0xff]
    %v465 = vld [vmem:[#allocation5 + $0xad0] sm:$0xff]
    %v466 = vld [vmem:[#allocation5 + $0xad8] sm:$0xff]
    %v467 = vld [vmem:[#allocation5 + $0xae0] sm:$0xff]
    %v468 = vld [vmem:[#allocation5 + $0xae8] sm:$0xff]
    %v469 = vld [vmem:[#allocation5 + $0xaf0] sm:$0xff]
    %v470 = vld [vmem:[#allocation5 + $0xaf8] sm:$0xff]
    %v471 = vld [vmem:[#allocation5 + $0xb00] sm:$0xff]
    %v472 = vld [vmem:[#allocation5 + $0xb08] sm:$0xff]
    %v473 = vld [vmem:[#allocation5 + $0xb10] sm:$0xff]
    %v474 = vld [vmem:[#allocation5 + $0xb18] sm:$0xff]
    %v475 = vld [vmem:[#allocation5 + $0xb20] sm:$0xff]
    %v476 = vld [vmem:[#allocation5 + $0xb28] sm:$0xff]
    %v477 = vld [vmem:[#allocation5 + $0xb30] sm:$0xff]
    %v478 = vld [vmem:[#allocation5 + $0xb38] sm:$0xff]
    %v479 = vld [vmem:[#allocation5 + $0xb40] sm:$0xff]
    %v480 = vld [vmem:[#allocation5 + $0xb48] sm:$0xff]
    %v481 = vld [vmem:[#allocation5 + $0xb50] sm:$0xff]
    %v482 = vld [vmem:[#allocation5 + $0xb58] sm:$0xff]
    %v483 = vld [vmem:[#allocation5 + $0xb60] sm:$0xff]
    %v484 = vld [vmem:[#allocation5 + $0xb68] sm:$0xff]
    %v485 = vld [vmem:[#allocation5 + $0xb70] sm:$0xff]
    %v486 = vld [vmem:[#allocation5 + $0xb78] sm:$0xff]
    %v487 = vld [vmem:[#allocation5 + $0xb80] sm:$0xff]
    %v488 = vld [vmem:[#allocation5 + $0xb88] sm:$0xff]
    %v489 = vld [vmem:[#allocation5 + $0xb90] sm:$0xff]
    %v490 = vld [vmem:[#allocation5 + $0xb98] sm:$0xff]
    %v491 = vld [vmem:[#allocation5 + $0xba0] sm:$0xff]
    %v492 = vld [vmem:[#allocation5 + $0xba8] sm:$0xff]
    %v493 = vld [vmem:[#allocation5 + $0xbb0] sm:$0xff]
    %v494 = vld [vmem:[#allocation5 + $0xbb8] sm:$0xff]
    %v495 = vld [vmem:[#allocation5 + $0xbc0] sm:$0xff]
    %v496 = vld [vmem:[#allocation5 + $0xbc8] sm:$0xff]
    %v497 = vld [vmem:[#allocation5 + $0xbd0] sm:$0xff]
    %v498 = vld [vmem:[#allocation5 + $0xbd8] sm:$0xff]
    %v499 = vld [vmem:[#allocation5 + $0xbe0] sm:$0xff]
    %v500 = vld [vmem:[#allocation5 + $0xbe8] sm:$0xff]
    %v501 = vld [vmem:[#allocation5 + $0xbf0] sm:$0xff]
    %v502 = vld [vmem:[#allocation5 + $0xbf8] sm:$0xff]
    %v503 = vld [vmem:[#allocation5 + $0xc00] sm:$0xff]
    %v504 = vld [vmem:[#allocation5 + $0xc08] sm:$0xff]
    %v505 = vld [vmem:[#allocation5 + $0xc10] sm:$0xff]
    %v506 = vld [vmem:[#allocation5 + $0xc18] sm:$0xff]
    %v507 = vld [vmem:[#allocation5 + $0xc20] sm:$0xff]
    %v508 = vld [vmem:[#allocation5 + $0xc28] sm:$0xff]
    %v509 = vld [vmem:[#allocation5 + $0xc30] sm:$0xff]
    %v510 = vld [vmem:[#allocation5 + $0xc38] sm:$0xff]
    %v511 = vld [vmem:[#allocation5 + $0xc40] sm:$0xff]
    %v512 = vld [vmem:[#allocation5 + $0xc48] sm:$0xff]
    %v513 = vld [vmem:[#allocation5 + $0xc50] sm:$0xff]
    %v514 = vld [vmem:[#allocation5 + $0xc58] sm:$0xff]
    %v515 = vld [vmem:[#allocation5 + $0xc60] sm:$0xff]
    %v516 = vld [vmem:[#allocation5 + $0xc68] sm:$0xff]
    %v517 = vld [vmem:[#allocation5 + $0xc70] sm:$0xff]
    %v518 = vld [vmem:[#allocation5 + $0xc78] sm:$0xff]
    %v519 = vld [vmem:[#allocation5 + $0xc80] sm:$0xff]
    %v520 = vld [vmem:[#allocation5 + $0xc88] sm:$0xff]
    %v521 = vld [vmem:[#allocation5 + $0xc90] sm:$0xff]
    %v522 = vld [vmem:[#allocation5 + $0xc98] sm:$0xff]
    %v523 = vld [vmem:[#allocation5 + $0xca0] sm:$0xff]
    %v524 = vld [vmem:[#allocation5 + $0xca8] sm:$0xff]
    %v525 = vld [vmem:[#allocation5 + $0xcb0] sm:$0xff]
    %v526 = vld [vmem:[#allocation5 + $0xcb8] sm:$0xff]
    %v527 = vld [vmem:[#allocation5 + $0xcc0] sm:$0xff]
    %v528 = vld [vmem:[#allocation5 + $0xcc8] sm:$0xff]
    %v529 = vld [vmem:[#allocation5 + $0xcd0] sm:$0xff]
    %v530 = vld [vmem:[#allocation5 + $0xcd8] sm:$0xff]
    %v531 = vld [vmem:[#allocation5 + $0xce0] sm:$0xff]
    %v532 = vld [vmem:[#allocation5 + $0xce8] sm:$0xff]
    %v533 = vld [vmem:[#allocation5 + $0xcf0] sm:$0xff]
    %v534 = vld [vmem:[#allocation5 + $0xcf8] sm:$0xff]
    %v535 = vld [vmem:[#allocation5 + $0xd00] sm:$0xff]
    %v536 = vld [vmem:[#allocation5 + $0xd08] sm:$0xff]
    %v537 = vld [vmem:[#allocation5 + $0xd10] sm:$0xff]
    %v538 = vld [vmem:[#allocation5 + $0xd18] sm:$0xff]
    %v539 = vld [vmem:[#allocation5 + $0xd20] sm:$0xff]
    %v540 = vld [vmem:[#allocation5 + $0xd28] sm:$0xff]
    %v541 = vld [vmem:[#allocation5 + $0xd30] sm:$0xff]
    %v542 = vld [vmem:[#allocation5 + $0xd38] sm:$0xff]
    %v543 = vld [vmem:[#allocation5 + $0xd40] sm:$0xff]
    %v544 = vld [vmem:[#allocation5 + $0xd48] sm:$0xff]
    %v545 = vld [vmem:[#allocation5 + $0xd50] sm:$0xff]
    %v546 = vld [vmem:[#allocation5 + $0xd58] sm:$0xff]
    %v547 = vld [vmem:[#allocation5 + $0xd60] sm:$0xff]
    %v548 = vld [vmem:[#allocation5 + $0xd68] sm:$0xff]
    %v549 = vld [vmem:[#allocation5 + $0xd70] sm:$0xff]
    %v550 = vld [vmem:[#allocation5 + $0xd78] sm:$0xff]
    %v551 = vld [vmem:[#allocation5 + $0xd80] sm:$0xff]
    %v552 = vld [vmem:[#allocation5 + $0xd88] sm:$0xff]
    %v553 = vld [vmem:[#allocation5 + $0xd90] sm:$0xff]
    %v554 = vld [vmem:[#allocation5 + $0xd98] sm:$0xff]
    %v555 = vld [vmem:[#allocation5 + $0xda0] sm:$0xff]
    %v556 = vld [vmem:[#allocation5 + $0xda8] sm:$0xff]
    %v557 = vld [vmem:[#allocation5 + $0xdb0] sm:$0xff]
    %v558 = vld [vmem:[#allocation5 + $0xdb8] sm:$0xff]
    %v559 = vld [vmem:[#allocation5 + $0xdc0] sm:$0xff]
    %v560 = vld [vmem:[#allocation5 + $0xdc8] sm:$0xff]
    %v561 = vld [vmem:[#allocation5 + $0xdd0] sm:$0xff]
    %v562 = vld [vmem:[#allocation5 + $0xdd8] sm:$0xff]
    %v563 = vld [vmem:[#allocation5 + $0xde0] sm:$0xff]
    %v564 = vld [vmem:[#allocation5 + $0xde8] sm:$0xff]
    %v565 = vld [vmem:[#allocation5 + $0xdf0] sm:$0xff]
    %v566 = vld [vmem:[#allocation5 + $0xdf8] sm:$0xff]
    %v567 = vld [vmem:[#allocation5 + $0xe00] sm:$0xff]
    %v568 = vld [vmem:[#allocation5 + $0xe08] sm:$0xff]
    %v569 = vld [vmem:[#allocation5 + $0xe10] sm:$0xff]
    %v570 = vld [vmem:[#allocation5 + $0xe18] sm:$0xff]
    %v571 = vld [vmem:[#allocation5 + $0xe20] sm:$0xff]
    %v572 = vld [vmem:[#allocation5 + $0xe28] sm:$0xff]
    %v573 = vld [vmem:[#allocation5 + $0xe30] sm:$0xff]
    %v574 = vld [vmem:[#allocation5 + $0xe38] sm:$0xff]
    %v575 = vld [vmem:[#allocation5 + $0xe40] sm:$0xff]
    %v576 = vld [vmem:[#allocation5 + $0xe48] sm:$0xff]
    %v577 = vld [vmem:[#allocation5 + $0xe50] sm:$0xff]
    %v578 = vld [vmem:[#allocation5 + $0xe58] sm:$0xff]
    %v579 = vld [vmem:[#allocation5 + $0xe60] sm:$0xff]
    %v580 = vld [vmem:[#allocation5 + $0xe68] sm:$0xff]
    %v581 = vld [vmem:[#allocation5 + $0xe70] sm:$0xff]
    %v582 = vld [vmem:[#allocation5 + $0xe78] sm:$0xff]
    %v583 = vld [vmem:[#allocation5 + $0xe80] sm:$0xff]
    %v584 = vld [vmem:[#allocation5 + $0xe88] sm:$0xff]
    %v585 = vld [vmem:[#allocation5 + $0xe90] sm:$0xff]
    %v586 = vld [vmem:[#allocation5 + $0xe98] sm:$0xff]
    %v587 = vld [vmem:[#allocation5 + $0xea0] sm:$0xff]
    %v588 = vld [vmem:[#allocation5 + $0xea8] sm:$0xff]
    %v589 = vld [vmem:[#allocation5 + $0xeb0] sm:$0xff]
    %v590 = vld [vmem:[#allocation5 + $0xeb8] sm:$0xff]
    %v591 = vld [vmem:[#allocation5 + $0xec0] sm:$0xff]
    %v592 = vld [vmem:[#allocation5 + $0xec8] sm:$0xff]
    %v593 = vld [vmem:[#allocation5 + $0xed0] sm:$0xff]
    %v594 = vld [vmem:[#allocation5 + $0xed8] sm:$0xff]
    %v595 = vld [vmem:[#allocation5 + $0xee0] sm:$0xff]
    %v596 = vld [vmem:[#allocation5 + $0xee8] sm:$0xff]
    %v597 = vld [vmem:[#allocation5 + $0xef0] sm:$0xff]
    %v598 = vld [vmem:[#allocation5 + $0xef8] sm:$0xff]
    %v599 = vld [vmem:[#allocation5 + $0xf00] sm:$0xff]
    %v600 = vld [vmem:[#allocation5 + $0xf08] sm:$0xff]
    %v601 = vld [vmem:[#allocation5 + $0xf10] sm:$0xff]
    %v602 = vld [vmem:[#allocation5 + $0xf18] sm:$0xff]
    %v603 = vld [vmem:[#allocation5 + $0xf20] sm:$0xff]
    %v604 = vld [vmem:[#allocation5 + $0xf28] sm:$0xff]
    %v605 = vld [vmem:[#allocation5 + $0xf30] sm:$0xff]
    %v606 = vld [vmem:[#allocation5 + $0xf38] sm:$0xff]
    %v607 = vld [vmem:[#allocation5 + $0xf40] sm:$0xff]
    %v608 = vld [vmem:[#allocation5 + $0xf48] sm:$0xff]
    %v609 = vld [vmem:[#allocation5 + $0xf50] sm:$0xff]
    %v610 = vld [vmem:[#allocation5 + $0xf58] sm:$0xff]
    %v611 = vld [vmem:[#allocation5 + $0xf60] sm:$0xff]
    %v612 = vld [vmem:[#allocation5 + $0xf68] sm:$0xff]
    %v613 = vld [vmem:[#allocation5 + $0xf70] sm:$0xff]
    %v614 = vld [vmem:[#allocation5 + $0xf78] sm:$0xff]
    %v615 = vld [vmem:[#allocation5 + $0xf80] sm:$0xff]
    %v616 = vld [vmem:[#allocation5 + $0xf88] sm:$0xff]
    %v617 = vld [vmem:[#allocation5 + $0xf90] sm:$0xff]
    %v618 = vld [vmem:[#allocation5 + $0xf98] sm:$0xff]
    %v619 = vld [vmem:[#allocation5 + $0xfa0] sm:$0xff]
    %v620 = vld [vmem:[#allocation5 + $0xfa8] sm:$0xff]
    %v621 = vld [vmem:[#allocation5 + $0xfb0] sm:$0xff]
    %v622 = vld [vmem:[#allocation5 + $0xfb8] sm:$0xff]
    %v623 = vld [vmem:[#allocation5 + $0xfc0] sm:$0xff]
    %v624 = vld [vmem:[#allocation5 + $0xfc8] sm:$0xff]
    %v625 = vld [vmem:[#allocation5 + $0xfd0] sm:$0xff]
    %v626 = vld [vmem:[#allocation5 + $0xfd8] sm:$0xff]
    %v627 = vld [vmem:[#allocation5 + $0xfe0] sm:$0xff]
    %v628 = vld [vmem:[#allocation5 + $0xfe8] sm:$0xff]
    %v629 = vld [vmem:[#allocation5 + $0xff0] sm:$0xff]
    %v630 = vld [vmem:[#allocation5 + $0xff8] sm:$0xff]
    %v631 = vld [vmem:[#allocation5 + $0x1000] sm:$0xff]
    %v632 = vld [vmem:[#allocation5 + $0x1008] sm:$0xff]
    %v633 = vld [vmem:[#allocation5 + $0x1010] sm:$0xff]
    %v634 = vld [vmem:[#allocation5 + $0x1018] sm:$0xff]
    %v635 = vld [vmem:[#allocation5 + $0x1020] sm:$0xff]
    %v636 = vld [vmem:[#allocation5 + $0x1028] sm:$0xff]
    %v637 = vld [vmem:[#allocation5 + $0x1030] sm:$0xff]
    %v638 = vld [vmem:[#allocation5 + $0x1038] sm:$0xff]
    %v639 = vld [vmem:[#allocation5 + $0x1040] sm:$0xff]
    %v640 = vld [vmem:[#allocation5 + $0x1048] sm:$0xff]
    %v641 = vld [vmem:[#allocation5 + $0x1050] sm:$0xff]
    %v642 = vld [vmem:[#allocation5 + $0x1058] sm:$0xff]
    %v643 = vld [vmem:[#allocation5 + $0x1060] sm:$0xff]
    %v644 = vld [vmem:[#allocation5 + $0x1068] sm:$0xff]
    %v645 = vld [vmem:[#allocation5 + $0x1070] sm:$0xff]
    %v646 = vld [vmem:[#allocation5 + $0x1078] sm:$0xff]
    %v647 = vld [vmem:[#allocation5 + $0x1080] sm:$0xff]
    %v648 = vld [vmem:[#allocation5 + $0x1088] sm:$0xff]
    %v649 = vld [vmem:[#allocation5 + $0x1090] sm:$0xff]
    %v650 = vld [vmem:[#allocation5 + $0x1098] sm:$0xff]
    %v651 = vld [vmem:[#allocation5 + $0x10a0] sm:$0xff]
    %v652 = vld [vmem:[#allocation5 + $0x10a8] sm:$0xff]
    %v653 = vld [vmem:[#allocation5 + $0x10b0] sm:$0xff]
    %v654 = vld [vmem:[#allocation5 + $0x10b8] sm:$0xff]
    %v655 = vld [vmem:[#allocation5 + $0x10c0] sm:$0xff]
    %v656 = vld [vmem:[#allocation5 + $0x10c8] sm:$0xff]
    %v657 = vld [vmem:[#allocation5 + $0x10d0] sm:$0xff]
    %v658 = vld [vmem:[#allocation5 + $0x10d8] sm:$0xff]
    %v659 = vld [vmem:[#allocation5 + $0x10e0] sm:$0xff]
    %v660 = vld [vmem:[#allocation5 + $0x10e8] sm:$0xff]
    %v661 = vld [vmem:[#allocation5 + $0x10f0] sm:$0xff]
    %v662 = vld [vmem:[#allocation5 + $0x10f8] sm:$0xff]
    %v663 = vld [vmem:[#allocation5 + $0x1100] sm:$0xff]
    %v664 = vld [vmem:[#allocation5 + $0x1108] sm:$0xff]
    %v665 = vld [vmem:[#allocation5 + $0x1110] sm:$0xff]
    %v666 = vld [vmem:[#allocation5 + $0x1118] sm:$0xff]
    %v667 = vld [vmem:[#allocation5 + $0x1120] sm:$0xff]
    %v668 = vld [vmem:[#allocation5 + $0x1128] sm:$0xff]
    %v669 = vld [vmem:[#allocation5 + $0x1130] sm:$0xff]
    %v670 = vld [vmem:[#allocation5 + $0x1138] sm:$0xff]
    %v671 = vld [vmem:[#allocation5 + $0x1140] sm:$0xff]
    %v672 = vld [vmem:[#allocation5 + $0x1148] sm:$0xff]
    %v673 = vld [vmem:[#allocation5 + $0x1150] sm:$0xff]
    %v674 = vld [vmem:[#allocation5 + $0x1158] sm:$0xff]
    %v675 = vld [vmem:[#allocation5 + $0x1160] sm:$0xff]
    %v676 = vld [vmem:[#allocation5 + $0x1168] sm:$0xff]
    %v677 = vld [vmem:[#allocation5 + $0x1170] sm:$0xff]
    %v678 = vld [vmem:[#allocation5 + $0x1178] sm:$0xff]
    %v679 = vld [vmem:[#allocation5 + $0x1180] sm:$0xff]
    %v680 = vld [vmem:[#allocation5 + $0x1188] sm:$0xff]
    %v681 = vld [vmem:[#allocation5 + $0x1190] sm:$0xff]
    %v682 = vld [vmem:[#allocation5 + $0x1198] sm:$0xff]
    %v683 = vld [vmem:[#allocation5 + $0x11a0] sm:$0xff]
    %v684 = vld [vmem:[#allocation5 + $0x11a8] sm:$0xff]
    %v685 = vld [vmem:[#allocation5 + $0x11b0] sm:$0xff]
    %v686 = vld [vmem:[#allocation5 + $0x11b8] sm:$0xff]
    %v687 = vld [vmem:[#allocation5 + $0x11c0] sm:$0xff]
    %v688 = vld [vmem:[#allocation5 + $0x11c8] sm:$0xff]
    %v689 = vld [vmem:[#allocation5 + $0x11d0] sm:$0xff]
    %v690 = vld [vmem:[#allocation5 + $0x11d8] sm:$0xff]
    %v691 = vld [vmem:[#allocation5 + $0x11e0] sm:$0xff]
    %v692 = vld [vmem:[#allocation5 + $0x11e8] sm:$0xff]
    %v693 = vld [vmem:[#allocation5 + $0x11f0] sm:$0xff]
    %v694 = vld [vmem:[#allocation5 + $0x11f8] sm:$0xff]
    %v695 = vld [vmem:[#allocation5 + $0x1200] sm:$0xff]
    %v696 = vld [vmem:[#allocation5 + $0x1208] sm:$0xff]
    %v697 = vld [vmem:[#allocation5 + $0x1210] sm:$0xff]
    %v698 = vld [vmem:[#allocation5 + $0x1218] sm:$0xff]
    %v699 = vld [vmem:[#allocation5 + $0x1220] sm:$0xff]
    %v700 = vld [vmem:[#allocation5 + $0x1228] sm:$0xff]
    %v701 = vld [vmem:[#allocation5 + $0x1230] sm:$0xff]
    %v702 = vld [vmem:[#allocation5 + $0x1238] sm:$0xff]
    %v703 = vld [vmem:[#allocation5 + $0x1240] sm:$0xff]
    %v704 = vld [vmem:[#allocation5 + $0x1248] sm:$0xff]
    %v705 = vld [vmem:[#allocation5 + $0x1250] sm:$0xff]
    %v706 = vld [vmem:[#allocation5 + $0x1258] sm:$0xff]
    %v707 = vld [vmem:[#allocation5 + $0x1260] sm:$0xff]
    %v708 = vld [vmem:[#allocation5 + $0x1268] sm:$0xff]
    %v709 = vld [vmem:[#allocation5 + $0x1270] sm:$0xff]
    %v710 = vld [vmem:[#allocation5 + $0x1278] sm:$0xff]
    %v711 = vld [vmem:[#allocation5 + $0x1280] sm:$0xff]
    %v712 = vld [vmem:[#allocation5 + $0x1288] sm:$0xff]
    %v713 = vld [vmem:[#allocation5 + $0x1290] sm:$0xff]
    %v714 = vld [vmem:[#allocation5 + $0x1298] sm:$0xff]
    %v715 = vld [vmem:[#allocation5 + $0x12a0] sm:$0xff]
    %v716 = vld [vmem:[#allocation5 + $0x12a8] sm:$0xff]
    %v717 = vld [vmem:[#allocation5 + $0x12b0] sm:$0xff]
    %v718 = vld [vmem:[#allocation5 + $0x12b8] sm:$0xff]
    %v719 = vld [vmem:[#allocation5 + $0x12c0] sm:$0xff]
    %v720 = vld [vmem:[#allocation5 + $0x12c8] sm:$0xff]
    %v721 = vld [vmem:[#allocation5 + $0x12d0] sm:$0xff]
    %v722 = vld [vmem:[#allocation5 + $0x12d8] sm:$0xff]
    %v723 = vld [vmem:[#allocation5 + $0x12e0] sm:$0xff]
    %v724 = vld [vmem:[#allocation5 + $0x12e8] sm:$0xff]
    %v725 = vld [vmem:[#allocation5 + $0x12f0] sm:$0xff]
    %v726 = vld [vmem:[#allocation5 + $0x12f8] sm:$0xff]
    %v727 = vld [vmem:[#allocation5 + $0x1300] sm:$0xff]
    %v728 = vld [vmem:[#allocation5 + $0x1308] sm:$0xff]
    %v729 = vld [vmem:[#allocation5 + $0x1310] sm:$0xff]
    %v730 = vld [vmem:[#allocation5 + $0x1318] sm:$0xff]
    %v731 = vld [vmem:[#allocation5 + $0x1320] sm:$0xff]
    %v732 = vld [vmem:[#allocation5 + $0x1328] sm:$0xff]
    %v733 = vld [vmem:[#allocation5 + $0x1330] sm:$0xff]
    %v734 = vld [vmem:[#allocation5 + $0x1338] sm:$0xff]
    %v735 = vld [vmem:[#allocation5 + $0x1340] sm:$0xff]
    %v736 = vld [vmem:[#allocation5 + $0x1348] sm:$0xff]
    %v737 = vld [vmem:[#allocation5 + $0x1350] sm:$0xff]
    %v738 = vld [vmem:[#allocation5 + $0x1358] sm:$0xff]
    %v739 = vld [vmem:[#allocation5 + $0x1360] sm:$0xff]
    %v740 = vld [vmem:[#allocation5 + $0x1368] sm:$0xff]
    %v741 = vld [vmem:[#allocation5 + $0x1370] sm:$0xff]
    %v742 = vld [vmem:[#allocation5 + $0x1378] sm:$0xff]
    %v743 = vld [vmem:[#allocation5 + $0x1380] sm:$0xff]
    %v744 = vld [vmem:[#allocation5 + $0x1388] sm:$0xff]
    %v745 = vld [vmem:[#allocation5 + $0x1390] sm:$0xff]
    %v746 = vld [vmem:[#allocation5 + $0x1398] sm:$0xff]
    %v747 = vld [vmem:[#allocation5 + $0x13a0] sm:$0xff]
    %v748 = vld [vmem:[#allocation5 + $0x13a8] sm:$0xff]
    %v749 = vld [vmem:[#allocation5 + $0x13b0] sm:$0xff]
    %v750 = vld [vmem:[#allocation5 + $0x13b8] sm:$0xff]
    %v751 = vld [vmem:[#allocation5 + $0x13c0] sm:$0xff]
    %v752 = vld [vmem:[#allocation5 + $0x13c8] sm:$0xff]
    %v753 = vld [vmem:[#allocation5 + $0x13d0] sm:$0xff]
    %v754 = vld [vmem:[#allocation5 + $0x13d8] sm:$0xff]
    %v755 = vld [vmem:[#allocation5 + $0x13e0] sm:$0xff]
    %v756 = vld [vmem:[#allocation5 + $0x13e8] sm:$0xff]
    %v757 = vld [vmem:[#allocation5 + $0x13f0] sm:$0xff]
    %v758 = vld [vmem:[#allocation5 + $0x13f8] sm:$0xff]
    %v759 = vld [vmem:[#allocation5 + $0x1400] sm:$0xff]
    %v760 = vld [vmem:[#allocation5 + $0x1408] sm:$0xff]
    %v761 = vld [vmem:[#allocation5 + $0x1410] sm:$0xff]
    %v762 = vld [vmem:[#allocation5 + $0x1418] sm:$0xff]
    %v763 = vld [vmem:[#allocation5 + $0x1420] sm:$0xff]
    %v764 = vld [vmem:[#allocation5 + $0x1428] sm:$0xff]
    %v765 = vld [vmem:[#allocation5 + $0x1430] sm:$0xff]
    %v766 = vld [vmem:[#allocation5 + $0x1438] sm:$0xff]
    %v767 = vld [vmem:[#allocation5 + $0x1440] sm:$0xff]
    %v768 = vld [vmem:[#allocation5 + $0x1448] sm:$0xff]
    %v769 = vld [vmem:[#allocation5 + $0x1450] sm:$0xff]
    %v770 = vld [vmem:[#allocation5 + $0x1458] sm:$0xff]
    %v771 = vld [vmem:[#allocation5 + $0x1460] sm:$0xff]
    %v772 = vld [vmem:[#allocation5 + $0x1468] sm:$0xff]
    %v773 = vld [vmem:[#allocation5 + $0x1470] sm:$0xff]
    %v774 = vld [vmem:[#allocation5 + $0x1478] sm:$0xff]
    %v775 = vld [vmem:[#allocation5 + $0x1480] sm:$0xff]
    %v776 = vld [vmem:[#allocation5 + $0x1488] sm:$0xff]
    %v777 = vld [vmem:[#allocation5 + $0x1490] sm:$0xff]
    %v778 = vld [vmem:[#allocation5 + $0x1498] sm:$0xff]
    %v779 = vld [vmem:[#allocation5 + $0x14a0] sm:$0xff]
    %v780 = vld [vmem:[#allocation5 + $0x14a8] sm:$0xff]
    %v781 = vld [vmem:[#allocation5 + $0x14b0] sm:$0xff]
    %v782 = vld [vmem:[#allocation5 + $0x14b8] sm:$0xff]
    %v783 = vld [vmem:[#allocation5 + $0x14c0] sm:$0xff]
    %v784 = vld [vmem:[#allocation5 + $0x14c8] sm:$0xff]
    %v785 = vld [vmem:[#allocation5 + $0x14d0] sm:$0xff]
    %v786 = vld [vmem:[#allocation5 + $0x14d8] sm:$0xff]
    %v787 = vld [vmem:[#allocation5 + $0x14e0] sm:$0xff]
    %v788 = vld [vmem:[#allocation5 + $0x14e8] sm:$0xff]
    %v789 = vld [vmem:[#allocation5 + $0x14f0] sm:$0xff]
    %v790 = vld [vmem:[#allocation5 + $0x14f8] sm:$0xff]
    %v791 = vld [vmem:[#allocation5 + $0x1500] sm:$0xff]
    %v792 = vld [vmem:[#allocation5 + $0x1508] sm:$0xff]
    %v793 = vld [vmem:[#allocation5 + $0x1510] sm:$0xff]
    %v794 = vld [vmem:[#allocation5 + $0x1518] sm:$0xff]
    %v795 = vld [vmem:[#allocation5 + $0x1520] sm:$0xff]
    %v796 = vld [vmem:[#allocation5 + $0x1528] sm:$0xff]
    %v797 = vld [vmem:[#allocation5 + $0x1530] sm:$0xff]
    %v798 = vld [vmem:[#allocation5 + $0x1538] sm:$0xff]
    %v799 = vld [vmem:[#allocation5 + $0x1540] sm:$0xff]
    %v800 = vld [vmem:[#allocation5 + $0x1548] sm:$0xff]
    %v801 = vld [vmem:[#allocation5 + $0x1550] sm:$0xff]
    %v802 = vld [vmem:[#allocation5 + $0x1558] sm:$0xff]
    %v803 = vld [vmem:[#allocation5 + $0x1560] sm:$0xff]
    %v804 = vld [vmem:[#allocation5 + $0x1568] sm:$0xff]
    %v805 = vld [vmem:[#allocation5 + $0x1570] sm:$0xff]
    %v806 = vld [vmem:[#allocation5 + $0x1578] sm:$0xff]
    %v807 = vld [vmem:[#allocation5 + $0x1580] sm:$0xff]
    %v808 = vld [vmem:[#allocation5 + $0x1588] sm:$0xff]
    %v809 = vld [vmem:[#allocation5 + $0x1590] sm:$0xff]
    %v810 = vld [vmem:[#allocation5 + $0x1598] sm:$0xff]
    %v811 = vld [vmem:[#allocation5 + $0x15a0] sm:$0xff]
    %v812 = vld [vmem:[#allocation5 + $0x15a8] sm:$0xff]
    %v813 = vld [vmem:[#allocation5 + $0x15b0] sm:$0xff]
    %v814 = vld [vmem:[#allocation5 + $0x15b8] sm:$0xff]
    %v815 = vld [vmem:[#allocation5 + $0x15c0] sm:$0xff]
    %v816 = vld [vmem:[#allocation5 + $0x15c8] sm:$0xff]
    %v817 = vld [vmem:[#allocation5 + $0x15d0] sm:$0xff]
    %v818 = vld [vmem:[#allocation5 + $0x15d8] sm:$0xff]
    %v819 = vld [vmem:[#allocation5 + $0x15e0] sm:$0xff]
    %v820 = vld [vmem:[#allocation5 + $0x15e8] sm:$0xff]
    %v821 = vld [vmem:[#allocation5 + $0x15f0] sm:$0xff]
    %v822 = vld [vmem:[#allocation5 + $0x15f8] sm:$0xff]
    %v823 = vld [vmem:[#allocation5 + $0x1600] sm:$0xff]
    %v824 = vld [vmem:[#allocation5 + $0x1608] sm:$0xff]
    %v825 = vld [vmem:[#allocation5 + $0x1610] sm:$0xff]
    %v826 = vld [vmem:[#allocation5 + $0x1618] sm:$0xff]
    %v827 = vld [vmem:[#allocation5 + $0x1620] sm:$0xff]
    %v828 = vld [vmem:[#allocation5 + $0x1628] sm:$0xff]
    %v829 = vld [vmem:[#allocation5 + $0x1630] sm:$0xff]
    %v830 = vld [vmem:[#allocation5 + $0x1638] sm:$0xff]
    %v831 = vld [vmem:[#allocation5 + $0x1640] sm:$0xff]
    %v832 = vld [vmem:[#allocation5 + $0x1648] sm:$0xff]
    %v833 = vld [vmem:[#allocation5 + $0x1650] sm:$0xff]
    %v834 = vld [vmem:[#allocation5 + $0x1658] sm:$0xff]
    %v835 = vld [vmem:[#allocation5 + $0x1660] sm:$0xff]
    %v836 = vld [vmem:[#allocation5 + $0x1668] sm:$0xff]
    %v837 = vld [vmem:[#allocation5 + $0x1670] sm:$0xff]
    %v838 = vld [vmem:[#allocation5 + $0x1678] sm:$0xff]
    %v839 = vld [vmem:[#allocation5 + $0x1680] sm:$0xff]
    %v840 = vld [vmem:[#allocation5 + $0x1688] sm:$0xff]
    %v841 = vld [vmem:[#allocation5 + $0x1690] sm:$0xff]
    %v842 = vld [vmem:[#allocation5 + $0x1698] sm:$0xff]
    %v843 = vld [vmem:[#allocation5 + $0x16a0] sm:$0xff]
    %v844 = vld [vmem:[#allocation5 + $0x16a8] sm:$0xff]
    %v845 = vld [vmem:[#allocation5 + $0x16b0] sm:$0xff]
    %v846 = vld [vmem:[#allocation5 + $0x16b8] sm:$0xff]
    %v847 = vld [vmem:[#allocation5 + $0x16c0] sm:$0xff]
    %v848 = vld [vmem:[#allocation5 + $0x16c8] sm:$0xff]
    %v849 = vld [vmem:[#allocation5 + $0x16d0] sm:$0xff]
    %v850 = vld [vmem:[#allocation5 + $0x16d8] sm:$0xff]
    %v851 = vld [vmem:[#allocation5 + $0x16e0] sm:$0xff]
    %v852 = vld [vmem:[#allocation5 + $0x16e8] sm:$0xff]
    %v853 = vld [vmem:[#allocation5 + $0x16f0] sm:$0xff]
    %v854 = vld [vmem:[#allocation5 + $0x16f8] sm:$0xff]
    %v855 = vld [vmem:[#allocation5 + $0x1700] sm:$0xff]
    %v856 = vld [vmem:[#allocation5 + $0x1708] sm:$0xff]
    %v857 = vld [vmem:[#allocation5 + $0x1710] sm:$0xff]
    %v858 = vld [vmem:[#allocation5 + $0x1718] sm:$0xff]
    %v859 = vld [vmem:[#allocation5 + $0x1720] sm:$0xff]
    %v860 = vld [vmem:[#allocation5 + $0x1728] sm:$0xff]
    %v861 = vld [vmem:[#allocation5 + $0x1730] sm:$0xff]
    %v862 = vld [vmem:[#allocation5 + $0x1738] sm:$0xff]
    %v863 = vld [vmem:[#allocation5 + $0x1740] sm:$0xff]
    %v864 = vld [vmem:[#allocation5 + $0x1748] sm:$0xff]
    %v865 = vld [vmem:[#allocation5 + $0x1750] sm:$0xff]
    %v866 = vld [vmem:[#allocation5 + $0x1758] sm:$0xff]
    %v867 = vld [vmem:[#allocation5 + $0x1760] sm:$0xff]
    %v868 = vld [vmem:[#allocation5 + $0x1768] sm:$0xff]
    %v869 = vld [vmem:[#allocation5 + $0x1770] sm:$0xff]
    %v870 = vld [vmem:[#allocation5 + $0x1778] sm:$0xff]
    %v871 = vld [vmem:[#allocation5 + $0x1780] sm:$0xff]
    %v872 = vld [vmem:[#allocation5 + $0x1788] sm:$0xff]
    %v873 = vld [vmem:[#allocation5 + $0x1790] sm:$0xff]
    %v874 = vld [vmem:[#allocation5 + $0x1798] sm:$0xff]
    %v875 = vld [vmem:[#allocation5 + $0x17a0] sm:$0xff]
    %v876 = vld [vmem:[#allocation5 + $0x17a8] sm:$0xff]
    %v877 = vld [vmem:[#allocation5 + $0x17b0] sm:$0xff]
    %v878 = vld [vmem:[#allocation5 + $0x17b8] sm:$0xff]
    %v879 = vld [vmem:[#allocation5 + $0x17c0] sm:$0xff]
    %v880 = vld [vmem:[#allocation5 + $0x17c8] sm:$0xff]
    %v881 = vld [vmem:[#allocation5 + $0x17d0] sm:$0xff]
    %v882 = vld [vmem:[#allocation5 + $0x17d8] sm:$0xff]
    %v883 = vld [vmem:[#allocation5 + $0x17e0] sm:$0xff]
    %v884 = vld [vmem:[#allocation5 + $0x17e8] sm:$0xff]
    %v885 = vld [vmem:[#allocation5 + $0x17f0] sm:$0xff]
    %v886 = vld [vmem:[#allocation5 + $0x17f8] sm:$0xff]
    %v887 = vld [vmem:[#allocation5 + $0x1800] sm:$0xff]
    %v888 = vld [vmem:[#allocation5 + $0x1808] sm:$0xff]
    %v889 = vld [vmem:[#allocation5 + $0x1810] sm:$0xff]
    %v890 = vld [vmem:[#allocation5 + $0x1818] sm:$0xff]
    %v891 = vld [vmem:[#allocation5 + $0x1820] sm:$0xff]
    %v892 = vld [vmem:[#allocation5 + $0x1828] sm:$0xff]
    %v893 = vld [vmem:[#allocation5 + $0x1830] sm:$0xff]
    %v894 = vld [vmem:[#allocation5 + $0x1838] sm:$0xff]
    %v895 = vld [vmem:[#allocation5 + $0x1840] sm:$0xff]
    %v896 = vld [vmem:[#allocation5 + $0x1848] sm:$0xff]
    %v897 = vld [vmem:[#allocation5 + $0x1850] sm:$0xff]
    %v898 = vld [vmem:[#allocation5 + $0x1858] sm:$0xff]
    %v899 = vld [vmem:[#allocation5 + $0x1860] sm:$0xff]
    %v900 = vld [vmem:[#allocation5 + $0x1868] sm:$0xff]
    %v901 = vld [vmem:[#allocation5 + $0x1870] sm:$0xff]
    %v902 = vld [vmem:[#allocation5 + $0x1878] sm:$0xff]
    %v903 = vld [vmem:[#allocation5 + $0x1880] sm:$0xff]
    %v904 = vld [vmem:[#allocation5 + $0x1888] sm:$0xff]
    %v905 = vld [vmem:[#allocation5 + $0x1890] sm:$0xff]
    %v906 = vld [vmem:[#allocation5 + $0x1898] sm:$0xff]
    %v907 = vld [vmem:[#allocation5 + $0x18a0] sm:$0xff]
    %v908 = vld [vmem:[#allocation5 + $0x18a8] sm:$0xff]
    %v909 = vld [vmem:[#allocation5 + $0x18b0] sm:$0xff]
    %v910 = vld [vmem:[#allocation5 + $0x18b8] sm:$0xff]
    %v911 = vld [vmem:[#allocation5 + $0x18c0] sm:$0xff]
    %v912 = vld [vmem:[#allocation5 + $0x18c8] sm:$0xff]
    %v913 = vld [vmem:[#allocation5 + $0x18d0] sm:$0xff]
    %v914 = vld [vmem:[#allocation5 + $0x18d8] sm:$0xff]
    %v915 = vld [vmem:[#allocation5 + $0x18e0] sm:$0xff]
    %v916 = vld [vmem:[#allocation5 + $0x18e8] sm:$0xff]
    %v917 = vld [vmem:[#allocation5 + $0x18f0] sm:$0xff]
    %v918 = vld [vmem:[#allocation5 + $0x18f8] sm:$0xff]
    %v919 = vld [vmem:[#allocation5 + $0x1900] sm:$0xff]
    %v920 = vld [vmem:[#allocation5 + $0x1908] sm:$0xff]
    %v921 = vld [vmem:[#allocation5 + $0x1910] sm:$0xff]
    %v922 = vld [vmem:[#allocation5 + $0x1918] sm:$0xff]
    %v923 = vld [vmem:[#allocation5 + $0x1920] sm:$0xff]
    %v924 = vld [vmem:[#allocation5 + $0x1928] sm:$0xff]
    %v925 = vld [vmem:[#allocation5 + $0x1930] sm:$0xff]
    %v926 = vld [vmem:[#allocation5 + $0x1938] sm:$0xff]
    %v927 = vld [vmem:[#allocation5 + $0x1940] sm:$0xff]
    %v928 = vld [vmem:[#allocation5 + $0x1948] sm:$0xff]
    %v929 = vld [vmem:[#allocation5 + $0x1950] sm:$0xff]
    %v930 = vld [vmem:[#allocation5 + $0x1958] sm:$0xff]
    %v931 = vld [vmem:[#allocation5 + $0x1960] sm:$0xff]
    %v932 = vld [vmem:[#allocation5 + $0x1968] sm:$0xff]
    %v933 = vld [vmem:[#allocation5 + $0x1970] sm:$0xff]
    %v934 = vld [vmem:[#allocation5 + $0x1978] sm:$0xff]
    %v935 = vld [vmem:[#allocation5 + $0x1980] sm:$0xff]
    %v936 = vld [vmem:[#allocation5 + $0x1988] sm:$0xff]
    %v937 = vld [vmem:[#allocation5 + $0x1990] sm:$0xff]
    %v938 = vld [vmem:[#allocation5 + $0x1998] sm:$0xff]
    %v939 = vld [vmem:[#allocation5 + $0x19a0] sm:$0xff]
    %v940 = vld [vmem:[#allocation5 + $0x19a8] sm:$0xff]
    %v941 = vld [vmem:[#allocation5 + $0x19b0] sm:$0xff]
    %v942 = vld [vmem:[#allocation5 + $0x19b8] sm:$0xff]
    %v943 = vld [vmem:[#allocation5 + $0x19c0] sm:$0xff]
    %v944 = vld [vmem:[#allocation5 + $0x19c8] sm:$0xff]
    %v945 = vld [vmem:[#allocation5 + $0x19d0] sm:$0xff]
    %v946 = vld [vmem:[#allocation5 + $0x19d8] sm:$0xff]
    %v947 = vld [vmem:[#allocation5 + $0x19e0] sm:$0xff]
    %v948 = vld [vmem:[#allocation5 + $0x19e8] sm:$0xff]
    %v949 = vld [vmem:[#allocation5 + $0x19f0] sm:$0xff]
    %v950 = vld [vmem:[#allocation5 + $0x19f8] sm:$0xff]
    %v951 = vld [vmem:[#allocation5 + $0x1a00] sm:$0xff]
    %v952 = vld [vmem:[#allocation5 + $0x1a08] sm:$0xff]
    %v953 = vld [vmem:[#allocation5 + $0x1a10] sm:$0xff]
    %v954 = vld [vmem:[#allocation5 + $0x1a18] sm:$0xff]
    %v955 = vld [vmem:[#allocation5 + $0x1a20] sm:$0xff]
    %v956 = vld [vmem:[#allocation5 + $0x1a28] sm:$0xff]
    %v957 = vld [vmem:[#allocation5 + $0x1a30] sm:$0xff]
    %v958 = vld [vmem:[#allocation5 + $0x1a38] sm:$0xff]
    %v959 = vld [vmem:[#allocation5 + $0x1a40] sm:$0xff]
    %v960 = vld [vmem:[#allocation5 + $0x1a48] sm:$0xff]
    %v961 = vld [vmem:[#allocation5 + $0x1a50] sm:$0xff]
    %v962 = vld [vmem:[#allocation5 + $0x1a58] sm:$0xff]
    %v963 = vld [vmem:[#allocation5 + $0x1a60] sm:$0xff]
    %v964 = vld [vmem:[#allocation5 + $0x1a68] sm:$0xff]
    %v965 = vld [vmem:[#allocation5 + $0x1a70] sm:$0xff]
    %v966 = vld [vmem:[#allocation5 + $0x1a78] sm:$0xff]
    %v967 = vld [vmem:[#allocation5 + $0x1a80] sm:$0xff]
    %v968 = vld [vmem:[#allocation5 + $0x1a88] sm:$0xff]
    %v969 = vld [vmem:[#allocation5 + $0x1a90] sm:$0xff]
    %v970 = vld [vmem:[#allocation5 + $0x1a98] sm:$0xff]
    %v971 = vld [vmem:[#allocation5 + $0x1aa0] sm:$0xff]
    %v972 = vld [vmem:[#allocation5 + $0x1aa8] sm:$0xff]
    %v973 = vld [vmem:[#allocation5 + $0x1ab0] sm:$0xff]
    %v974 = vld [vmem:[#allocation5 + $0x1ab8] sm:$0xff]
    %v975 = vld [vmem:[#allocation5 + $0x1ac0] sm:$0xff]
    %v976 = vld [vmem:[#allocation5 + $0x1ac8] sm:$0xff]
    %v977 = vld [vmem:[#allocation5 + $0x1ad0] sm:$0xff]
    %v978 = vld [vmem:[#allocation5 + $0x1ad8] sm:$0xff]
    %v979 = vld [vmem:[#allocation5 + $0x1ae0] sm:$0xff]
    %v980 = vld [vmem:[#allocation5 + $0x1ae8] sm:$0xff]
    %v981 = vld [vmem:[#allocation5 + $0x1af0] sm:$0xff]
    %v982 = vld [vmem:[#allocation5 + $0x1af8] sm:$0xff]
    %v983 = vld [vmem:[#allocation5 + $0x1b00] sm:$0xff]
    %v984 = vld [vmem:[#allocation5 + $0x1b08] sm:$0xff]
    %v985 = vld [vmem:[#allocation5 + $0x1b10] sm:$0xff]
    %v986 = vld [vmem:[#allocation5 + $0x1b18] sm:$0xff]
    %v987 = vld [vmem:[#allocation5 + $0x1b20] sm:$0xff]
    %v988 = vld [vmem:[#allocation5 + $0x1b28] sm:$0xff]
    %v989 = vld [vmem:[#allocation5 + $0x1b30] sm:$0xff]
    %v990 = vld [vmem:[#allocation5 + $0x1b38] sm:$0xff]
    %v991 = vld [vmem:[#allocation5 + $0x1b40] sm:$0xff]
    %v992 = vld [vmem:[#allocation5 + $0x1b48] sm:$0xff]
    %v993 = vld [vmem:[#allocation5 + $0x1b50] sm:$0xff]
    %v994 = vld [vmem:[#allocation5 + $0x1b58] sm:$0xff]
    %v995 = vld [vmem:[#allocation5 + $0x1b60] sm:$0xff]
    %v996 = vld [vmem:[#allocation5 + $0x1b68] sm:$0xff]
    %v997 = vld [vmem:[#allocation5 + $0x1b70] sm:$0xff]
    %v998 = vld [vmem:[#allocation5 + $0x1b78] sm:$0xff]
    %v999 = vld [vmem:[#allocation5 + $0x1b80] sm:$0xff]
    %v1000 = vld [vmem:[#allocation5 + $0x1b88] sm:$0xff]
    %v1001 = vld [vmem:[#allocation5 + $0x1b90] sm:$0xff]
    %v1002 = vld [vmem:[#allocation5 + $0x1b98] sm:$0xff]
    %v1003 = vld [vmem:[#allocation5 + $0x1ba0] sm:$0xff]
    %v1004 = vld [vmem:[#allocation5 + $0x1ba8] sm:$0xff]
    %v1005 = vld [vmem:[#allocation5 + $0x1bb0] sm:$0xff]
    %v1006 = vld [vmem:[#allocation5 + $0x1bb8] sm:$0xff]
    %v1007 = vld [vmem:[#allocation5 + $0x1bc0] sm:$0xff]
    %v1008 = vld [vmem:[#allocation5 + $0x1bc8] sm:$0xff]
    %v1009 = vld [vmem:[#allocation5 + $0x1bd0] sm:$0xff]
    %v1010 = vld [vmem:[#allocation5 + $0x1bd8] sm:$0xff]
    %v1011 = vld [vmem:[#allocation5 + $0x1be0] sm:$0xff]
    %v1012 = vld [vmem:[#allocation5 + $0x1be8] sm:$0xff]
    %v1013 = vld [vmem:[#allocation5 + $0x1bf0] sm:$0xff]
    %v1014 = vld [vmem:[#allocation5 + $0x1bf8] sm:$0xff]
    %v1015 = vld [vmem:[#allocation5 + $0x1c00] sm:$0xff]
    %v1016 = vld [vmem:[#allocation5 + $0x1c08] sm:$0xff]
    %v1017 = vld [vmem:[#allocation5 + $0x1c10] sm:$0xff]
    %v1018 = vld [vmem:[#allocation5 + $0x1c18] sm:$0xff]
    %v1019 = vld [vmem:[#allocation5 + $0x1c20] sm:$0xff]
    %v1020 = vld [vmem:[#allocation5 + $0x1c28] sm:$0xff]
    %v1021 = vld [vmem:[#allocation5 + $0x1c30] sm:$0xff]
    %v1022 = vld [vmem:[#allocation5 + $0x1c38] sm:$0xff]
    %v1023 = vld [vmem:[#allocation5 + $0x1c40] sm:$0xff]
    %v1024 = vld [vmem:[#allocation5 + $0x1c48] sm:$0xff]
    %v1025 = vld [vmem:[#allocation5 + $0x1c50] sm:$0xff]
    %v1026 = vld [vmem:[#allocation5 + $0x1c58] sm:$0xff]
    %v1027 = vld [vmem:[#allocation5 + $0x1c60] sm:$0xff]
    %v1028 = vld [vmem:[#allocation5 + $0x1c68] sm:$0xff]
    %v1029 = vld [vmem:[#allocation5 + $0x1c70] sm:$0xff]
    %v1030 = vld [vmem:[#allocation5 + $0x1c78] sm:$0xff]
    %v1031 = vld [vmem:[#allocation5 + $0x1c80] sm:$0xff]
    %v1032 = vld [vmem:[#allocation5 + $0x1c88] sm:$0xff]
    %v1033 = vld [vmem:[#allocation5 + $0x1c90] sm:$0xff]
    %v1034 = vld [vmem:[#allocation5 + $0x1c98] sm:$0xff]
    %v1035 = vld [vmem:[#allocation5 + $0x1ca0] sm:$0xff]
    %v1036 = vld [vmem:[#allocation5 + $0x1ca8] sm:$0xff]
    %v1037 = vld [vmem:[#allocation5 + $0x1cb0] sm:$0xff]
    %v1038 = vld [vmem:[#allocation5 + $0x1cb8] sm:$0xff]
    %v1039 = vld [vmem:[#allocation5 + $0x1cc0] sm:$0xff]
    %v1040 = vld [vmem:[#allocation5 + $0x1cc8] sm:$0xff]
    %v1041 = vld [vmem:[#allocation5 + $0x1cd0] sm:$0xff]
    %v1042 = vld [vmem:[#allocation5 + $0x1cd8] sm:$0xff]
    %v1043 = vld [vmem:[#allocation5 + $0x1ce0] sm:$0xff]
    %v1044 = vld [vmem:[#allocation5 + $0x1ce8] sm:$0xff]
    %v1045 = vld [vmem:[#allocation5 + $0x1cf0] sm:$0xff]
    %v1046 = vld [vmem:[#allocation5 + $0x1cf8] sm:$0xff]
    %v1047 = vld [vmem:[#allocation5 + $0x1d00] sm:$0xff]
    %v1048 = vld [vmem:[#allocation5 + $0x1d08] sm:$0xff]
    %v1049 = vld [vmem:[#allocation5 + $0x1d10] sm:$0xff]
    %v1050 = vld [vmem:[#allocation5 + $0x1d18] sm:$0xff]
    %v1051 = vld [vmem:[#allocation5 + $0x1d20] sm:$0xff]
    %v1052 = vld [vmem:[#allocation5 + $0x1d28] sm:$0xff]
    %v1053 = vld [vmem:[#allocation5 + $0x1d30] sm:$0xff]
    %v1054 = vld [vmem:[#allocation5 + $0x1d38] sm:$0xff]
    %v1055 = vld [vmem:[#allocation5 + $0x1d40] sm:$0xff]
    %v1056 = vld [vmem:[#allocation5 + $0x1d48] sm:$0xff]
    %v1057 = vld [vmem:[#allocation5 + $0x1d50] sm:$0xff]
    %v1058 = vld [vmem:[#allocation5 + $0x1d58] sm:$0xff]
    %v1059 = vld [vmem:[#allocation5 + $0x1d60] sm:$0xff]
    %v1060 = vld [vmem:[#allocation5 + $0x1d68] sm:$0xff]
    %v1061 = vld [vmem:[#allocation5 + $0x1d70] sm:$0xff]
    %v1062 = vld [vmem:[#allocation5 + $0x1d78] sm:$0xff]
    %v1063 = vld [vmem:[#allocation5 + $0x1d80] sm:$0xff]
    %v1064 = vld [vmem:[#allocation5 + $0x1d88] sm:$0xff]
    %v1065 = vld [vmem:[#allocation5 + $0x1d90] sm:$0xff]
    %v1066 = vld [vmem:[#allocation5 + $0x1d98] sm:$0xff]
    %v1067 = vld [vmem:[#allocation5 + $0x1da0] sm:$0xff]
    %v1068 = vld [vmem:[#allocation5 + $0x1da8] sm:$0xff]
    %v1069 = vld [vmem:[#allocation5 + $0x1db0] sm:$0xff]
    %v1070 = vld [vmem:[#allocation5 + $0x1db8] sm:$0xff]
    %v1071 = vld [vmem:[#allocation5 + $0x1dc0] sm:$0xff]
    %v1072 = vld [vmem:[#allocation5 + $0x1dc8] sm:$0xff]
    %v1073 = vld [vmem:[#allocation5 + $0x1dd0] sm:$0xff]
    %v1074 = vld [vmem:[#allocation5 + $0x1dd8] sm:$0xff]
    %v1075 = vld [vmem:[#allocation5 + $0x1de0] sm:$0xff]
    %v1076 = vld [vmem:[#allocation5 + $0x1de8] sm:$0xff]
    %v1077 = vld [vmem:[#allocation5 + $0x1df0] sm:$0xff]
    %v1078 = vld [vmem:[#allocation5 + $0x1df8] sm:$0xff]
    %v1079 = vld [vmem:[#allocation5 + $0x1e00] sm:$0xff]
    %v1080 = vld [vmem:[#allocation5 + $0x1e08] sm:$0xff]
    %v1081 = vld [vmem:[#allocation5 + $0x1e10] sm:$0xff]
    %v1082 = vld [vmem:[#allocation5 + $0x1e18] sm:$0xff]
    %v1083 = vld [vmem:[#allocation5 + $0x1e20] sm:$0xff]
    %v1084 = vld [vmem:[#allocation5 + $0x1e28] sm:$0xff]
    %v1085 = vld [vmem:[#allocation5 + $0x1e30] sm:$0xff]
    %v1086 = vld [vmem:[#allocation5 + $0x1e38] sm:$0xff]
    %v1087 = vld [vmem:[#allocation5 + $0x1e40] sm:$0xff]
    %v1088 = vld [vmem:[#allocation5 + $0x1e48] sm:$0xff]
    %v1089 = vld [vmem:[#allocation5 + $0x1e50] sm:$0xff]
    %v1090 = vld [vmem:[#allocation5 + $0x1e58] sm:$0xff]
    %v1091 = vld [vmem:[#allocation5 + $0x1e60] sm:$0xff]
    %v1092 = vld [vmem:[#allocation5 + $0x1e68] sm:$0xff]
    %v1093 = vld [vmem:[#allocation5 + $0x1e70] sm:$0xff]
    %v1094 = vld [vmem:[#allocation5 + $0x1e78] sm:$0xff]
    %v1095 = vld [vmem:[#allocation5 + $0x1e80] sm:$0xff]
    %v1096 = vld [vmem:[#allocation5 + $0x1e88] sm:$0xff]
    %v1097 = vld [vmem:[#allocation5 + $0x1e90] sm:$0xff]
    %v1098 = vld [vmem:[#allocation5 + $0x1e98] sm:$0xff]
    %v1099 = vld [vmem:[#allocation5 + $0x1ea0] sm:$0xff]
    %v1100 = vld [vmem:[#allocation5 + $0x1ea8] sm:$0xff]
    %v1101 = vld [vmem:[#allocation5 + $0x1eb0] sm:$0xff]
    %v1102 = vld [vmem:[#allocation5 + $0x1eb8] sm:$0xff]
    %v1103 = vld [vmem:[#allocation5 + $0x1ec0] sm:$0xff]
    %v1104 = vld [vmem:[#allocation5 + $0x1ec8] sm:$0xff]
    %v1105 = vld [vmem:[#allocation5 + $0x1ed0] sm:$0xff]
    %v1106 = vld [vmem:[#allocation5 + $0x1ed8] sm:$0xff]
    %v1107 = vld [vmem:[#allocation5 + $0x1ee0] sm:$0xff]
    %v1108 = vld [vmem:[#allocation5 + $0x1ee8] sm:$0xff]
    %v1109 = vld [vmem:[#allocation5 + $0x1ef0] sm:$0xff]
    %v1110 = vld [vmem:[#allocation5 + $0x1ef8] sm:$0xff]
    %v1111 = vld [vmem:[#allocation5 + $0x1f00] sm:$0xff]
    %v1112 = vld [vmem:[#allocation5 + $0x1f08] sm:$0xff]
    %v1113 = vld [vmem:[#allocation5 + $0x1f10] sm:$0xff]
    %v1114 = vld [vmem:[#allocation5 + $0x1f18] sm:$0xff]
    %v1115 = vld [vmem:[#allocation5 + $0x1f20] sm:$0xff]
    %v1116 = vld [vmem:[#allocation5 + $0x1f28] sm:$0xff]
    %v1117 = vld [vmem:[#allocation5 + $0x1f30] sm:$0xff]
    %v1118 = vld [vmem:[#allocation5 + $0x1f38] sm:$0xff]
    %v1119 = vld [vmem:[#allocation5 + $0x1f40] sm:$0xff]
    %v1120 = vld [vmem:[#allocation5 + $0x1f48] sm:$0xff]
    %v1121 = vld [vmem:[#allocation5 + $0x1f50] sm:$0xff]
    %v1122 = vld [vmem:[#allocation5 + $0x1f58] sm:$0xff]
    %v1123 = vld [vmem:[#allocation5 + $0x1f60] sm:$0xff]
    %v1124 = vld [vmem:[#allocation5 + $0x1f68] sm:$0xff]
    %v1125 = vld [vmem:[#allocation5 + $0x1f70] sm:$0xff]
    %v1126 = vld [vmem:[#allocation5 + $0x1f78] sm:$0xff]
    %v1127 = vld [vmem:[#allocation5 + $0x1f80] sm:$0xff]
    %v1128 = vld [vmem:[#allocation5 + $0x1f88] sm:$0xff]
    %v1129 = vld [vmem:[#allocation5 + $0x1f90] sm:$0xff]
    %v1130 = vld [vmem:[#allocation5 + $0x1f98] sm:$0xff]
    %v1131 = vld [vmem:[#allocation5 + $0x1fa0] sm:$0xff]
    %v1132 = vld [vmem:[#allocation5 + $0x1fa8] sm:$0xff]
    %v1133 = vld [vmem:[#allocation5 + $0x1fb0] sm:$0xff]
    %v1134 = vld [vmem:[#allocation5 + $0x1fb8] sm:$0xff]
    %v1135 = vld [vmem:[#allocation5 + $0x1fc0] sm:$0xff]
    %v1136 = vld [vmem:[#allocation5 + $0x1fc8] sm:$0xff]
    %v1137 = vld [vmem:[#allocation5 + $0x1fd0] sm:$0xff]
    %v1138 = vld [vmem:[#allocation5 + $0x1fd8] sm:$0xff]
    %v1139 = vld [vmem:[#allocation5 + $0x1fe0] sm:$0xff]
    %v1140 = vld [vmem:[#allocation5 + $0x1fe8] sm:$0xff]
    %v1141 = vld [vmem:[#allocation5 + $0x1ff0] sm:$0xff]
    %v1142 = vld [vmem:[#allocation5 + $0x1ff8] sm:$0xff]
    %v1143 = vld [vmem:[#allocation7] sm:$0x3]
    %v1145 = vlaneseq
    %v1146 = vshrl.u32 %v1145, 7
    %v1147 = vsub.s32 0, %v1146
    %v1148 = vrot.slane %v1143, %v1147
    %v1149 = vlaneseq
    %v1150 = vshrl.u32 %v1149, 7
    %v1151 = vsub.s32 1, %v1150
    %v1152 = vrot.slane %v1143, %v1151
    %v1187 = vunpack.c.l.b16 %v87
    %v1188 = vunpack.c.h.b16 %v87
    %v1189 = vunpack.c.l.b16 %v88
    %v1190 = vunpack.c.h.b16 %v88
    %v1191 = vunpack.c.l.b16 %v89
    %v1192 = vunpack.c.h.b16 %v89
    %v1193 = vunpack.c.l.b16 %v90
    %v1194 = vunpack.c.h.b16 %v90
    %v1195 = vunpack.c.l.b16 %v91
    %v1196 = vunpack.c.h.b16 %v91
    %v1197 = vunpack.c.l.b16 %v92
    %v1198 = vunpack.c.h.b16 %v92
    %v1199 = vunpack.c.l.b16 %v93
    %v1200 = vunpack.c.h.b16 %v93
    %v1201 = vunpack.c.l.b16 %v94
    %v1202 = vunpack.c.h.b16 %v94
    %v1203 = vunpack.c.l.b16 %v95
    %v1204 = vunpack.c.h.b16 %v95
    %v1205 = vunpack.c.l.b16 %v96
    %v1206 = vunpack.c.h.b16 %v96
    %v1207 = vunpack.c.l.b16 %v97
    %v1208 = vunpack.c.h.b16 %v97
    %v1209 = vunpack.c.l.b16 %v98
    %v1210 = vunpack.c.h.b16 %v98
    %v1211 = vunpack.c.l.b16 %v99
    %v1212 = vunpack.c.h.b16 %v99
    %v1213 = vunpack.c.l.b16 %v100
    %v1214 = vunpack.c.h.b16 %v100
    %v1215 = vunpack.c.l.b16 %v101
    %v1216 = vunpack.c.h.b16 %v101
    %v1217 = vunpack.c.l.b16 %v102
    %v1218 = vunpack.c.h.b16 %v102
    %v1219 = vunpack.c.l.b16 %v103
    %v1220 = vunpack.c.h.b16 %v103
    %v1221 = vunpack.c.l.b16 %v104
    %v1222 = vunpack.c.h.b16 %v104
    %v1223 = vunpack.c.l.b16 %v105
    %v1224 = vunpack.c.h.b16 %v105
    %v1225 = vunpack.c.l.b16 %v106
    %v1226 = vunpack.c.h.b16 %v106
    %v1227 = vunpack.c.l.b16 %v107
    %v1228 = vunpack.c.h.b16 %v107
    %v1229 = vunpack.c.l.b16 %v108
    %v1230 = vunpack.c.h.b16 %v108
    %v1231 = vunpack.c.l.b16 %v109
    %v1232 = vunpack.c.h.b16 %v109
    %v1233 = vunpack.c.l.b16 %v110
    %v1234 = vunpack.c.h.b16 %v110
    %v1235 = vunpack.c.l.b16 %v111
    %v1236 = vunpack.c.h.b16 %v111
    %v1237 = vunpack.c.l.b16 %v112
    %v1238 = vunpack.c.h.b16 %v112
    %v1239 = vunpack.c.l.b16 %v113
    %v1240 = vunpack.c.h.b16 %v113
    %v1241 = vunpack.c.l.b16 %v114
    %v1242 = vunpack.c.h.b16 %v114
    %v1243 = vunpack.c.l.b16 %v115
    %v1244 = vunpack.c.h.b16 %v115
    %v1245 = vunpack.c.l.b16 %v116
    %v1246 = vunpack.c.h.b16 %v116
    %v1247 = vunpack.c.l.b16 %v117
    %v1248 = vunpack.c.h.b16 %v117
    %v1249 = vunpack.c.l.b16 %v118
    %v1250 = vunpack.c.h.b16 %v118
    %v1251 = vpack.c.b16 %v1187, %v1187
    %v1252 = vpack.c.b16 %v1188, %v1188
    %v1253 = vpack.c.b16 %v1189, %v1189
    %v1254 = vpack.c.b16 %v1190, %v1190
    %v1255 = vpack.c.b16 %v1191, %v1191
    %v1256 = vpack.c.b16 %v1192, %v1192
    %v1257 = vpack.c.b16 %v1193, %v1193
    %v1258 = vpack.c.b16 %v1194, %v1194
    %v1259 = vpack.c.b16 %v1195, %v1195
    %v1260 = vpack.c.b16 %v1196, %v1196
    %v1261 = vpack.c.b16 %v1197, %v1197
    %v1262 = vpack.c.b16 %v1198, %v1198
    %v1263 = vpack.c.b16 %v1199, %v1199
    %v1264 = vpack.c.b16 %v1200, %v1200
    %v1265 = vpack.c.b16 %v1201, %v1201
    %v1266 = vpack.c.b16 %v1202, %v1202
    %v1267 = vpack.c.b16 %v1203, %v1203
    %v1268 = vpack.c.b16 %v1204, %v1204
    %v1269 = vpack.c.b16 %v1205, %v1205
    %v1270 = vpack.c.b16 %v1206, %v1206
    %v1271 = vpack.c.b16 %v1207, %v1207
    %v1272 = vpack.c.b16 %v1208, %v1208
    %v1273 = vpack.c.b16 %v1209, %v1209
    %v1274 = vpack.c.b16 %v1210, %v1210
    %v1275 = vpack.c.b16 %v1211, %v1211
    %v1276 = vpack.c.b16 %v1212, %v1212
    %v1277 = vpack.c.b16 %v1213, %v1213
    %v1278 = vpack.c.b16 %v1214, %v1214
    %v1279 = vpack.c.b16 %v1215, %v1215
    %v1280 = vpack.c.b16 %v1216, %v1216
    %v1281 = vpack.c.b16 %v1217, %v1217
    %v1282 = vpack.c.b16 %v1218, %v1218
    %v1283 = vpack.c.b16 %v1219, %v1219
    %v1284 = vpack.c.b16 %v1220, %v1220
    %v1285 = vpack.c.b16 %v1221, %v1221
    %v1286 = vpack.c.b16 %v1222, %v1222
    %v1287 = vpack.c.b16 %v1223, %v1223
    %v1288 = vpack.c.b16 %v1224, %v1224
    %v1289 = vpack.c.b16 %v1225, %v1225
    %v1290 = vpack.c.b16 %v1226, %v1226
    %v1291 = vpack.c.b16 %v1227, %v1227
    %v1292 = vpack.c.b16 %v1228, %v1228
    %v1293 = vpack.c.b16 %v1229, %v1229
    %v1294 = vpack.c.b16 %v1230, %v1230
    %v1295 = vpack.c.b16 %v1231, %v1231
    %v1296 = vpack.c.b16 %v1232, %v1232
    %v1297 = vpack.c.b16 %v1233, %v1233
    %v1298 = vpack.c.b16 %v1234, %v1234
    %v1299 = vpack.c.b16 %v1235, %v1235
    %v1300 = vpack.c.b16 %v1236, %v1236
    %v1301 = vpack.c.b16 %v1237, %v1237
    %v1302 = vpack.c.b16 %v1238, %v1238
    %v1303 = vpack.c.b16 %v1239, %v1239
    %v1304 = vpack.c.b16 %v1240, %v1240
    %v1305 = vpack.c.b16 %v1241, %v1241
    %v1306 = vpack.c.b16 %v1242, %v1242
    %v1307 = vpack.c.b16 %v1243, %v1243
    %v1308 = vpack.c.b16 %v1244, %v1244
    %v1309 = vpack.c.b16 %v1245, %v1245
    %v1310 = vpack.c.b16 %v1246, %v1246
    %v1311 = vpack.c.b16 %v1247, %v1247
    %v1312 = vpack.c.b16 %v1248, %v1248
    %v1313 = vpack.c.b16 %v1249, %v1249
    %v1314 = vpack.c.b16 %v1250, %v1250
    %v2403 = vunpack.c.l.b16 %v119
    %v2404 = vunpack.c.h.b16 %v119
    %v2405 = vunpack.c.l.b16 %v120
    %v2406 = vunpack.c.h.b16 %v120
    %v2407 = vunpack.c.l.b16 %v121
    %v2408 = vunpack.c.h.b16 %v121
    %v2409 = vunpack.c.l.b16 %v122
    %v2410 = vunpack.c.h.b16 %v122
    %v2411 = vunpack.c.l.b16 %v123
    %v2412 = vunpack.c.h.b16 %v123
    %v2413 = vunpack.c.l.b16 %v124
    %v2414 = vunpack.c.h.b16 %v124
    %v2415 = vunpack.c.l.b16 %v125
    %v2416 = vunpack.c.h.b16 %v125
    %v2417 = vunpack.c.l.b16 %v126
    %v2418 = vunpack.c.h.b16 %v126
    %v2419 = vunpack.c.l.b16 %v127
    %v2420 = vunpack.c.h.b16 %v127
    %v2421 = vunpack.c.l.b16 %v128
    %v2422 = vunpack.c.h.b16 %v128
    %v2423 = vunpack.c.l.b16 %v129
    %v2424 = vunpack.c.h.b16 %v129
    %v2425 = vunpack.c.l.b16 %v130
    %v2426 = vunpack.c.h.b16 %v130
    %v2427 = vunpack.c.l.b16 %v131
    %v2428 = vunpack.c.h.b16 %v131
    %v2429 = vunpack.c.l.b16 %v132
    %v2430 = vunpack.c.h.b16 %v132
    %v2431 = vunpack.c.l.b16 %v133
    %v2432 = vunpack.c.h.b16 %v133
    %v2433 = vunpack.c.l.b16 %v134
    %v2434 = vunpack.c.h.b16 %v134
    %v2435 = vunpack.c.l.b16 %v135
    %v2436 = vunpack.c.h.b16 %v135
    %v2437 = vunpack.c.l.b16 %v136
    %v2438 = vunpack.c.h.b16 %v136
    %v2439 = vunpack.c.l.b16 %v137
    %v2440 = vunpack.c.h.b16 %v137
    %v2441 = vunpack.c.l.b16 %v138
    %v2442 = vunpack.c.h.b16 %v138
    %v2443 = vunpack.c.l.b16 %v139
    %v2444 = vunpack.c.h.b16 %v139
    %v2445 = vunpack.c.l.b16 %v140
    %v2446 = vunpack.c.h.b16 %v140
    %v2447 = vunpack.c.l.b16 %v141
    %v2448 = vunpack.c.h.b16 %v141
    %v2449 = vunpack.c.l.b16 %v142
    %v2450 = vunpack.c.h.b16 %v142
    %v2451 = vunpack.c.l.b16 %v143
    %v2452 = vunpack.c.h.b16 %v143
    %v2453 = vunpack.c.l.b16 %v144
    %v2454 = vunpack.c.h.b16 %v144
    %v2455 = vunpack.c.l.b16 %v145
    %v2456 = vunpack.c.h.b16 %v145
    %v2457 = vunpack.c.l.b16 %v146
    %v2458 = vunpack.c.h.b16 %v146
    %v2459 = vunpack.c.l.b16 %v147
    %v2460 = vunpack.c.h.b16 %v147
    %v2461 = vunpack.c.l.b16 %v148
    %v2462 = vunpack.c.h.b16 %v148
    %v2463 = vunpack.c.l.b16 %v149
    %v2464 = vunpack.c.h.b16 %v149
    %v2465 = vunpack.c.l.b16 %v150
    %v2466 = vunpack.c.h.b16 %v150
    %v2467 = vunpack.c.l.b16 %v151
    %v2468 = vunpack.c.h.b16 %v151
    %v2469 = vunpack.c.l.b16 %v152
    %v2470 = vunpack.c.h.b16 %v152
    %v2471 = vunpack.c.l.b16 %v153
    %v2472 = vunpack.c.h.b16 %v153
    %v2473 = vunpack.c.l.b16 %v154
    %v2474 = vunpack.c.h.b16 %v154
    %v2475 = vunpack.c.l.b16 %v155
    %v2476 = vunpack.c.h.b16 %v155
    %v2477 = vunpack.c.l.b16 %v156
    %v2478 = vunpack.c.h.b16 %v156
    %v2479 = vunpack.c.l.b16 %v157
    %v2480 = vunpack.c.h.b16 %v157
    %v2481 = vunpack.c.l.b16 %v158
    %v2482 = vunpack.c.h.b16 %v158
    %v2483 = vunpack.c.l.b16 %v159
    %v2484 = vunpack.c.h.b16 %v159
    %v2485 = vunpack.c.l.b16 %v160
    %v2486 = vunpack.c.h.b16 %v160
    %v2487 = vunpack.c.l.b16 %v161
    %v2488 = vunpack.c.h.b16 %v161
    %v2489 = vunpack.c.l.b16 %v162
    %v2490 = vunpack.c.h.b16 %v162
    %v2491 = vunpack.c.l.b16 %v163
    %v2492 = vunpack.c.h.b16 %v163
    %v2493 = vunpack.c.l.b16 %v164
    %v2494 = vunpack.c.h.b16 %v164
    %v2495 = vunpack.c.l.b16 %v165
    %v2496 = vunpack.c.h.b16 %v165
    %v2497 = vunpack.c.l.b16 %v166
    %v2498 = vunpack.c.h.b16 %v166
    %v2499 = vunpack.c.l.b16 %v167
    %v2500 = vunpack.c.h.b16 %v167
    %v2501 = vunpack.c.l.b16 %v168
    %v2502 = vunpack.c.h.b16 %v168
    %v2503 = vunpack.c.l.b16 %v169
    %v2504 = vunpack.c.h.b16 %v169
    %v2505 = vunpack.c.l.b16 %v170
    %v2506 = vunpack.c.h.b16 %v170
    %v2507 = vunpack.c.l.b16 %v171
    %v2508 = vunpack.c.h.b16 %v171
    %v2509 = vunpack.c.l.b16 %v172
    %v2510 = vunpack.c.h.b16 %v172
    %v2511 = vunpack.c.l.b16 %v173
    %v2512 = vunpack.c.h.b16 %v173
    %v2513 = vunpack.c.l.b16 %v174
    %v2514 = vunpack.c.h.b16 %v174
    %v2515 = vunpack.c.l.b16 %v175
    %v2516 = vunpack.c.h.b16 %v175
    %v2517 = vunpack.c.l.b16 %v176
    %v2518 = vunpack.c.h.b16 %v176
    %v2519 = vunpack.c.l.b16 %v177
    %v2520 = vunpack.c.h.b16 %v177
    %v2521 = vunpack.c.l.b16 %v178
    %v2522 = vunpack.c.h.b16 %v178
    %v2523 = vunpack.c.l.b16 %v179
    %v2524 = vunpack.c.h.b16 %v179
    %v2525 = vunpack.c.l.b16 %v180
    %v2526 = vunpack.c.h.b16 %v180
    %v2527 = vunpack.c.l.b16 %v181
    %v2528 = vunpack.c.h.b16 %v181
    %v2529 = vunpack.c.l.b16 %v182
    %v2530 = vunpack.c.h.b16 %v182
    %v2531 = vunpack.c.l.b16 %v183
    %v2532 = vunpack.c.h.b16 %v183
    %v2533 = vunpack.c.l.b16 %v184
    %v2534 = vunpack.c.h.b16 %v184
    %v2535 = vunpack.c.l.b16 %v185
    %v2536 = vunpack.c.h.b16 %v185
    %v2537 = vunpack.c.l.b16 %v186
    %v2538 = vunpack.c.h.b16 %v186
    %v2539 = vunpack.c.l.b16 %v187
    %v2540 = vunpack.c.h.b16 %v187
    %v2541 = vunpack.c.l.b16 %v188
    %v2542 = vunpack.c.h.b16 %v188
    %v2543 = vunpack.c.l.b16 %v189
    %v2544 = vunpack.c.h.b16 %v189
    %v2545 = vunpack.c.l.b16 %v190
    %v2546 = vunpack.c.h.b16 %v190
    %v2547 = vunpack.c.l.b16 %v191
    %v2548 = vunpack.c.h.b16 %v191
    %v2549 = vunpack.c.l.b16 %v192
    %v2550 = vunpack.c.h.b16 %v192
    %v2551 = vunpack.c.l.b16 %v193
    %v2552 = vunpack.c.h.b16 %v193
    %v2553 = vunpack.c.l.b16 %v194
    %v2554 = vunpack.c.h.b16 %v194
    %v2555 = vunpack.c.l.b16 %v195
    %v2556 = vunpack.c.h.b16 %v195
    %v2557 = vunpack.c.l.b16 %v196
    %v2558 = vunpack.c.h.b16 %v196
    %v2559 = vunpack.c.l.b16 %v197
    %v2560 = vunpack.c.h.b16 %v197
    %v2561 = vunpack.c.l.b16 %v198
    %v2562 = vunpack.c.h.b16 %v198
    %v2563 = vunpack.c.l.b16 %v199
    %v2564 = vunpack.c.h.b16 %v199
    %v2565 = vunpack.c.l.b16 %v200
    %v2566 = vunpack.c.h.b16 %v200
    %v2567 = vunpack.c.l.b16 %v201
    %v2568 = vunpack.c.h.b16 %v201
    %v2569 = vunpack.c.l.b16 %v202
    %v2570 = vunpack.c.h.b16 %v202
    %v2571 = vunpack.c.l.b16 %v203
    %v2572 = vunpack.c.h.b16 %v203
    %v2573 = vunpack.c.l.b16 %v204
    %v2574 = vunpack.c.h.b16 %v204
    %v2575 = vunpack.c.l.b16 %v205
    %v2576 = vunpack.c.h.b16 %v205
    %v2577 = vunpack.c.l.b16 %v206
    %v2578 = vunpack.c.h.b16 %v206
    %v2579 = vunpack.c.l.b16 %v207
    %v2580 = vunpack.c.h.b16 %v207
    %v2581 = vunpack.c.l.b16 %v208
    %v2582 = vunpack.c.h.b16 %v208
    %v2583 = vunpack.c.l.b16 %v209
    %v2584 = vunpack.c.h.b16 %v209
    %v2585 = vunpack.c.l.b16 %v210
    %v2586 = vunpack.c.h.b16 %v210
    %v2587 = vunpack.c.l.b16 %v211
    %v2588 = vunpack.c.h.b16 %v211
    %v2589 = vunpack.c.l.b16 %v212
    %v2590 = vunpack.c.h.b16 %v212
    %v2591 = vunpack.c.l.b16 %v213
    %v2592 = vunpack.c.h.b16 %v213
    %v2593 = vunpack.c.l.b16 %v214
    %v2594 = vunpack.c.h.b16 %v214
    %v2595 = vunpack.c.l.b16 %v215
    %v2596 = vunpack.c.h.b16 %v215
    %v2597 = vunpack.c.l.b16 %v216
    %v2598 = vunpack.c.h.b16 %v216
    %v2599 = vunpack.c.l.b16 %v217
    %v2600 = vunpack.c.h.b16 %v217
    %v2601 = vunpack.c.l.b16 %v218
    %v2602 = vunpack.c.h.b16 %v218
    %v2603 = vunpack.c.l.b16 %v219
    %v2604 = vunpack.c.h.b16 %v219
    %v2605 = vunpack.c.l.b16 %v220
    %v2606 = vunpack.c.h.b16 %v220
    %v2607 = vunpack.c.l.b16 %v221
    %v2608 = vunpack.c.h.b16 %v221
    %v2609 = vunpack.c.l.b16 %v222
    %v2610 = vunpack.c.h.b16 %v222
    %v2611 = vunpack.c.l.b16 %v223
    %v2612 = vunpack.c.h.b16 %v223
    %v2613 = vunpack.c.l.b16 %v224
    %v2614 = vunpack.c.h.b16 %v224
    %v2615 = vunpack.c.l.b16 %v225
    %v2616 = vunpack.c.h.b16 %v225
    %v2617 = vunpack.c.l.b16 %v226
    %v2618 = vunpack.c.h.b16 %v226
    %v2619 = vunpack.c.l.b16 %v227
    %v2620 = vunpack.c.h.b16 %v227
    %v2621 = vunpack.c.l.b16 %v228
    %v2622 = vunpack.c.h.b16 %v228
    %v2623 = vunpack.c.l.b16 %v229
    %v2624 = vunpack.c.h.b16 %v229
    %v2625 = vunpack.c.l.b16 %v230
    %v2626 = vunpack.c.h.b16 %v230
    %v2627 = vunpack.c.l.b16 %v231
    %v2628 = vunpack.c.h.b16 %v231
    %v2629 = vunpack.c.l.b16 %v232
    %v2630 = vunpack.c.h.b16 %v232
    %v2631 = vunpack.c.l.b16 %v233
    %v2632 = vunpack.c.h.b16 %v233
    %v2633 = vunpack.c.l.b16 %v234
    %v2634 = vunpack.c.h.b16 %v234
    %v2635 = vunpack.c.l.b16 %v235
    %v2636 = vunpack.c.h.b16 %v235
    %v2637 = vunpack.c.l.b16 %v236
    %v2638 = vunpack.c.h.b16 %v236
    %v2639 = vunpack.c.l.b16 %v237
    %v2640 = vunpack.c.h.b16 %v237
    %v2641 = vunpack.c.l.b16 %v238
    %v2642 = vunpack.c.h.b16 %v238
    %v2643 = vunpack.c.l.b16 %v239
    %v2644 = vunpack.c.h.b16 %v239
    %v2645 = vunpack.c.l.b16 %v240
    %v2646 = vunpack.c.h.b16 %v240
    %v2647 = vunpack.c.l.b16 %v241
    %v2648 = vunpack.c.h.b16 %v241
    %v2649 = vunpack.c.l.b16 %v242
    %v2650 = vunpack.c.h.b16 %v242
    %v2651 = vunpack.c.l.b16 %v243
    %v2652 = vunpack.c.h.b16 %v243
    %v2653 = vunpack.c.l.b16 %v244
    %v2654 = vunpack.c.h.b16 %v244
    %v2655 = vunpack.c.l.b16 %v245
    %v2656 = vunpack.c.h.b16 %v245
    %v2657 = vunpack.c.l.b16 %v246
    %v2658 = vunpack.c.h.b16 %v246
    %v2659 = vunpack.c.l.b16 %v247
    %v2660 = vunpack.c.h.b16 %v247
    %v2661 = vunpack.c.l.b16 %v248
    %v2662 = vunpack.c.h.b16 %v248
    %v2663 = vunpack.c.l.b16 %v249
    %v2664 = vunpack.c.h.b16 %v249
    %v2665 = vunpack.c.l.b16 %v250
    %v2666 = vunpack.c.h.b16 %v250
    %v2667 = vunpack.c.l.b16 %v251
    %v2668 = vunpack.c.h.b16 %v251
    %v2669 = vunpack.c.l.b16 %v252
    %v2670 = vunpack.c.h.b16 %v252
    %v2671 = vunpack.c.l.b16 %v253
    %v2672 = vunpack.c.h.b16 %v253
    %v2673 = vunpack.c.l.b16 %v254
    %v2674 = vunpack.c.h.b16 %v254
    %v2675 = vunpack.c.l.b16 %v255
    %v2676 = vunpack.c.h.b16 %v255
    %v2677 = vunpack.c.l.b16 %v256
    %v2678 = vunpack.c.h.b16 %v256
    %v2679 = vunpack.c.l.b16 %v257
    %v2680 = vunpack.c.h.b16 %v257
    %v2681 = vunpack.c.l.b16 %v258
    %v2682 = vunpack.c.h.b16 %v258
    %v2683 = vunpack.c.l.b16 %v259
    %v2684 = vunpack.c.h.b16 %v259
    %v2685 = vunpack.c.l.b16 %v260
    %v2686 = vunpack.c.h.b16 %v260
    %v2687 = vunpack.c.l.b16 %v261
    %v2688 = vunpack.c.h.b16 %v261
    %v2689 = vunpack.c.l.b16 %v262
    %v2690 = vunpack.c.h.b16 %v262
    %v2691 = vunpack.c.l.b16 %v263
    %v2692 = vunpack.c.h.b16 %v263
    %v2693 = vunpack.c.l.b16 %v264
    %v2694 = vunpack.c.h.b16 %v264
    %v2695 = vunpack.c.l.b16 %v265
    %v2696 = vunpack.c.h.b16 %v265
    %v2697 = vunpack.c.l.b16 %v266
    %v2698 = vunpack.c.h.b16 %v266
    %v2699 = vunpack.c.l.b16 %v267
    %v2700 = vunpack.c.h.b16 %v267
    %v2701 = vunpack.c.l.b16 %v268
    %v2702 = vunpack.c.h.b16 %v268
    %v2703 = vunpack.c.l.b16 %v269
    %v2704 = vunpack.c.h.b16 %v269
    %v2705 = vunpack.c.l.b16 %v270
    %v2706 = vunpack.c.h.b16 %v270
    %v2707 = vunpack.c.l.b16 %v271
    %v2708 = vunpack.c.h.b16 %v271
    %v2709 = vunpack.c.l.b16 %v272
    %v2710 = vunpack.c.h.b16 %v272
    %v2711 = vunpack.c.l.b16 %v273
    %v2712 = vunpack.c.h.b16 %v273
    %v2713 = vunpack.c.l.b16 %v274
    %v2714 = vunpack.c.h.b16 %v274
    %v2715 = vunpack.c.l.b16 %v275
    %v2716 = vunpack.c.h.b16 %v275
    %v2717 = vunpack.c.l.b16 %v276
    %v2718 = vunpack.c.h.b16 %v276
    %v2719 = vunpack.c.l.b16 %v277
    %v2720 = vunpack.c.h.b16 %v277
    %v2721 = vunpack.c.l.b16 %v278
    %v2722 = vunpack.c.h.b16 %v278
    %v2723 = vunpack.c.l.b16 %v279
    %v2724 = vunpack.c.h.b16 %v279
    %v2725 = vunpack.c.l.b16 %v280
    %v2726 = vunpack.c.h.b16 %v280
    %v2727 = vunpack.c.l.b16 %v281
    %v2728 = vunpack.c.h.b16 %v281
    %v2729 = vunpack.c.l.b16 %v282
    %v2730 = vunpack.c.h.b16 %v282
    %v2731 = vunpack.c.l.b16 %v283
    %v2732 = vunpack.c.h.b16 %v283
    %v2733 = vunpack.c.l.b16 %v284
    %v2734 = vunpack.c.h.b16 %v284
    %v2735 = vunpack.c.l.b16 %v285
    %v2736 = vunpack.c.h.b16 %v285
    %v2737 = vunpack.c.l.b16 %v286
    %v2738 = vunpack.c.h.b16 %v286
    %v2739 = vunpack.c.l.b16 %v287
    %v2740 = vunpack.c.h.b16 %v287
    %v2741 = vunpack.c.l.b16 %v288
    %v2742 = vunpack.c.h.b16 %v288
    %v2743 = vunpack.c.l.b16 %v289
    %v2744 = vunpack.c.h.b16 %v289
    %v2745 = vunpack.c.l.b16 %v290
    %v2746 = vunpack.c.h.b16 %v290
    %v2747 = vunpack.c.l.b16 %v291
    %v2748 = vunpack.c.h.b16 %v291
    %v2749 = vunpack.c.l.b16 %v292
    %v2750 = vunpack.c.h.b16 %v292
    %v2751 = vunpack.c.l.b16 %v293
    %v2752 = vunpack.c.h.b16 %v293
    %v2753 = vunpack.c.l.b16 %v294
    %v2754 = vunpack.c.h.b16 %v294
    %v2755 = vunpack.c.l.b16 %v295
    %v2756 = vunpack.c.h.b16 %v295
    %v2757 = vunpack.c.l.b16 %v296
    %v2758 = vunpack.c.h.b16 %v296
    %v2759 = vunpack.c.l.b16 %v297
    %v2760 = vunpack.c.h.b16 %v297
    %v2761 = vunpack.c.l.b16 %v298
    %v2762 = vunpack.c.h.b16 %v298
    %v2763 = vunpack.c.l.b16 %v299
    %v2764 = vunpack.c.h.b16 %v299
    %v2765 = vunpack.c.l.b16 %v300
    %v2766 = vunpack.c.h.b16 %v300
    %v2767 = vunpack.c.l.b16 %v301
    %v2768 = vunpack.c.h.b16 %v301
    %v2769 = vunpack.c.l.b16 %v302
    %v2770 = vunpack.c.h.b16 %v302
    %v2771 = vunpack.c.l.b16 %v303
    %v2772 = vunpack.c.h.b16 %v303
    %v2773 = vunpack.c.l.b16 %v304
    %v2774 = vunpack.c.h.b16 %v304
    %v2775 = vunpack.c.l.b16 %v305
    %v2776 = vunpack.c.h.b16 %v305
    %v2777 = vunpack.c.l.b16 %v306
    %v2778 = vunpack.c.h.b16 %v306
    %v2779 = vunpack.c.l.b16 %v307
    %v2780 = vunpack.c.h.b16 %v307
    %v2781 = vunpack.c.l.b16 %v308
    %v2782 = vunpack.c.h.b16 %v308
    %v2783 = vunpack.c.l.b16 %v309
    %v2784 = vunpack.c.h.b16 %v309
    %v2785 = vunpack.c.l.b16 %v310
    %v2786 = vunpack.c.h.b16 %v310
    %v2787 = vunpack.c.l.b16 %v311
    %v2788 = vunpack.c.h.b16 %v311
    %v2789 = vunpack.c.l.b16 %v312
    %v2790 = vunpack.c.h.b16 %v312
    %v2791 = vunpack.c.l.b16 %v313
    %v2792 = vunpack.c.h.b16 %v313
    %v2793 = vunpack.c.l.b16 %v314
    %v2794 = vunpack.c.h.b16 %v314
    %v2795 = vunpack.c.l.b16 %v315
    %v2796 = vunpack.c.h.b16 %v315
    %v2797 = vunpack.c.l.b16 %v316
    %v2798 = vunpack.c.h.b16 %v316
    %v2799 = vunpack.c.l.b16 %v317
    %v2800 = vunpack.c.h.b16 %v317
    %v2801 = vunpack.c.l.b16 %v318
    %v2802 = vunpack.c.h.b16 %v318
    %v2803 = vunpack.c.l.b16 %v319
    %v2804 = vunpack.c.h.b16 %v319
    %v2805 = vunpack.c.l.b16 %v320
    %v2806 = vunpack.c.h.b16 %v320
    %v2807 = vunpack.c.l.b16 %v321
    %v2808 = vunpack.c.h.b16 %v321
    %v2809 = vunpack.c.l.b16 %v322
    %v2810 = vunpack.c.h.b16 %v322
    %v2811 = vunpack.c.l.b16 %v323
    %v2812 = vunpack.c.h.b16 %v323
    %v2813 = vunpack.c.l.b16 %v324
    %v2814 = vunpack.c.h.b16 %v324
    %v2815 = vunpack.c.l.b16 %v325
    %v2816 = vunpack.c.h.b16 %v325
    %v2817 = vunpack.c.l.b16 %v326
    %v2818 = vunpack.c.h.b16 %v326
    %v2819 = vunpack.c.l.b16 %v327
    %v2820 = vunpack.c.h.b16 %v327
    %v2821 = vunpack.c.l.b16 %v328
    %v2822 = vunpack.c.h.b16 %v328
    %v2823 = vunpack.c.l.b16 %v329
    %v2824 = vunpack.c.h.b16 %v329
    %v2825 = vunpack.c.l.b16 %v330
    %v2826 = vunpack.c.h.b16 %v330
    %v2827 = vunpack.c.l.b16 %v331
    %v2828 = vunpack.c.h.b16 %v331
    %v2829 = vunpack.c.l.b16 %v332
    %v2830 = vunpack.c.h.b16 %v332
    %v2831 = vunpack.c.l.b16 %v333
    %v2832 = vunpack.c.h.b16 %v333
    %v2833 = vunpack.c.l.b16 %v334
    %v2834 = vunpack.c.h.b16 %v334
    %v2835 = vunpack.c.l.b16 %v335
    %v2836 = vunpack.c.h.b16 %v335
    %v2837 = vunpack.c.l.b16 %v336
    %v2838 = vunpack.c.h.b16 %v336
    %v2839 = vunpack.c.l.b16 %v337
    %v2840 = vunpack.c.h.b16 %v337
    %v2841 = vunpack.c.l.b16 %v338
    %v2842 = vunpack.c.h.b16 %v338
    %v2843 = vunpack.c.l.b16 %v339
    %v2844 = vunpack.c.h.b16 %v339
    %v2845 = vunpack.c.l.b16 %v340
    %v2846 = vunpack.c.h.b16 %v340
    %v2847 = vunpack.c.l.b16 %v341
    %v2848 = vunpack.c.h.b16 %v341
    %v2849 = vunpack.c.l.b16 %v342
    %v2850 = vunpack.c.h.b16 %v342
    %v2851 = vunpack.c.l.b16 %v343
    %v2852 = vunpack.c.h.b16 %v343
    %v2853 = vunpack.c.l.b16 %v344
    %v2854 = vunpack.c.h.b16 %v344
    %v2855 = vunpack.c.l.b16 %v345
    %v2856 = vunpack.c.h.b16 %v345
    %v2857 = vunpack.c.l.b16 %v346
    %v2858 = vunpack.c.h.b16 %v346
    %v2859 = vunpack.c.l.b16 %v347
    %v2860 = vunpack.c.h.b16 %v347
    %v2861 = vunpack.c.l.b16 %v348
    %v2862 = vunpack.c.h.b16 %v348
    %v2863 = vunpack.c.l.b16 %v349
    %v2864 = vunpack.c.h.b16 %v349
    %v2865 = vunpack.c.l.b16 %v350
    %v2866 = vunpack.c.h.b16 %v350
    %v2867 = vunpack.c.l.b16 %v351
    %v2868 = vunpack.c.h.b16 %v351
    %v2869 = vunpack.c.l.b16 %v352
    %v2870 = vunpack.c.h.b16 %v352
    %v2871 = vunpack.c.l.b16 %v353
    %v2872 = vunpack.c.h.b16 %v353
    %v2873 = vunpack.c.l.b16 %v354
    %v2874 = vunpack.c.h.b16 %v354
    %v2875 = vunpack.c.l.b16 %v355
    %v2876 = vunpack.c.h.b16 %v355
    %v2877 = vunpack.c.l.b16 %v356
    %v2878 = vunpack.c.h.b16 %v356
    %v2879 = vunpack.c.l.b16 %v357
    %v2880 = vunpack.c.h.b16 %v357
    %v2881 = vunpack.c.l.b16 %v358
    %v2882 = vunpack.c.h.b16 %v358
    %v2883 = vunpack.c.l.b16 %v359
    %v2884 = vunpack.c.h.b16 %v359
    %v2885 = vunpack.c.l.b16 %v360
    %v2886 = vunpack.c.h.b16 %v360
    %v2887 = vunpack.c.l.b16 %v361
    %v2888 = vunpack.c.h.b16 %v361
    %v2889 = vunpack.c.l.b16 %v362
    %v2890 = vunpack.c.h.b16 %v362
    %v2891 = vunpack.c.l.b16 %v363
    %v2892 = vunpack.c.h.b16 %v363
    %v2893 = vunpack.c.l.b16 %v364
    %v2894 = vunpack.c.h.b16 %v364
    %v2895 = vunpack.c.l.b16 %v365
    %v2896 = vunpack.c.h.b16 %v365
    %v2897 = vunpack.c.l.b16 %v366
    %v2898 = vunpack.c.h.b16 %v366
    %v2899 = vunpack.c.l.b16 %v367
    %v2900 = vunpack.c.h.b16 %v367
    %v2901 = vunpack.c.l.b16 %v368
    %v2902 = vunpack.c.h.b16 %v368
    %v2903 = vunpack.c.l.b16 %v369
    %v2904 = vunpack.c.h.b16 %v369
    %v2905 = vunpack.c.l.b16 %v370
    %v2906 = vunpack.c.h.b16 %v370
    %v2907 = vunpack.c.l.b16 %v371
    %v2908 = vunpack.c.h.b16 %v371
    %v2909 = vunpack.c.l.b16 %v372
    %v2910 = vunpack.c.h.b16 %v372
    %v2911 = vunpack.c.l.b16 %v373
    %v2912 = vunpack.c.h.b16 %v373
    %v2913 = vunpack.c.l.b16 %v374
    %v2914 = vunpack.c.h.b16 %v374
    %v2915 = vunpack.c.l.b16 %v375
    %v2916 = vunpack.c.h.b16 %v375
    %v2917 = vunpack.c.l.b16 %v376
    %v2918 = vunpack.c.h.b16 %v376
    %v2919 = vunpack.c.l.b16 %v377
    %v2920 = vunpack.c.h.b16 %v377
    %v2921 = vunpack.c.l.b16 %v378
    %v2922 = vunpack.c.h.b16 %v378
    %v2923 = vunpack.c.l.b16 %v379
    %v2924 = vunpack.c.h.b16 %v379
    %v2925 = vunpack.c.l.b16 %v380
    %v2926 = vunpack.c.h.b16 %v380
    %v2927 = vunpack.c.l.b16 %v381
    %v2928 = vunpack.c.h.b16 %v381
    %v2929 = vunpack.c.l.b16 %v382
    %v2930 = vunpack.c.h.b16 %v382
    %v2931 = vunpack.c.l.b16 %v383
    %v2932 = vunpack.c.h.b16 %v383
    %v2933 = vunpack.c.l.b16 %v384
    %v2934 = vunpack.c.h.b16 %v384
    %v2935 = vunpack.c.l.b16 %v385
    %v2936 = vunpack.c.h.b16 %v385
    %v2937 = vunpack.c.l.b16 %v386
    %v2938 = vunpack.c.h.b16 %v386
    %v2939 = vunpack.c.l.b16 %v387
    %v2940 = vunpack.c.h.b16 %v387
    %v2941 = vunpack.c.l.b16 %v388
    %v2942 = vunpack.c.h.b16 %v388
    %v2943 = vunpack.c.l.b16 %v389
    %v2944 = vunpack.c.h.b16 %v389
    %v2945 = vunpack.c.l.b16 %v390
    %v2946 = vunpack.c.h.b16 %v390
    %v2947 = vunpack.c.l.b16 %v391
    %v2948 = vunpack.c.h.b16 %v391
    %v2949 = vunpack.c.l.b16 %v392
    %v2950 = vunpack.c.h.b16 %v392
    %v2951 = vunpack.c.l.b16 %v393
    %v2952 = vunpack.c.h.b16 %v393
    %v2953 = vunpack.c.l.b16 %v394
    %v2954 = vunpack.c.h.b16 %v394
    %v2955 = vunpack.c.l.b16 %v395
    %v2956 = vunpack.c.h.b16 %v395
    %v2957 = vunpack.c.l.b16 %v396
    %v2958 = vunpack.c.h.b16 %v396
    %v2959 = vunpack.c.l.b16 %v397
    %v2960 = vunpack.c.h.b16 %v397
    %v2961 = vunpack.c.l.b16 %v398
    %v2962 = vunpack.c.h.b16 %v398
    %v2963 = vunpack.c.l.b16 %v399
    %v2964 = vunpack.c.h.b16 %v399
    %v2965 = vunpack.c.l.b16 %v400
    %v2966 = vunpack.c.h.b16 %v400
    %v2967 = vunpack.c.l.b16 %v401
    %v2968 = vunpack.c.h.b16 %v401
    %v2969 = vunpack.c.l.b16 %v402
    %v2970 = vunpack.c.h.b16 %v402
    %v2971 = vunpack.c.l.b16 %v403
    %v2972 = vunpack.c.h.b16 %v403
    %v2973 = vunpack.c.l.b16 %v404
    %v2974 = vunpack.c.h.b16 %v404
    %v2975 = vunpack.c.l.b16 %v405
    %v2976 = vunpack.c.h.b16 %v405
    %v2977 = vunpack.c.l.b16 %v406
    %v2978 = vunpack.c.h.b16 %v406
    %v2979 = vunpack.c.l.b16 %v407
    %v2980 = vunpack.c.h.b16 %v407
    %v2981 = vunpack.c.l.b16 %v408
    %v2982 = vunpack.c.h.b16 %v408
    %v2983 = vunpack.c.l.b16 %v409
    %v2984 = vunpack.c.h.b16 %v409
    %v2985 = vunpack.c.l.b16 %v410
    %v2986 = vunpack.c.h.b16 %v410
    %v2987 = vunpack.c.l.b16 %v411
    %v2988 = vunpack.c.h.b16 %v411
    %v2989 = vunpack.c.l.b16 %v412
    %v2990 = vunpack.c.h.b16 %v412
    %v2991 = vunpack.c.l.b16 %v413
    %v2992 = vunpack.c.h.b16 %v413
    %v2993 = vunpack.c.l.b16 %v414
    %v2994 = vunpack.c.h.b16 %v414
    %v2995 = vunpack.c.l.b16 %v415
    %v2996 = vunpack.c.h.b16 %v415
    %v2997 = vunpack.c.l.b16 %v416
    %v2998 = vunpack.c.h.b16 %v416
    %v2999 = vunpack.c.l.b16 %v417
    %v3000 = vunpack.c.h.b16 %v417
    %v3001 = vunpack.c.l.b16 %v418
    %v3002 = vunpack.c.h.b16 %v418
    %v3003 = vunpack.c.l.b16 %v419
    %v3004 = vunpack.c.h.b16 %v419
    %v3005 = vunpack.c.l.b16 %v420
    %v3006 = vunpack.c.h.b16 %v420
    %v3007 = vunpack.c.l.b16 %v421
    %v3008 = vunpack.c.h.b16 %v421
    %v3009 = vunpack.c.l.b16 %v422
    %v3010 = vunpack.c.h.b16 %v422
    %v3011 = vunpack.c.l.b16 %v423
    %v3012 = vunpack.c.h.b16 %v423
    %v3013 = vunpack.c.l.b16 %v424
    %v3014 = vunpack.c.h.b16 %v424
    %v3015 = vunpack.c.l.b16 %v425
    %v3016 = vunpack.c.h.b16 %v425
    %v3017 = vunpack.c.l.b16 %v426
    %v3018 = vunpack.c.h.b16 %v426
    %v3019 = vunpack.c.l.b16 %v427
    %v3020 = vunpack.c.h.b16 %v427
    %v3021 = vunpack.c.l.b16 %v428
    %v3022 = vunpack.c.h.b16 %v428
    %v3023 = vunpack.c.l.b16 %v429
    %v3024 = vunpack.c.h.b16 %v429
    %v3025 = vunpack.c.l.b16 %v430
    %v3026 = vunpack.c.h.b16 %v430
    %v3027 = vunpack.c.l.b16 %v431
    %v3028 = vunpack.c.h.b16 %v431
    %v3029 = vunpack.c.l.b16 %v432
    %v3030 = vunpack.c.h.b16 %v432
    %v3031 = vunpack.c.l.b16 %v433
    %v3032 = vunpack.c.h.b16 %v433
    %v3033 = vunpack.c.l.b16 %v434
    %v3034 = vunpack.c.h.b16 %v434
    %v3035 = vunpack.c.l.b16 %v435
    %v3036 = vunpack.c.h.b16 %v435
    %v3037 = vunpack.c.l.b16 %v436
    %v3038 = vunpack.c.h.b16 %v436
    %v3039 = vunpack.c.l.b16 %v437
    %v3040 = vunpack.c.h.b16 %v437
    %v3041 = vunpack.c.l.b16 %v438
    %v3042 = vunpack.c.h.b16 %v438
    %v3043 = vunpack.c.l.b16 %v439
    %v3044 = vunpack.c.h.b16 %v439
    %v3045 = vunpack.c.l.b16 %v440
    %v3046 = vunpack.c.h.b16 %v440
    %v3047 = vunpack.c.l.b16 %v441
    %v3048 = vunpack.c.h.b16 %v441
    %v3049 = vunpack.c.l.b16 %v442
    %v3050 = vunpack.c.h.b16 %v442
    %v3051 = vunpack.c.l.b16 %v443
    %v3052 = vunpack.c.h.b16 %v443
    %v3053 = vunpack.c.l.b16 %v444
    %v3054 = vunpack.c.h.b16 %v444
    %v3055 = vunpack.c.l.b16 %v445
    %v3056 = vunpack.c.h.b16 %v445
    %v3057 = vunpack.c.l.b16 %v446
    %v3058 = vunpack.c.h.b16 %v446
    %v3059 = vunpack.c.l.b16 %v447
    %v3060 = vunpack.c.h.b16 %v447
    %v3061 = vunpack.c.l.b16 %v448
    %v3062 = vunpack.c.h.b16 %v448
    %v3063 = vunpack.c.l.b16 %v449
    %v3064 = vunpack.c.h.b16 %v449
    %v3065 = vunpack.c.l.b16 %v450
    %v3066 = vunpack.c.h.b16 %v450
    %v3067 = vunpack.c.l.b16 %v451
    %v3068 = vunpack.c.h.b16 %v451
    %v3069 = vunpack.c.l.b16 %v452
    %v3070 = vunpack.c.h.b16 %v452
    %v3071 = vunpack.c.l.b16 %v453
    %v3072 = vunpack.c.h.b16 %v453
    %v3073 = vunpack.c.l.b16 %v454
    %v3074 = vunpack.c.h.b16 %v454
    %v3075 = vunpack.c.l.b16 %v455
    %v3076 = vunpack.c.h.b16 %v455
    %v3077 = vunpack.c.l.b16 %v456
    %v3078 = vunpack.c.h.b16 %v456
    %v3079 = vunpack.c.l.b16 %v457
    %v3080 = vunpack.c.h.b16 %v457
    %v3081 = vunpack.c.l.b16 %v458
    %v3082 = vunpack.c.h.b16 %v458
    %v3083 = vunpack.c.l.b16 %v459
    %v3084 = vunpack.c.h.b16 %v459
    %v3085 = vunpack.c.l.b16 %v460
    %v3086 = vunpack.c.h.b16 %v460
    %v3087 = vunpack.c.l.b16 %v461
    %v3088 = vunpack.c.h.b16 %v461
    %v3089 = vunpack.c.l.b16 %v462
    %v3090 = vunpack.c.h.b16 %v462
    %v3091 = vunpack.c.l.b16 %v463
    %v3092 = vunpack.c.h.b16 %v463
    %v3093 = vunpack.c.l.b16 %v464
    %v3094 = vunpack.c.h.b16 %v464
    %v3095 = vunpack.c.l.b16 %v465
    %v3096 = vunpack.c.h.b16 %v465
    %v3097 = vunpack.c.l.b16 %v466
    %v3098 = vunpack.c.h.b16 %v466
    %v3099 = vunpack.c.l.b16 %v467
    %v3100 = vunpack.c.h.b16 %v467
    %v3101 = vunpack.c.l.b16 %v468
    %v3102 = vunpack.c.h.b16 %v468
    %v3103 = vunpack.c.l.b16 %v469
    %v3104 = vunpack.c.h.b16 %v469
    %v3105 = vunpack.c.l.b16 %v470
    %v3106 = vunpack.c.h.b16 %v470
    %v3107 = vunpack.c.l.b16 %v471
    %v3108 = vunpack.c.h.b16 %v471
    %v3109 = vunpack.c.l.b16 %v472
    %v3110 = vunpack.c.h.b16 %v472
    %v3111 = vunpack.c.l.b16 %v473
    %v3112 = vunpack.c.h.b16 %v473
    %v3113 = vunpack.c.l.b16 %v474
    %v3114 = vunpack.c.h.b16 %v474
    %v3115 = vunpack.c.l.b16 %v475
    %v3116 = vunpack.c.h.b16 %v475
    %v3117 = vunpack.c.l.b16 %v476
    %v3118 = vunpack.c.h.b16 %v476
    %v3119 = vunpack.c.l.b16 %v477
    %v3120 = vunpack.c.h.b16 %v477
    %v3121 = vunpack.c.l.b16 %v478
    %v3122 = vunpack.c.h.b16 %v478
    %v3123 = vunpack.c.l.b16 %v479
    %v3124 = vunpack.c.h.b16 %v479
    %v3125 = vunpack.c.l.b16 %v480
    %v3126 = vunpack.c.h.b16 %v480
    %v3127 = vunpack.c.l.b16 %v481
    %v3128 = vunpack.c.h.b16 %v481
    %v3129 = vunpack.c.l.b16 %v482
    %v3130 = vunpack.c.h.b16 %v482
    %v3131 = vunpack.c.l.b16 %v483
    %v3132 = vunpack.c.h.b16 %v483
    %v3133 = vunpack.c.l.b16 %v484
    %v3134 = vunpack.c.h.b16 %v484
    %v3135 = vunpack.c.l.b16 %v485
    %v3136 = vunpack.c.h.b16 %v485
    %v3137 = vunpack.c.l.b16 %v486
    %v3138 = vunpack.c.h.b16 %v486
    %v3139 = vunpack.c.l.b16 %v487
    %v3140 = vunpack.c.h.b16 %v487
    %v3141 = vunpack.c.l.b16 %v488
    %v3142 = vunpack.c.h.b16 %v488
    %v3143 = vunpack.c.l.b16 %v489
    %v3144 = vunpack.c.h.b16 %v489
    %v3145 = vunpack.c.l.b16 %v490
    %v3146 = vunpack.c.h.b16 %v490
    %v3147 = vunpack.c.l.b16 %v491
    %v3148 = vunpack.c.h.b16 %v491
    %v3149 = vunpack.c.l.b16 %v492
    %v3150 = vunpack.c.h.b16 %v492
    %v3151 = vunpack.c.l.b16 %v493
    %v3152 = vunpack.c.h.b16 %v493
    %v3153 = vunpack.c.l.b16 %v494
    %v3154 = vunpack.c.h.b16 %v494
    %v3155 = vunpack.c.l.b16 %v495
    %v3156 = vunpack.c.h.b16 %v495
    %v3157 = vunpack.c.l.b16 %v496
    %v3158 = vunpack.c.h.b16 %v496
    %v3159 = vunpack.c.l.b16 %v497
    %v3160 = vunpack.c.h.b16 %v497
    %v3161 = vunpack.c.l.b16 %v498
    %v3162 = vunpack.c.h.b16 %v498
    %v3163 = vunpack.c.l.b16 %v499
    %v3164 = vunpack.c.h.b16 %v499
    %v3165 = vunpack.c.l.b16 %v500
    %v3166 = vunpack.c.h.b16 %v500
    %v3167 = vunpack.c.l.b16 %v501
    %v3168 = vunpack.c.h.b16 %v501
    %v3169 = vunpack.c.l.b16 %v502
    %v3170 = vunpack.c.h.b16 %v502
    %v3171 = vunpack.c.l.b16 %v503
    %v3172 = vunpack.c.h.b16 %v503
    %v3173 = vunpack.c.l.b16 %v504
    %v3174 = vunpack.c.h.b16 %v504
    %v3175 = vunpack.c.l.b16 %v505
    %v3176 = vunpack.c.h.b16 %v505
    %v3177 = vunpack.c.l.b16 %v506
    %v3178 = vunpack.c.h.b16 %v506
    %v3179 = vunpack.c.l.b16 %v507
    %v3180 = vunpack.c.h.b16 %v507
    %v3181 = vunpack.c.l.b16 %v508
    %v3182 = vunpack.c.h.b16 %v508
    %v3183 = vunpack.c.l.b16 %v509
    %v3184 = vunpack.c.h.b16 %v509
    %v3185 = vunpack.c.l.b16 %v510
    %v3186 = vunpack.c.h.b16 %v510
    %v3187 = vunpack.c.l.b16 %v511
    %v3188 = vunpack.c.h.b16 %v511
    %v3189 = vunpack.c.l.b16 %v512
    %v3190 = vunpack.c.h.b16 %v512
    %v3191 = vunpack.c.l.b16 %v513
    %v3192 = vunpack.c.h.b16 %v513
    %v3193 = vunpack.c.l.b16 %v514
    %v3194 = vunpack.c.h.b16 %v514
    %v3195 = vunpack.c.l.b16 %v515
    %v3196 = vunpack.c.h.b16 %v515
    %v3197 = vunpack.c.l.b16 %v516
    %v3198 = vunpack.c.h.b16 %v516
    %v3199 = vunpack.c.l.b16 %v517
    %v3200 = vunpack.c.h.b16 %v517
    %v3201 = vunpack.c.l.b16 %v518
    %v3202 = vunpack.c.h.b16 %v518
    %v3203 = vunpack.c.l.b16 %v519
    %v3204 = vunpack.c.h.b16 %v519
    %v3205 = vunpack.c.l.b16 %v520
    %v3206 = vunpack.c.h.b16 %v520
    %v3207 = vunpack.c.l.b16 %v521
    %v3208 = vunpack.c.h.b16 %v521
    %v3209 = vunpack.c.l.b16 %v522
    %v3210 = vunpack.c.h.b16 %v522
    %v3211 = vunpack.c.l.b16 %v523
    %v3212 = vunpack.c.h.b16 %v523
    %v3213 = vunpack.c.l.b16 %v524
    %v3214 = vunpack.c.h.b16 %v524
    %v3215 = vunpack.c.l.b16 %v525
    %v3216 = vunpack.c.h.b16 %v525
    %v3217 = vunpack.c.l.b16 %v526
    %v3218 = vunpack.c.h.b16 %v526
    %v3219 = vunpack.c.l.b16 %v527
    %v3220 = vunpack.c.h.b16 %v527
    %v3221 = vunpack.c.l.b16 %v528
    %v3222 = vunpack.c.h.b16 %v528
    %v3223 = vunpack.c.l.b16 %v529
    %v3224 = vunpack.c.h.b16 %v529
    %v3225 = vunpack.c.l.b16 %v530
    %v3226 = vunpack.c.h.b16 %v530
    %v3227 = vunpack.c.l.b16 %v531
    %v3228 = vunpack.c.h.b16 %v531
    %v3229 = vunpack.c.l.b16 %v532
    %v3230 = vunpack.c.h.b16 %v532
    %v3231 = vunpack.c.l.b16 %v533
    %v3232 = vunpack.c.h.b16 %v533
    %v3233 = vunpack.c.l.b16 %v534
    %v3234 = vunpack.c.h.b16 %v534
    %v3235 = vunpack.c.l.b16 %v535
    %v3236 = vunpack.c.h.b16 %v535
    %v3237 = vunpack.c.l.b16 %v536
    %v3238 = vunpack.c.h.b16 %v536
    %v3239 = vunpack.c.l.b16 %v537
    %v3240 = vunpack.c.h.b16 %v537
    %v3241 = vunpack.c.l.b16 %v538
    %v3242 = vunpack.c.h.b16 %v538
    %v3243 = vunpack.c.l.b16 %v539
    %v3244 = vunpack.c.h.b16 %v539
    %v3245 = vunpack.c.l.b16 %v540
    %v3246 = vunpack.c.h.b16 %v540
    %v3247 = vunpack.c.l.b16 %v541
    %v3248 = vunpack.c.h.b16 %v541
    %v3249 = vunpack.c.l.b16 %v542
    %v3250 = vunpack.c.h.b16 %v542
    %v3251 = vunpack.c.l.b16 %v543
    %v3252 = vunpack.c.h.b16 %v543
    %v3253 = vunpack.c.l.b16 %v544
    %v3254 = vunpack.c.h.b16 %v544
    %v3255 = vunpack.c.l.b16 %v545
    %v3256 = vunpack.c.h.b16 %v545
    %v3257 = vunpack.c.l.b16 %v546
    %v3258 = vunpack.c.h.b16 %v546
    %v3259 = vunpack.c.l.b16 %v547
    %v3260 = vunpack.c.h.b16 %v547
    %v3261 = vunpack.c.l.b16 %v548
    %v3262 = vunpack.c.h.b16 %v548
    %v3263 = vunpack.c.l.b16 %v549
    %v3264 = vunpack.c.h.b16 %v549
    %v3265 = vunpack.c.l.b16 %v550
    %v3266 = vunpack.c.h.b16 %v550
    %v3267 = vunpack.c.l.b16 %v551
    %v3268 = vunpack.c.h.b16 %v551
    %v3269 = vunpack.c.l.b16 %v552
    %v3270 = vunpack.c.h.b16 %v552
    %v3271 = vunpack.c.l.b16 %v553
    %v3272 = vunpack.c.h.b16 %v553
    %v3273 = vunpack.c.l.b16 %v554
    %v3274 = vunpack.c.h.b16 %v554
    %v3275 = vunpack.c.l.b16 %v555
    %v3276 = vunpack.c.h.b16 %v555
    %v3277 = vunpack.c.l.b16 %v556
    %v3278 = vunpack.c.h.b16 %v556
    %v3279 = vunpack.c.l.b16 %v557
    %v3280 = vunpack.c.h.b16 %v557
    %v3281 = vunpack.c.l.b16 %v558
    %v3282 = vunpack.c.h.b16 %v558
    %v3283 = vunpack.c.l.b16 %v559
    %v3284 = vunpack.c.h.b16 %v559
    %v3285 = vunpack.c.l.b16 %v560
    %v3286 = vunpack.c.h.b16 %v560
    %v3287 = vunpack.c.l.b16 %v561
    %v3288 = vunpack.c.h.b16 %v561
    %v3289 = vunpack.c.l.b16 %v562
    %v3290 = vunpack.c.h.b16 %v562
    %v3291 = vunpack.c.l.b16 %v563
    %v3292 = vunpack.c.h.b16 %v563
    %v3293 = vunpack.c.l.b16 %v564
    %v3294 = vunpack.c.h.b16 %v564
    %v3295 = vunpack.c.l.b16 %v565
    %v3296 = vunpack.c.h.b16 %v565
    %v3297 = vunpack.c.l.b16 %v566
    %v3298 = vunpack.c.h.b16 %v566
    %v3299 = vunpack.c.l.b16 %v567
    %v3300 = vunpack.c.h.b16 %v567
    %v3301 = vunpack.c.l.b16 %v568
    %v3302 = vunpack.c.h.b16 %v568
    %v3303 = vunpack.c.l.b16 %v569
    %v3304 = vunpack.c.h.b16 %v569
    %v3305 = vunpack.c.l.b16 %v570
    %v3306 = vunpack.c.h.b16 %v570
    %v3307 = vunpack.c.l.b16 %v571
    %v3308 = vunpack.c.h.b16 %v571
    %v3309 = vunpack.c.l.b16 %v572
    %v3310 = vunpack.c.h.b16 %v572
    %v3311 = vunpack.c.l.b16 %v573
    %v3312 = vunpack.c.h.b16 %v573
    %v3313 = vunpack.c.l.b16 %v574
    %v3314 = vunpack.c.h.b16 %v574
    %v3315 = vunpack.c.l.b16 %v575
    %v3316 = vunpack.c.h.b16 %v575
    %v3317 = vunpack.c.l.b16 %v576
    %v3318 = vunpack.c.h.b16 %v576
    %v3319 = vunpack.c.l.b16 %v577
    %v3320 = vunpack.c.h.b16 %v577
    %v3321 = vunpack.c.l.b16 %v578
    %v3322 = vunpack.c.h.b16 %v578
    %v3323 = vunpack.c.l.b16 %v579
    %v3324 = vunpack.c.h.b16 %v579
    %v3325 = vunpack.c.l.b16 %v580
    %v3326 = vunpack.c.h.b16 %v580
    %v3327 = vunpack.c.l.b16 %v581
    %v3328 = vunpack.c.h.b16 %v581
    %v3329 = vunpack.c.l.b16 %v582
    %v3330 = vunpack.c.h.b16 %v582
    %v3331 = vunpack.c.l.b16 %v583
    %v3332 = vunpack.c.h.b16 %v583
    %v3333 = vunpack.c.l.b16 %v584
    %v3334 = vunpack.c.h.b16 %v584
    %v3335 = vunpack.c.l.b16 %v585
    %v3336 = vunpack.c.h.b16 %v585
    %v3337 = vunpack.c.l.b16 %v586
    %v3338 = vunpack.c.h.b16 %v586
    %v3339 = vunpack.c.l.b16 %v587
    %v3340 = vunpack.c.h.b16 %v587
    %v3341 = vunpack.c.l.b16 %v588
    %v3342 = vunpack.c.h.b16 %v588
    %v3343 = vunpack.c.l.b16 %v589
    %v3344 = vunpack.c.h.b16 %v589
    %v3345 = vunpack.c.l.b16 %v590
    %v3346 = vunpack.c.h.b16 %v590
    %v3347 = vunpack.c.l.b16 %v591
    %v3348 = vunpack.c.h.b16 %v591
    %v3349 = vunpack.c.l.b16 %v592
    %v3350 = vunpack.c.h.b16 %v592
    %v3351 = vunpack.c.l.b16 %v593
    %v3352 = vunpack.c.h.b16 %v593
    %v3353 = vunpack.c.l.b16 %v594
    %v3354 = vunpack.c.h.b16 %v594
    %v3355 = vunpack.c.l.b16 %v595
    %v3356 = vunpack.c.h.b16 %v595
    %v3357 = vunpack.c.l.b16 %v596
    %v3358 = vunpack.c.h.b16 %v596
    %v3359 = vunpack.c.l.b16 %v597
    %v3360 = vunpack.c.h.b16 %v597
    %v3361 = vunpack.c.l.b16 %v598
    %v3362 = vunpack.c.h.b16 %v598
    %v3363 = vunpack.c.l.b16 %v599
    %v3364 = vunpack.c.h.b16 %v599
    %v3365 = vunpack.c.l.b16 %v600
    %v3366 = vunpack.c.h.b16 %v600
    %v3367 = vunpack.c.l.b16 %v601
    %v3368 = vunpack.c.h.b16 %v601
    %v3369 = vunpack.c.l.b16 %v602
    %v3370 = vunpack.c.h.b16 %v602
    %v3371 = vunpack.c.l.b16 %v603
    %v3372 = vunpack.c.h.b16 %v603
    %v3373 = vunpack.c.l.b16 %v604
    %v3374 = vunpack.c.h.b16 %v604
    %v3375 = vunpack.c.l.b16 %v605
    %v3376 = vunpack.c.h.b16 %v605
    %v3377 = vunpack.c.l.b16 %v606
    %v3378 = vunpack.c.h.b16 %v606
    %v3379 = vunpack.c.l.b16 %v607
    %v3380 = vunpack.c.h.b16 %v607
    %v3381 = vunpack.c.l.b16 %v608
    %v3382 = vunpack.c.h.b16 %v608
    %v3383 = vunpack.c.l.b16 %v609
    %v3384 = vunpack.c.h.b16 %v609
    %v3385 = vunpack.c.l.b16 %v610
    %v3386 = vunpack.c.h.b16 %v610
    %v3387 = vunpack.c.l.b16 %v611
    %v3388 = vunpack.c.h.b16 %v611
    %v3389 = vunpack.c.l.b16 %v612
    %v3390 = vunpack.c.h.b16 %v612
    %v3391 = vunpack.c.l.b16 %v613
    %v3392 = vunpack.c.h.b16 %v613
    %v3393 = vunpack.c.l.b16 %v614
    %v3394 = vunpack.c.h.b16 %v614
    %v3395 = vunpack.c.l.b16 %v615
    %v3396 = vunpack.c.h.b16 %v615
    %v3397 = vunpack.c.l.b16 %v616
    %v3398 = vunpack.c.h.b16 %v616
    %v3399 = vunpack.c.l.b16 %v617
    %v3400 = vunpack.c.h.b16 %v617
    %v3401 = vunpack.c.l.b16 %v618
    %v3402 = vunpack.c.h.b16 %v618
    %v3403 = vunpack.c.l.b16 %v619
    %v3404 = vunpack.c.h.b16 %v619
    %v3405 = vunpack.c.l.b16 %v620
    %v3406 = vunpack.c.h.b16 %v620
    %v3407 = vunpack.c.l.b16 %v621
    %v3408 = vunpack.c.h.b16 %v621
    %v3409 = vunpack.c.l.b16 %v622
    %v3410 = vunpack.c.h.b16 %v622
    %v3411 = vunpack.c.l.b16 %v623
    %v3412 = vunpack.c.h.b16 %v623
    %v3413 = vunpack.c.l.b16 %v624
    %v3414 = vunpack.c.h.b16 %v624
    %v3415 = vunpack.c.l.b16 %v625
    %v3416 = vunpack.c.h.b16 %v625
    %v3417 = vunpack.c.l.b16 %v626
    %v3418 = vunpack.c.h.b16 %v626
    %v3419 = vunpack.c.l.b16 %v627
    %v3420 = vunpack.c.h.b16 %v627
    %v3421 = vunpack.c.l.b16 %v628
    %v3422 = vunpack.c.h.b16 %v628
    %v3423 = vunpack.c.l.b16 %v629
    %v3424 = vunpack.c.h.b16 %v629
    %v3425 = vunpack.c.l.b16 %v630
    %v3426 = vunpack.c.h.b16 %v630
    %v3427 = vunpack.c.l.b16 %v631
    %v3428 = vunpack.c.h.b16 %v631
    %v3429 = vunpack.c.l.b16 %v632
    %v3430 = vunpack.c.h.b16 %v632
    %v3431 = vunpack.c.l.b16 %v633
    %v3432 = vunpack.c.h.b16 %v633
    %v3433 = vunpack.c.l.b16 %v634
    %v3434 = vunpack.c.h.b16 %v634
    %v3435 = vunpack.c.l.b16 %v635
    %v3436 = vunpack.c.h.b16 %v635
    %v3437 = vunpack.c.l.b16 %v636
    %v3438 = vunpack.c.h.b16 %v636
    %v3439 = vunpack.c.l.b16 %v637
    %v3440 = vunpack.c.h.b16 %v637
    %v3441 = vunpack.c.l.b16 %v638
    %v3442 = vunpack.c.h.b16 %v638
    %v3443 = vunpack.c.l.b16 %v639
    %v3444 = vunpack.c.h.b16 %v639
    %v3445 = vunpack.c.l.b16 %v640
    %v3446 = vunpack.c.h.b16 %v640
    %v3447 = vunpack.c.l.b16 %v641
    %v3448 = vunpack.c.h.b16 %v641
    %v3449 = vunpack.c.l.b16 %v642
    %v3450 = vunpack.c.h.b16 %v642
    %v3451 = vunpack.c.l.b16 %v643
    %v3452 = vunpack.c.h.b16 %v643
    %v3453 = vunpack.c.l.b16 %v644
    %v3454 = vunpack.c.h.b16 %v644
    %v3455 = vunpack.c.l.b16 %v645
    %v3456 = vunpack.c.h.b16 %v645
    %v3457 = vunpack.c.l.b16 %v646
    %v3458 = vunpack.c.h.b16 %v646
    %v3459 = vunpack.c.l.b16 %v647
    %v3460 = vunpack.c.h.b16 %v647
    %v3461 = vunpack.c.l.b16 %v648
    %v3462 = vunpack.c.h.b16 %v648
    %v3463 = vunpack.c.l.b16 %v649
    %v3464 = vunpack.c.h.b16 %v649
    %v3465 = vunpack.c.l.b16 %v650
    %v3466 = vunpack.c.h.b16 %v650
    %v3467 = vunpack.c.l.b16 %v651
    %v3468 = vunpack.c.h.b16 %v651
    %v3469 = vunpack.c.l.b16 %v652
    %v3470 = vunpack.c.h.b16 %v652
    %v3471 = vunpack.c.l.b16 %v653
    %v3472 = vunpack.c.h.b16 %v653
    %v3473 = vunpack.c.l.b16 %v654
    %v3474 = vunpack.c.h.b16 %v654
    %v3475 = vunpack.c.l.b16 %v655
    %v3476 = vunpack.c.h.b16 %v655
    %v3477 = vunpack.c.l.b16 %v656
    %v3478 = vunpack.c.h.b16 %v656
    %v3479 = vunpack.c.l.b16 %v657
    %v3480 = vunpack.c.h.b16 %v657
    %v3481 = vunpack.c.l.b16 %v658
    %v3482 = vunpack.c.h.b16 %v658
    %v3483 = vunpack.c.l.b16 %v659
    %v3484 = vunpack.c.h.b16 %v659
    %v3485 = vunpack.c.l.b16 %v660
    %v3486 = vunpack.c.h.b16 %v660
    %v3487 = vunpack.c.l.b16 %v661
    %v3488 = vunpack.c.h.b16 %v661
    %v3489 = vunpack.c.l.b16 %v662
    %v3490 = vunpack.c.h.b16 %v662
    %v3491 = vunpack.c.l.b16 %v663
    %v3492 = vunpack.c.h.b16 %v663
    %v3493 = vunpack.c.l.b16 %v664
    %v3494 = vunpack.c.h.b16 %v664
    %v3495 = vunpack.c.l.b16 %v665
    %v3496 = vunpack.c.h.b16 %v665
    %v3497 = vunpack.c.l.b16 %v666
    %v3498 = vunpack.c.h.b16 %v666
    %v3499 = vunpack.c.l.b16 %v667
    %v3500 = vunpack.c.h.b16 %v667
    %v3501 = vunpack.c.l.b16 %v668
    %v3502 = vunpack.c.h.b16 %v668
    %v3503 = vunpack.c.l.b16 %v669
    %v3504 = vunpack.c.h.b16 %v669
    %v3505 = vunpack.c.l.b16 %v670
    %v3506 = vunpack.c.h.b16 %v670
    %v3507 = vunpack.c.l.b16 %v671
    %v3508 = vunpack.c.h.b16 %v671
    %v3509 = vunpack.c.l.b16 %v672
    %v3510 = vunpack.c.h.b16 %v672
    %v3511 = vunpack.c.l.b16 %v673
    %v3512 = vunpack.c.h.b16 %v673
    %v3513 = vunpack.c.l.b16 %v674
    %v3514 = vunpack.c.h.b16 %v674
    %v3515 = vunpack.c.l.b16 %v675
    %v3516 = vunpack.c.h.b16 %v675
    %v3517 = vunpack.c.l.b16 %v676
    %v3518 = vunpack.c.h.b16 %v676
    %v3519 = vunpack.c.l.b16 %v677
    %v3520 = vunpack.c.h.b16 %v677
    %v3521 = vunpack.c.l.b16 %v678
    %v3522 = vunpack.c.h.b16 %v678
    %v3523 = vunpack.c.l.b16 %v679
    %v3524 = vunpack.c.h.b16 %v679
    %v3525 = vunpack.c.l.b16 %v680
    %v3526 = vunpack.c.h.b16 %v680
    %v3527 = vunpack.c.l.b16 %v681
    %v3528 = vunpack.c.h.b16 %v681
    %v3529 = vunpack.c.l.b16 %v682
    %v3530 = vunpack.c.h.b16 %v682
    %v3531 = vunpack.c.l.b16 %v683
    %v3532 = vunpack.c.h.b16 %v683
    %v3533 = vunpack.c.l.b16 %v684
    %v3534 = vunpack.c.h.b16 %v684
    %v3535 = vunpack.c.l.b16 %v685
    %v3536 = vunpack.c.h.b16 %v685
    %v3537 = vunpack.c.l.b16 %v686
    %v3538 = vunpack.c.h.b16 %v686
    %v3539 = vunpack.c.l.b16 %v687
    %v3540 = vunpack.c.h.b16 %v687
    %v3541 = vunpack.c.l.b16 %v688
    %v3542 = vunpack.c.h.b16 %v688
    %v3543 = vunpack.c.l.b16 %v689
    %v3544 = vunpack.c.h.b16 %v689
    %v3545 = vunpack.c.l.b16 %v690
    %v3546 = vunpack.c.h.b16 %v690
    %v3547 = vunpack.c.l.b16 %v691
    %v3548 = vunpack.c.h.b16 %v691
    %v3549 = vunpack.c.l.b16 %v692
    %v3550 = vunpack.c.h.b16 %v692
    %v3551 = vunpack.c.l.b16 %v693
    %v3552 = vunpack.c.h.b16 %v693
    %v3553 = vunpack.c.l.b16 %v694
    %v3554 = vunpack.c.h.b16 %v694
    %v3555 = vunpack.c.l.b16 %v695
    %v3556 = vunpack.c.h.b16 %v695
    %v3557 = vunpack.c.l.b16 %v696
    %v3558 = vunpack.c.h.b16 %v696
    %v3559 = vunpack.c.l.b16 %v697
    %v3560 = vunpack.c.h.b16 %v697
    %v3561 = vunpack.c.l.b16 %v698
    %v3562 = vunpack.c.h.b16 %v698
    %v3563 = vunpack.c.l.b16 %v699
    %v3564 = vunpack.c.h.b16 %v699
    %v3565 = vunpack.c.l.b16 %v700
    %v3566 = vunpack.c.h.b16 %v700
    %v3567 = vunpack.c.l.b16 %v701
    %v3568 = vunpack.c.h.b16 %v701
    %v3569 = vunpack.c.l.b16 %v702
    %v3570 = vunpack.c.h.b16 %v702
    %v3571 = vunpack.c.l.b16 %v703
    %v3572 = vunpack.c.h.b16 %v703
    %v3573 = vunpack.c.l.b16 %v704
    %v3574 = vunpack.c.h.b16 %v704
    %v3575 = vunpack.c.l.b16 %v705
    %v3576 = vunpack.c.h.b16 %v705
    %v3577 = vunpack.c.l.b16 %v706
    %v3578 = vunpack.c.h.b16 %v706
    %v3579 = vunpack.c.l.b16 %v707
    %v3580 = vunpack.c.h.b16 %v707
    %v3581 = vunpack.c.l.b16 %v708
    %v3582 = vunpack.c.h.b16 %v708
    %v3583 = vunpack.c.l.b16 %v709
    %v3584 = vunpack.c.h.b16 %v709
    %v3585 = vunpack.c.l.b16 %v710
    %v3586 = vunpack.c.h.b16 %v710
    %v3587 = vunpack.c.l.b16 %v711
    %v3588 = vunpack.c.h.b16 %v711
    %v3589 = vunpack.c.l.b16 %v712
    %v3590 = vunpack.c.h.b16 %v712
    %v3591 = vunpack.c.l.b16 %v713
    %v3592 = vunpack.c.h.b16 %v713
    %v3593 = vunpack.c.l.b16 %v714
    %v3594 = vunpack.c.h.b16 %v714
    %v3595 = vunpack.c.l.b16 %v715
    %v3596 = vunpack.c.h.b16 %v715
    %v3597 = vunpack.c.l.b16 %v716
    %v3598 = vunpack.c.h.b16 %v716
    %v3599 = vunpack.c.l.b16 %v717
    %v3600 = vunpack.c.h.b16 %v717
    %v3601 = vunpack.c.l.b16 %v718
    %v3602 = vunpack.c.h.b16 %v718
    %v3603 = vunpack.c.l.b16 %v719
    %v3604 = vunpack.c.h.b16 %v719
    %v3605 = vunpack.c.l.b16 %v720
    %v3606 = vunpack.c.h.b16 %v720
    %v3607 = vunpack.c.l.b16 %v721
    %v3608 = vunpack.c.h.b16 %v721
    %v3609 = vunpack.c.l.b16 %v722
    %v3610 = vunpack.c.h.b16 %v722
    %v3611 = vunpack.c.l.b16 %v723
    %v3612 = vunpack.c.h.b16 %v723
    %v3613 = vunpack.c.l.b16 %v724
    %v3614 = vunpack.c.h.b16 %v724
    %v3615 = vunpack.c.l.b16 %v725
    %v3616 = vunpack.c.h.b16 %v725
    %v3617 = vunpack.c.l.b16 %v726
    %v3618 = vunpack.c.h.b16 %v726
    %v3619 = vunpack.c.l.b16 %v727
    %v3620 = vunpack.c.h.b16 %v727
    %v3621 = vunpack.c.l.b16 %v728
    %v3622 = vunpack.c.h.b16 %v728
    %v3623 = vunpack.c.l.b16 %v729
    %v3624 = vunpack.c.h.b16 %v729
    %v3625 = vunpack.c.l.b16 %v730
    %v3626 = vunpack.c.h.b16 %v730
    %v3627 = vunpack.c.l.b16 %v731
    %v3628 = vunpack.c.h.b16 %v731
    %v3629 = vunpack.c.l.b16 %v732
    %v3630 = vunpack.c.h.b16 %v732
    %v3631 = vunpack.c.l.b16 %v733
    %v3632 = vunpack.c.h.b16 %v733
    %v3633 = vunpack.c.l.b16 %v734
    %v3634 = vunpack.c.h.b16 %v734
    %v3635 = vunpack.c.l.b16 %v735
    %v3636 = vunpack.c.h.b16 %v735
    %v3637 = vunpack.c.l.b16 %v736
    %v3638 = vunpack.c.h.b16 %v736
    %v3639 = vunpack.c.l.b16 %v737
    %v3640 = vunpack.c.h.b16 %v737
    %v3641 = vunpack.c.l.b16 %v738
    %v3642 = vunpack.c.h.b16 %v738
    %v3643 = vunpack.c.l.b16 %v739
    %v3644 = vunpack.c.h.b16 %v739
    %v3645 = vunpack.c.l.b16 %v740
    %v3646 = vunpack.c.h.b16 %v740
    %v3647 = vunpack.c.l.b16 %v741
    %v3648 = vunpack.c.h.b16 %v741
    %v3649 = vunpack.c.l.b16 %v742
    %v3650 = vunpack.c.h.b16 %v742
    %v3651 = vunpack.c.l.b16 %v743
    %v3652 = vunpack.c.h.b16 %v743
    %v3653 = vunpack.c.l.b16 %v744
    %v3654 = vunpack.c.h.b16 %v744
    %v3655 = vunpack.c.l.b16 %v745
    %v3656 = vunpack.c.h.b16 %v745
    %v3657 = vunpack.c.l.b16 %v746
    %v3658 = vunpack.c.h.b16 %v746
    %v3659 = vunpack.c.l.b16 %v747
    %v3660 = vunpack.c.h.b16 %v747
    %v3661 = vunpack.c.l.b16 %v748
    %v3662 = vunpack.c.h.b16 %v748
    %v3663 = vunpack.c.l.b16 %v749
    %v3664 = vunpack.c.h.b16 %v749
    %v3665 = vunpack.c.l.b16 %v750
    %v3666 = vunpack.c.h.b16 %v750
    %v3667 = vunpack.c.l.b16 %v751
    %v3668 = vunpack.c.h.b16 %v751
    %v3669 = vunpack.c.l.b16 %v752
    %v3670 = vunpack.c.h.b16 %v752
    %v3671 = vunpack.c.l.b16 %v753
    %v3672 = vunpack.c.h.b16 %v753
    %v3673 = vunpack.c.l.b16 %v754
    %v3674 = vunpack.c.h.b16 %v754
    %v3675 = vunpack.c.l.b16 %v755
    %v3676 = vunpack.c.h.b16 %v755
    %v3677 = vunpack.c.l.b16 %v756
    %v3678 = vunpack.c.h.b16 %v756
    %v3679 = vunpack.c.l.b16 %v757
    %v3680 = vunpack.c.h.b16 %v757
    %v3681 = vunpack.c.l.b16 %v758
    %v3682 = vunpack.c.h.b16 %v758
    %v3683 = vunpack.c.l.b16 %v759
    %v3684 = vunpack.c.h.b16 %v759
    %v3685 = vunpack.c.l.b16 %v760
    %v3686 = vunpack.c.h.b16 %v760
    %v3687 = vunpack.c.l.b16 %v761
    %v3688 = vunpack.c.h.b16 %v761
    %v3689 = vunpack.c.l.b16 %v762
    %v3690 = vunpack.c.h.b16 %v762
    %v3691 = vunpack.c.l.b16 %v763
    %v3692 = vunpack.c.h.b16 %v763
    %v3693 = vunpack.c.l.b16 %v764
    %v3694 = vunpack.c.h.b16 %v764
    %v3695 = vunpack.c.l.b16 %v765
    %v3696 = vunpack.c.h.b16 %v765
    %v3697 = vunpack.c.l.b16 %v766
    %v3698 = vunpack.c.h.b16 %v766
    %v3699 = vunpack.c.l.b16 %v767
    %v3700 = vunpack.c.h.b16 %v767
    %v3701 = vunpack.c.l.b16 %v768
    %v3702 = vunpack.c.h.b16 %v768
    %v3703 = vunpack.c.l.b16 %v769
    %v3704 = vunpack.c.h.b16 %v769
    %v3705 = vunpack.c.l.b16 %v770
    %v3706 = vunpack.c.h.b16 %v770
    %v3707 = vunpack.c.l.b16 %v771
    %v3708 = vunpack.c.h.b16 %v771
    %v3709 = vunpack.c.l.b16 %v772
    %v3710 = vunpack.c.h.b16 %v772
    %v3711 = vunpack.c.l.b16 %v773
    %v3712 = vunpack.c.h.b16 %v773
    %v3713 = vunpack.c.l.b16 %v774
    %v3714 = vunpack.c.h.b16 %v774
    %v3715 = vunpack.c.l.b16 %v775
    %v3716 = vunpack.c.h.b16 %v775
    %v3717 = vunpack.c.l.b16 %v776
    %v3718 = vunpack.c.h.b16 %v776
    %v3719 = vunpack.c.l.b16 %v777
    %v3720 = vunpack.c.h.b16 %v777
    %v3721 = vunpack.c.l.b16 %v778
    %v3722 = vunpack.c.h.b16 %v778
    %v3723 = vunpack.c.l.b16 %v779
    %v3724 = vunpack.c.h.b16 %v779
    %v3725 = vunpack.c.l.b16 %v780
    %v3726 = vunpack.c.h.b16 %v780
    %v3727 = vunpack.c.l.b16 %v781
    %v3728 = vunpack.c.h.b16 %v781
    %v3729 = vunpack.c.l.b16 %v782
    %v3730 = vunpack.c.h.b16 %v782
    %v3731 = vunpack.c.l.b16 %v783
    %v3732 = vunpack.c.h.b16 %v783
    %v3733 = vunpack.c.l.b16 %v784
    %v3734 = vunpack.c.h.b16 %v784
    %v3735 = vunpack.c.l.b16 %v785
    %v3736 = vunpack.c.h.b16 %v785
    %v3737 = vunpack.c.l.b16 %v786
    %v3738 = vunpack.c.h.b16 %v786
    %v3739 = vunpack.c.l.b16 %v787
    %v3740 = vunpack.c.h.b16 %v787
    %v3741 = vunpack.c.l.b16 %v788
    %v3742 = vunpack.c.h.b16 %v788
    %v3743 = vunpack.c.l.b16 %v789
    %v3744 = vunpack.c.h.b16 %v789
    %v3745 = vunpack.c.l.b16 %v790
    %v3746 = vunpack.c.h.b16 %v790
    %v3747 = vunpack.c.l.b16 %v791
    %v3748 = vunpack.c.h.b16 %v791
    %v3749 = vunpack.c.l.b16 %v792
    %v3750 = vunpack.c.h.b16 %v792
    %v3751 = vunpack.c.l.b16 %v793
    %v3752 = vunpack.c.h.b16 %v793
    %v3753 = vunpack.c.l.b16 %v794
    %v3754 = vunpack.c.h.b16 %v794
    %v3755 = vunpack.c.l.b16 %v795
    %v3756 = vunpack.c.h.b16 %v795
    %v3757 = vunpack.c.l.b16 %v796
    %v3758 = vunpack.c.h.b16 %v796
    %v3759 = vunpack.c.l.b16 %v797
    %v3760 = vunpack.c.h.b16 %v797
    %v3761 = vunpack.c.l.b16 %v798
    %v3762 = vunpack.c.h.b16 %v798
    %v3763 = vunpack.c.l.b16 %v799
    %v3764 = vunpack.c.h.b16 %v799
    %v3765 = vunpack.c.l.b16 %v800
    %v3766 = vunpack.c.h.b16 %v800
    %v3767 = vunpack.c.l.b16 %v801
    %v3768 = vunpack.c.h.b16 %v801
    %v3769 = vunpack.c.l.b16 %v802
    %v3770 = vunpack.c.h.b16 %v802
    %v3771 = vunpack.c.l.b16 %v803
    %v3772 = vunpack.c.h.b16 %v803
    %v3773 = vunpack.c.l.b16 %v804
    %v3774 = vunpack.c.h.b16 %v804
    %v3775 = vunpack.c.l.b16 %v805
    %v3776 = vunpack.c.h.b16 %v805
    %v3777 = vunpack.c.l.b16 %v806
    %v3778 = vunpack.c.h.b16 %v806
    %v3779 = vunpack.c.l.b16 %v807
    %v3780 = vunpack.c.h.b16 %v807
    %v3781 = vunpack.c.l.b16 %v808
    %v3782 = vunpack.c.h.b16 %v808
    %v3783 = vunpack.c.l.b16 %v809
    %v3784 = vunpack.c.h.b16 %v809
    %v3785 = vunpack.c.l.b16 %v810
    %v3786 = vunpack.c.h.b16 %v810
    %v3787 = vunpack.c.l.b16 %v811
    %v3788 = vunpack.c.h.b16 %v811
    %v3789 = vunpack.c.l.b16 %v812
    %v3790 = vunpack.c.h.b16 %v812
    %v3791 = vunpack.c.l.b16 %v813
    %v3792 = vunpack.c.h.b16 %v813
    %v3793 = vunpack.c.l.b16 %v814
    %v3794 = vunpack.c.h.b16 %v814
    %v3795 = vunpack.c.l.b16 %v815
    %v3796 = vunpack.c.h.b16 %v815
    %v3797 = vunpack.c.l.b16 %v816
    %v3798 = vunpack.c.h.b16 %v816
    %v3799 = vunpack.c.l.b16 %v817
    %v3800 = vunpack.c.h.b16 %v817
    %v3801 = vunpack.c.l.b16 %v818
    %v3802 = vunpack.c.h.b16 %v818
    %v3803 = vunpack.c.l.b16 %v819
    %v3804 = vunpack.c.h.b16 %v819
    %v3805 = vunpack.c.l.b16 %v820
    %v3806 = vunpack.c.h.b16 %v820
    %v3807 = vunpack.c.l.b16 %v821
    %v3808 = vunpack.c.h.b16 %v821
    %v3809 = vunpack.c.l.b16 %v822
    %v3810 = vunpack.c.h.b16 %v822
    %v3811 = vunpack.c.l.b16 %v823
    %v3812 = vunpack.c.h.b16 %v823
    %v3813 = vunpack.c.l.b16 %v824
    %v3814 = vunpack.c.h.b16 %v824
    %v3815 = vunpack.c.l.b16 %v825
    %v3816 = vunpack.c.h.b16 %v825
    %v3817 = vunpack.c.l.b16 %v826
    %v3818 = vunpack.c.h.b16 %v826
    %v3819 = vunpack.c.l.b16 %v827
    %v3820 = vunpack.c.h.b16 %v827
    %v3821 = vunpack.c.l.b16 %v828
    %v3822 = vunpack.c.h.b16 %v828
    %v3823 = vunpack.c.l.b16 %v829
    %v3824 = vunpack.c.h.b16 %v829
    %v3825 = vunpack.c.l.b16 %v830
    %v3826 = vunpack.c.h.b16 %v830
    %v3827 = vunpack.c.l.b16 %v831
    %v3828 = vunpack.c.h.b16 %v831
    %v3829 = vunpack.c.l.b16 %v832
    %v3830 = vunpack.c.h.b16 %v832
    %v3831 = vunpack.c.l.b16 %v833
    %v3832 = vunpack.c.h.b16 %v833
    %v3833 = vunpack.c.l.b16 %v834
    %v3834 = vunpack.c.h.b16 %v834
    %v3835 = vunpack.c.l.b16 %v835
    %v3836 = vunpack.c.h.b16 %v835
    %v3837 = vunpack.c.l.b16 %v836
    %v3838 = vunpack.c.h.b16 %v836
    %v3839 = vunpack.c.l.b16 %v837
    %v3840 = vunpack.c.h.b16 %v837
    %v3841 = vunpack.c.l.b16 %v838
    %v3842 = vunpack.c.h.b16 %v838
    %v3843 = vunpack.c.l.b16 %v839
    %v3844 = vunpack.c.h.b16 %v839
    %v3845 = vunpack.c.l.b16 %v840
    %v3846 = vunpack.c.h.b16 %v840
    %v3847 = vunpack.c.l.b16 %v841
    %v3848 = vunpack.c.h.b16 %v841
    %v3849 = vunpack.c.l.b16 %v842
    %v3850 = vunpack.c.h.b16 %v842
    %v3851 = vunpack.c.l.b16 %v843
    %v3852 = vunpack.c.h.b16 %v843
    %v3853 = vunpack.c.l.b16 %v844
    %v3854 = vunpack.c.h.b16 %v844
    %v3855 = vunpack.c.l.b16 %v845
    %v3856 = vunpack.c.h.b16 %v845
    %v3857 = vunpack.c.l.b16 %v846
    %v3858 = vunpack.c.h.b16 %v846
    %v3859 = vunpack.c.l.b16 %v847
    %v3860 = vunpack.c.h.b16 %v847
    %v3861 = vunpack.c.l.b16 %v848
    %v3862 = vunpack.c.h.b16 %v848
    %v3863 = vunpack.c.l.b16 %v849
    %v3864 = vunpack.c.h.b16 %v849
    %v3865 = vunpack.c.l.b16 %v850
    %v3866 = vunpack.c.h.b16 %v850
    %v3867 = vunpack.c.l.b16 %v851
    %v3868 = vunpack.c.h.b16 %v851
    %v3869 = vunpack.c.l.b16 %v852
    %v3870 = vunpack.c.h.b16 %v852
    %v3871 = vunpack.c.l.b16 %v853
    %v3872 = vunpack.c.h.b16 %v853
    %v3873 = vunpack.c.l.b16 %v854
    %v3874 = vunpack.c.h.b16 %v854
    %v3875 = vunpack.c.l.b16 %v855
    %v3876 = vunpack.c.h.b16 %v855
    %v3877 = vunpack.c.l.b16 %v856
    %v3878 = vunpack.c.h.b16 %v856
    %v3879 = vunpack.c.l.b16 %v857
    %v3880 = vunpack.c.h.b16 %v857
    %v3881 = vunpack.c.l.b16 %v858
    %v3882 = vunpack.c.h.b16 %v858
    %v3883 = vunpack.c.l.b16 %v859
    %v3884 = vunpack.c.h.b16 %v859
    %v3885 = vunpack.c.l.b16 %v860
    %v3886 = vunpack.c.h.b16 %v860
    %v3887 = vunpack.c.l.b16 %v861
    %v3888 = vunpack.c.h.b16 %v861
    %v3889 = vunpack.c.l.b16 %v862
    %v3890 = vunpack.c.h.b16 %v862
    %v3891 = vunpack.c.l.b16 %v863
    %v3892 = vunpack.c.h.b16 %v863
    %v3893 = vunpack.c.l.b16 %v864
    %v3894 = vunpack.c.h.b16 %v864
    %v3895 = vunpack.c.l.b16 %v865
    %v3896 = vunpack.c.h.b16 %v865
    %v3897 = vunpack.c.l.b16 %v866
    %v3898 = vunpack.c.h.b16 %v866
    %v3899 = vunpack.c.l.b16 %v867
    %v3900 = vunpack.c.h.b16 %v867
    %v3901 = vunpack.c.l.b16 %v868
    %v3902 = vunpack.c.h.b16 %v868
    %v3903 = vunpack.c.l.b16 %v869
    %v3904 = vunpack.c.h.b16 %v869
    %v3905 = vunpack.c.l.b16 %v870
    %v3906 = vunpack.c.h.b16 %v870
    %v3907 = vunpack.c.l.b16 %v871
    %v3908 = vunpack.c.h.b16 %v871
    %v3909 = vunpack.c.l.b16 %v872
    %v3910 = vunpack.c.h.b16 %v872
    %v3911 = vunpack.c.l.b16 %v873
    %v3912 = vunpack.c.h.b16 %v873
    %v3913 = vunpack.c.l.b16 %v874
    %v3914 = vunpack.c.h.b16 %v874
    %v3915 = vunpack.c.l.b16 %v875
    %v3916 = vunpack.c.h.b16 %v875
    %v3917 = vunpack.c.l.b16 %v876
    %v3918 = vunpack.c.h.b16 %v876
    %v3919 = vunpack.c.l.b16 %v877
    %v3920 = vunpack.c.h.b16 %v877
    %v3921 = vunpack.c.l.b16 %v878
    %v3922 = vunpack.c.h.b16 %v878
    %v3923 = vunpack.c.l.b16 %v879
    %v3924 = vunpack.c.h.b16 %v879
    %v3925 = vunpack.c.l.b16 %v880
    %v3926 = vunpack.c.h.b16 %v880
    %v3927 = vunpack.c.l.b16 %v881
    %v3928 = vunpack.c.h.b16 %v881
    %v3929 = vunpack.c.l.b16 %v882
    %v3930 = vunpack.c.h.b16 %v882
    %v3931 = vunpack.c.l.b16 %v883
    %v3932 = vunpack.c.h.b16 %v883
    %v3933 = vunpack.c.l.b16 %v884
    %v3934 = vunpack.c.h.b16 %v884
    %v3935 = vunpack.c.l.b16 %v885
    %v3936 = vunpack.c.h.b16 %v885
    %v3937 = vunpack.c.l.b16 %v886
    %v3938 = vunpack.c.h.b16 %v886
    %v3939 = vunpack.c.l.b16 %v887
    %v3940 = vunpack.c.h.b16 %v887
    %v3941 = vunpack.c.l.b16 %v888
    %v3942 = vunpack.c.h.b16 %v888
    %v3943 = vunpack.c.l.b16 %v889
    %v3944 = vunpack.c.h.b16 %v889
    %v3945 = vunpack.c.l.b16 %v890
    %v3946 = vunpack.c.h.b16 %v890
    %v3947 = vunpack.c.l.b16 %v891
    %v3948 = vunpack.c.h.b16 %v891
    %v3949 = vunpack.c.l.b16 %v892
    %v3950 = vunpack.c.h.b16 %v892
    %v3951 = vunpack.c.l.b16 %v893
    %v3952 = vunpack.c.h.b16 %v893
    %v3953 = vunpack.c.l.b16 %v894
    %v3954 = vunpack.c.h.b16 %v894
    %v3955 = vunpack.c.l.b16 %v895
    %v3956 = vunpack.c.h.b16 %v895
    %v3957 = vunpack.c.l.b16 %v896
    %v3958 = vunpack.c.h.b16 %v896
    %v3959 = vunpack.c.l.b16 %v897
    %v3960 = vunpack.c.h.b16 %v897
    %v3961 = vunpack.c.l.b16 %v898
    %v3962 = vunpack.c.h.b16 %v898
    %v3963 = vunpack.c.l.b16 %v899
    %v3964 = vunpack.c.h.b16 %v899
    %v3965 = vunpack.c.l.b16 %v900
    %v3966 = vunpack.c.h.b16 %v900
    %v3967 = vunpack.c.l.b16 %v901
    %v3968 = vunpack.c.h.b16 %v901
    %v3969 = vunpack.c.l.b16 %v902
    %v3970 = vunpack.c.h.b16 %v902
    %v3971 = vunpack.c.l.b16 %v903
    %v3972 = vunpack.c.h.b16 %v903
    %v3973 = vunpack.c.l.b16 %v904
    %v3974 = vunpack.c.h.b16 %v904
    %v3975 = vunpack.c.l.b16 %v905
    %v3976 = vunpack.c.h.b16 %v905
    %v3977 = vunpack.c.l.b16 %v906
    %v3978 = vunpack.c.h.b16 %v906
    %v3979 = vunpack.c.l.b16 %v907
    %v3980 = vunpack.c.h.b16 %v907
    %v3981 = vunpack.c.l.b16 %v908
    %v3982 = vunpack.c.h.b16 %v908
    %v3983 = vunpack.c.l.b16 %v909
    %v3984 = vunpack.c.h.b16 %v909
    %v3985 = vunpack.c.l.b16 %v910
    %v3986 = vunpack.c.h.b16 %v910
    %v3987 = vunpack.c.l.b16 %v911
    %v3988 = vunpack.c.h.b16 %v911
    %v3989 = vunpack.c.l.b16 %v912
    %v3990 = vunpack.c.h.b16 %v912
    %v3991 = vunpack.c.l.b16 %v913
    %v3992 = vunpack.c.h.b16 %v913
    %v3993 = vunpack.c.l.b16 %v914
    %v3994 = vunpack.c.h.b16 %v914
    %v3995 = vunpack.c.l.b16 %v915
    %v3996 = vunpack.c.h.b16 %v915
    %v3997 = vunpack.c.l.b16 %v916
    %v3998 = vunpack.c.h.b16 %v916
    %v3999 = vunpack.c.l.b16 %v917
    %v4000 = vunpack.c.h.b16 %v917
    %v4001 = vunpack.c.l.b16 %v918
    %v4002 = vunpack.c.h.b16 %v918
    %v4003 = vunpack.c.l.b16 %v919
    %v4004 = vunpack.c.h.b16 %v919
    %v4005 = vunpack.c.l.b16 %v920
    %v4006 = vunpack.c.h.b16 %v920
    %v4007 = vunpack.c.l.b16 %v921
    %v4008 = vunpack.c.h.b16 %v921
    %v4009 = vunpack.c.l.b16 %v922
    %v4010 = vunpack.c.h.b16 %v922
    %v4011 = vunpack.c.l.b16 %v923
    %v4012 = vunpack.c.h.b16 %v923
    %v4013 = vunpack.c.l.b16 %v924
    %v4014 = vunpack.c.h.b16 %v924
    %v4015 = vunpack.c.l.b16 %v925
    %v4016 = vunpack.c.h.b16 %v925
    %v4017 = vunpack.c.l.b16 %v926
    %v4018 = vunpack.c.h.b16 %v926
    %v4019 = vunpack.c.l.b16 %v927
    %v4020 = vunpack.c.h.b16 %v927
    %v4021 = vunpack.c.l.b16 %v928
    %v4022 = vunpack.c.h.b16 %v928
    %v4023 = vunpack.c.l.b16 %v929
    %v4024 = vunpack.c.h.b16 %v929
    %v4025 = vunpack.c.l.b16 %v930
    %v4026 = vunpack.c.h.b16 %v930
    %v4027 = vunpack.c.l.b16 %v931
    %v4028 = vunpack.c.h.b16 %v931
    %v4029 = vunpack.c.l.b16 %v932
    %v4030 = vunpack.c.h.b16 %v932
    %v4031 = vunpack.c.l.b16 %v933
    %v4032 = vunpack.c.h.b16 %v933
    %v4033 = vunpack.c.l.b16 %v934
    %v4034 = vunpack.c.h.b16 %v934
    %v4035 = vunpack.c.l.b16 %v935
    %v4036 = vunpack.c.h.b16 %v935
    %v4037 = vunpack.c.l.b16 %v936
    %v4038 = vunpack.c.h.b16 %v936
    %v4039 = vunpack.c.l.b16 %v937
    %v4040 = vunpack.c.h.b16 %v937
    %v4041 = vunpack.c.l.b16 %v938
    %v4042 = vunpack.c.h.b16 %v938
    %v4043 = vunpack.c.l.b16 %v939
    %v4044 = vunpack.c.h.b16 %v939
    %v4045 = vunpack.c.l.b16 %v940
    %v4046 = vunpack.c.h.b16 %v940
    %v4047 = vunpack.c.l.b16 %v941
    %v4048 = vunpack.c.h.b16 %v941
    %v4049 = vunpack.c.l.b16 %v942
    %v4050 = vunpack.c.h.b16 %v942
    %v4051 = vunpack.c.l.b16 %v943
    %v4052 = vunpack.c.h.b16 %v943
    %v4053 = vunpack.c.l.b16 %v944
    %v4054 = vunpack.c.h.b16 %v944
    %v4055 = vunpack.c.l.b16 %v945
    %v4056 = vunpack.c.h.b16 %v945
    %v4057 = vunpack.c.l.b16 %v946
    %v4058 = vunpack.c.h.b16 %v946
    %v4059 = vunpack.c.l.b16 %v947
    %v4060 = vunpack.c.h.b16 %v947
    %v4061 = vunpack.c.l.b16 %v948
    %v4062 = vunpack.c.h.b16 %v948
    %v4063 = vunpack.c.l.b16 %v949
    %v4064 = vunpack.c.h.b16 %v949
    %v4065 = vunpack.c.l.b16 %v950
    %v4066 = vunpack.c.h.b16 %v950
    %v4067 = vunpack.c.l.b16 %v951
    %v4068 = vunpack.c.h.b16 %v951
    %v4069 = vunpack.c.l.b16 %v952
    %v4070 = vunpack.c.h.b16 %v952
    %v4071 = vunpack.c.l.b16 %v953
    %v4072 = vunpack.c.h.b16 %v953
    %v4073 = vunpack.c.l.b16 %v954
    %v4074 = vunpack.c.h.b16 %v954
    %v4075 = vunpack.c.l.b16 %v955
    %v4076 = vunpack.c.h.b16 %v955
    %v4077 = vunpack.c.l.b16 %v956
    %v4078 = vunpack.c.h.b16 %v956
    %v4079 = vunpack.c.l.b16 %v957
    %v4080 = vunpack.c.h.b16 %v957
    %v4081 = vunpack.c.l.b16 %v958
    %v4082 = vunpack.c.h.b16 %v958
    %v4083 = vunpack.c.l.b16 %v959
    %v4084 = vunpack.c.h.b16 %v959
    %v4085 = vunpack.c.l.b16 %v960
    %v4086 = vunpack.c.h.b16 %v960
    %v4087 = vunpack.c.l.b16 %v961
    %v4088 = vunpack.c.h.b16 %v961
    %v4089 = vunpack.c.l.b16 %v962
    %v4090 = vunpack.c.h.b16 %v962
    %v4091 = vunpack.c.l.b16 %v963
    %v4092 = vunpack.c.h.b16 %v963
    %v4093 = vunpack.c.l.b16 %v964
    %v4094 = vunpack.c.h.b16 %v964
    %v4095 = vunpack.c.l.b16 %v965
    %v4096 = vunpack.c.h.b16 %v965
    %v4097 = vunpack.c.l.b16 %v966
    %v4098 = vunpack.c.h.b16 %v966
    %v4099 = vunpack.c.l.b16 %v967
    %v4100 = vunpack.c.h.b16 %v967
    %v4101 = vunpack.c.l.b16 %v968
    %v4102 = vunpack.c.h.b16 %v968
    %v4103 = vunpack.c.l.b16 %v969
    %v4104 = vunpack.c.h.b16 %v969
    %v4105 = vunpack.c.l.b16 %v970
    %v4106 = vunpack.c.h.b16 %v970
    %v4107 = vunpack.c.l.b16 %v971
    %v4108 = vunpack.c.h.b16 %v971
    %v4109 = vunpack.c.l.b16 %v972
    %v4110 = vunpack.c.h.b16 %v972
    %v4111 = vunpack.c.l.b16 %v973
    %v4112 = vunpack.c.h.b16 %v973
    %v4113 = vunpack.c.l.b16 %v974
    %v4114 = vunpack.c.h.b16 %v974
    %v4115 = vunpack.c.l.b16 %v975
    %v4116 = vunpack.c.h.b16 %v975
    %v4117 = vunpack.c.l.b16 %v976
    %v4118 = vunpack.c.h.b16 %v976
    %v4119 = vunpack.c.l.b16 %v977
    %v4120 = vunpack.c.h.b16 %v977
    %v4121 = vunpack.c.l.b16 %v978
    %v4122 = vunpack.c.h.b16 %v978
    %v4123 = vunpack.c.l.b16 %v979
    %v4124 = vunpack.c.h.b16 %v979
    %v4125 = vunpack.c.l.b16 %v980
    %v4126 = vunpack.c.h.b16 %v980
    %v4127 = vunpack.c.l.b16 %v981
    %v4128 = vunpack.c.h.b16 %v981
    %v4129 = vunpack.c.l.b16 %v982
    %v4130 = vunpack.c.h.b16 %v982
    %v4131 = vunpack.c.l.b16 %v983
    %v4132 = vunpack.c.h.b16 %v983
    %v4133 = vunpack.c.l.b16 %v984
    %v4134 = vunpack.c.h.b16 %v984
    %v4135 = vunpack.c.l.b16 %v985
    %v4136 = vunpack.c.h.b16 %v985
    %v4137 = vunpack.c.l.b16 %v986
    %v4138 = vunpack.c.h.b16 %v986
    %v4139 = vunpack.c.l.b16 %v987
    %v4140 = vunpack.c.h.b16 %v987
    %v4141 = vunpack.c.l.b16 %v988
    %v4142 = vunpack.c.h.b16 %v988
    %v4143 = vunpack.c.l.b16 %v989
    %v4144 = vunpack.c.h.b16 %v989
    %v4145 = vunpack.c.l.b16 %v990
    %v4146 = vunpack.c.h.b16 %v990
    %v4147 = vunpack.c.l.b16 %v991
    %v4148 = vunpack.c.h.b16 %v991
    %v4149 = vunpack.c.l.b16 %v992
    %v4150 = vunpack.c.h.b16 %v992
    %v4151 = vunpack.c.l.b16 %v993
    %v4152 = vunpack.c.h.b16 %v993
    %v4153 = vunpack.c.l.b16 %v994
    %v4154 = vunpack.c.h.b16 %v994
    %v4155 = vunpack.c.l.b16 %v995
    %v4156 = vunpack.c.h.b16 %v995
    %v4157 = vunpack.c.l.b16 %v996
    %v4158 = vunpack.c.h.b16 %v996
    %v4159 = vunpack.c.l.b16 %v997
    %v4160 = vunpack.c.h.b16 %v997
    %v4161 = vunpack.c.l.b16 %v998
    %v4162 = vunpack.c.h.b16 %v998
    %v4163 = vunpack.c.l.b16 %v999
    %v4164 = vunpack.c.h.b16 %v999
    %v4165 = vunpack.c.l.b16 %v1000
    %v4166 = vunpack.c.h.b16 %v1000
    %v4167 = vunpack.c.l.b16 %v1001
    %v4168 = vunpack.c.h.b16 %v1001
    %v4169 = vunpack.c.l.b16 %v1002
    %v4170 = vunpack.c.h.b16 %v1002
    %v4171 = vunpack.c.l.b16 %v1003
    %v4172 = vunpack.c.h.b16 %v1003
    %v4173 = vunpack.c.l.b16 %v1004
    %v4174 = vunpack.c.h.b16 %v1004
    %v4175 = vunpack.c.l.b16 %v1005
    %v4176 = vunpack.c.h.b16 %v1005
    %v4177 = vunpack.c.l.b16 %v1006
    %v4178 = vunpack.c.h.b16 %v1006
    %v4179 = vunpack.c.l.b16 %v1007
    %v4180 = vunpack.c.h.b16 %v1007
    %v4181 = vunpack.c.l.b16 %v1008
    %v4182 = vunpack.c.h.b16 %v1008
    %v4183 = vunpack.c.l.b16 %v1009
    %v4184 = vunpack.c.h.b16 %v1009
    %v4185 = vunpack.c.l.b16 %v1010
    %v4186 = vunpack.c.h.b16 %v1010
    %v4187 = vunpack.c.l.b16 %v1011
    %v4188 = vunpack.c.h.b16 %v1011
    %v4189 = vunpack.c.l.b16 %v1012
    %v4190 = vunpack.c.h.b16 %v1012
    %v4191 = vunpack.c.l.b16 %v1013
    %v4192 = vunpack.c.h.b16 %v1013
    %v4193 = vunpack.c.l.b16 %v1014
    %v4194 = vunpack.c.h.b16 %v1014
    %v4195 = vunpack.c.l.b16 %v1015
    %v4196 = vunpack.c.h.b16 %v1015
    %v4197 = vunpack.c.l.b16 %v1016
    %v4198 = vunpack.c.h.b16 %v1016
    %v4199 = vunpack.c.l.b16 %v1017
    %v4200 = vunpack.c.h.b16 %v1017
    %v4201 = vunpack.c.l.b16 %v1018
    %v4202 = vunpack.c.h.b16 %v1018
    %v4203 = vunpack.c.l.b16 %v1019
    %v4204 = vunpack.c.h.b16 %v1019
    %v4205 = vunpack.c.l.b16 %v1020
    %v4206 = vunpack.c.h.b16 %v1020
    %v4207 = vunpack.c.l.b16 %v1021
    %v4208 = vunpack.c.h.b16 %v1021
    %v4209 = vunpack.c.l.b16 %v1022
    %v4210 = vunpack.c.h.b16 %v1022
    %v4211 = vunpack.c.l.b16 %v1023
    %v4212 = vunpack.c.h.b16 %v1023
    %v4213 = vunpack.c.l.b16 %v1024
    %v4214 = vunpack.c.h.b16 %v1024
    %v4215 = vunpack.c.l.b16 %v1025
    %v4216 = vunpack.c.h.b16 %v1025
    %v4217 = vunpack.c.l.b16 %v1026
    %v4218 = vunpack.c.h.b16 %v1026
    %v4219 = vunpack.c.l.b16 %v1027
    %v4220 = vunpack.c.h.b16 %v1027
    %v4221 = vunpack.c.l.b16 %v1028
    %v4222 = vunpack.c.h.b16 %v1028
    %v4223 = vunpack.c.l.b16 %v1029
    %v4224 = vunpack.c.h.b16 %v1029
    %v4225 = vunpack.c.l.b16 %v1030
    %v4226 = vunpack.c.h.b16 %v1030
    %v4227 = vunpack.c.l.b16 %v1031
    %v4228 = vunpack.c.h.b16 %v1031
    %v4229 = vunpack.c.l.b16 %v1032
    %v4230 = vunpack.c.h.b16 %v1032
    %v4231 = vunpack.c.l.b16 %v1033
    %v4232 = vunpack.c.h.b16 %v1033
    %v4233 = vunpack.c.l.b16 %v1034
    %v4234 = vunpack.c.h.b16 %v1034
    %v4235 = vunpack.c.l.b16 %v1035
    %v4236 = vunpack.c.h.b16 %v1035
    %v4237 = vunpack.c.l.b16 %v1036
    %v4238 = vunpack.c.h.b16 %v1036
    %v4239 = vunpack.c.l.b16 %v1037
    %v4240 = vunpack.c.h.b16 %v1037
    %v4241 = vunpack.c.l.b16 %v1038
    %v4242 = vunpack.c.h.b16 %v1038
    %v4243 = vunpack.c.l.b16 %v1039
    %v4244 = vunpack.c.h.b16 %v1039
    %v4245 = vunpack.c.l.b16 %v1040
    %v4246 = vunpack.c.h.b16 %v1040
    %v4247 = vunpack.c.l.b16 %v1041
    %v4248 = vunpack.c.h.b16 %v1041
    %v4249 = vunpack.c.l.b16 %v1042
    %v4250 = vunpack.c.h.b16 %v1042
    %v4251 = vunpack.c.l.b16 %v1043
    %v4252 = vunpack.c.h.b16 %v1043
    %v4253 = vunpack.c.l.b16 %v1044
    %v4254 = vunpack.c.h.b16 %v1044
    %v4255 = vunpack.c.l.b16 %v1045
    %v4256 = vunpack.c.h.b16 %v1045
    %v4257 = vunpack.c.l.b16 %v1046
    %v4258 = vunpack.c.h.b16 %v1046
    %v4259 = vunpack.c.l.b16 %v1047
    %v4260 = vunpack.c.h.b16 %v1047
    %v4261 = vunpack.c.l.b16 %v1048
    %v4262 = vunpack.c.h.b16 %v1048
    %v4263 = vunpack.c.l.b16 %v1049
    %v4264 = vunpack.c.h.b16 %v1049
    %v4265 = vunpack.c.l.b16 %v1050
    %v4266 = vunpack.c.h.b16 %v1050
    %v4267 = vunpack.c.l.b16 %v1051
    %v4268 = vunpack.c.h.b16 %v1051
    %v4269 = vunpack.c.l.b16 %v1052
    %v4270 = vunpack.c.h.b16 %v1052
    %v4271 = vunpack.c.l.b16 %v1053
    %v4272 = vunpack.c.h.b16 %v1053
    %v4273 = vunpack.c.l.b16 %v1054
    %v4274 = vunpack.c.h.b16 %v1054
    %v4275 = vunpack.c.l.b16 %v1055
    %v4276 = vunpack.c.h.b16 %v1055
    %v4277 = vunpack.c.l.b16 %v1056
    %v4278 = vunpack.c.h.b16 %v1056
    %v4279 = vunpack.c.l.b16 %v1057
    %v4280 = vunpack.c.h.b16 %v1057
    %v4281 = vunpack.c.l.b16 %v1058
    %v4282 = vunpack.c.h.b16 %v1058
    %v4283 = vunpack.c.l.b16 %v1059
    %v4284 = vunpack.c.h.b16 %v1059
    %v4285 = vunpack.c.l.b16 %v1060
    %v4286 = vunpack.c.h.b16 %v1060
    %v4287 = vunpack.c.l.b16 %v1061
    %v4288 = vunpack.c.h.b16 %v1061
    %v4289 = vunpack.c.l.b16 %v1062
    %v4290 = vunpack.c.h.b16 %v1062
    %v4291 = vunpack.c.l.b16 %v1063
    %v4292 = vunpack.c.h.b16 %v1063
    %v4293 = vunpack.c.l.b16 %v1064
    %v4294 = vunpack.c.h.b16 %v1064
    %v4295 = vunpack.c.l.b16 %v1065
    %v4296 = vunpack.c.h.b16 %v1065
    %v4297 = vunpack.c.l.b16 %v1066
    %v4298 = vunpack.c.h.b16 %v1066
    %v4299 = vunpack.c.l.b16 %v1067
    %v4300 = vunpack.c.h.b16 %v1067
    %v4301 = vunpack.c.l.b16 %v1068
    %v4302 = vunpack.c.h.b16 %v1068
    %v4303 = vunpack.c.l.b16 %v1069
    %v4304 = vunpack.c.h.b16 %v1069
    %v4305 = vunpack.c.l.b16 %v1070
    %v4306 = vunpack.c.h.b16 %v1070
    %v4307 = vunpack.c.l.b16 %v1071
    %v4308 = vunpack.c.h.b16 %v1071
    %v4309 = vunpack.c.l.b16 %v1072
    %v4310 = vunpack.c.h.b16 %v1072
    %v4311 = vunpack.c.l.b16 %v1073
    %v4312 = vunpack.c.h.b16 %v1073
    %v4313 = vunpack.c.l.b16 %v1074
    %v4314 = vunpack.c.h.b16 %v1074
    %v4315 = vunpack.c.l.b16 %v1075
    %v4316 = vunpack.c.h.b16 %v1075
    %v4317 = vunpack.c.l.b16 %v1076
    %v4318 = vunpack.c.h.b16 %v1076
    %v4319 = vunpack.c.l.b16 %v1077
    %v4320 = vunpack.c.h.b16 %v1077
    %v4321 = vunpack.c.l.b16 %v1078
    %v4322 = vunpack.c.h.b16 %v1078
    %v4323 = vunpack.c.l.b16 %v1079
    %v4324 = vunpack.c.h.b16 %v1079
    %v4325 = vunpack.c.l.b16 %v1080
    %v4326 = vunpack.c.h.b16 %v1080
    %v4327 = vunpack.c.l.b16 %v1081
    %v4328 = vunpack.c.h.b16 %v1081
    %v4329 = vunpack.c.l.b16 %v1082
    %v4330 = vunpack.c.h.b16 %v1082
    %v4331 = vunpack.c.l.b16 %v1083
    %v4332 = vunpack.c.h.b16 %v1083
    %v4333 = vunpack.c.l.b16 %v1084
    %v4334 = vunpack.c.h.b16 %v1084
    %v4335 = vunpack.c.l.b16 %v1085
    %v4336 = vunpack.c.h.b16 %v1085
    %v4337 = vunpack.c.l.b16 %v1086
    %v4338 = vunpack.c.h.b16 %v1086
    %v4339 = vunpack.c.l.b16 %v1087
    %v4340 = vunpack.c.h.b16 %v1087
    %v4341 = vunpack.c.l.b16 %v1088
    %v4342 = vunpack.c.h.b16 %v1088
    %v4343 = vunpack.c.l.b16 %v1089
    %v4344 = vunpack.c.h.b16 %v1089
    %v4345 = vunpack.c.l.b16 %v1090
    %v4346 = vunpack.c.h.b16 %v1090
    %v4347 = vunpack.c.l.b16 %v1091
    %v4348 = vunpack.c.h.b16 %v1091
    %v4349 = vunpack.c.l.b16 %v1092
    %v4350 = vunpack.c.h.b16 %v1092
    %v4351 = vunpack.c.l.b16 %v1093
    %v4352 = vunpack.c.h.b16 %v1093
    %v4353 = vunpack.c.l.b16 %v1094
    %v4354 = vunpack.c.h.b16 %v1094
    %v4355 = vunpack.c.l.b16 %v1095
    %v4356 = vunpack.c.h.b16 %v1095
    %v4357 = vunpack.c.l.b16 %v1096
    %v4358 = vunpack.c.h.b16 %v1096
    %v4359 = vunpack.c.l.b16 %v1097
    %v4360 = vunpack.c.h.b16 %v1097
    %v4361 = vunpack.c.l.b16 %v1098
    %v4362 = vunpack.c.h.b16 %v1098
    %v4363 = vunpack.c.l.b16 %v1099
    %v4364 = vunpack.c.h.b16 %v1099
    %v4365 = vunpack.c.l.b16 %v1100
    %v4366 = vunpack.c.h.b16 %v1100
    %v4367 = vunpack.c.l.b16 %v1101
    %v4368 = vunpack.c.h.b16 %v1101
    %v4369 = vunpack.c.l.b16 %v1102
    %v4370 = vunpack.c.h.b16 %v1102
    %v4371 = vunpack.c.l.b16 %v1103
    %v4372 = vunpack.c.h.b16 %v1103
    %v4373 = vunpack.c.l.b16 %v1104
    %v4374 = vunpack.c.h.b16 %v1104
    %v4375 = vunpack.c.l.b16 %v1105
    %v4376 = vunpack.c.h.b16 %v1105
    %v4377 = vunpack.c.l.b16 %v1106
    %v4378 = vunpack.c.h.b16 %v1106
    %v4379 = vunpack.c.l.b16 %v1107
    %v4380 = vunpack.c.h.b16 %v1107
    %v4381 = vunpack.c.l.b16 %v1108
    %v4382 = vunpack.c.h.b16 %v1108
    %v4383 = vunpack.c.l.b16 %v1109
    %v4384 = vunpack.c.h.b16 %v1109
    %v4385 = vunpack.c.l.b16 %v1110
    %v4386 = vunpack.c.h.b16 %v1110
    %v4387 = vunpack.c.l.b16 %v1111
    %v4388 = vunpack.c.h.b16 %v1111
    %v4389 = vunpack.c.l.b16 %v1112
    %v4390 = vunpack.c.h.b16 %v1112
    %v4391 = vunpack.c.l.b16 %v1113
    %v4392 = vunpack.c.h.b16 %v1113
    %v4393 = vunpack.c.l.b16 %v1114
    %v4394 = vunpack.c.h.b16 %v1114
    %v4395 = vunpack.c.l.b16 %v1115
    %v4396 = vunpack.c.h.b16 %v1115
    %v4397 = vunpack.c.l.b16 %v1116
    %v4398 = vunpack.c.h.b16 %v1116
    %v4399 = vunpack.c.l.b16 %v1117
    %v4400 = vunpack.c.h.b16 %v1117
    %v4401 = vunpack.c.l.b16 %v1118
    %v4402 = vunpack.c.h.b16 %v1118
    %v4403 = vunpack.c.l.b16 %v1119
    %v4404 = vunpack.c.h.b16 %v1119
    %v4405 = vunpack.c.l.b16 %v1120
    %v4406 = vunpack.c.h.b16 %v1120
    %v4407 = vunpack.c.l.b16 %v1121
    %v4408 = vunpack.c.h.b16 %v1121
    %v4409 = vunpack.c.l.b16 %v1122
    %v4410 = vunpack.c.h.b16 %v1122
    %v4411 = vunpack.c.l.b16 %v1123
    %v4412 = vunpack.c.h.b16 %v1123
    %v4413 = vunpack.c.l.b16 %v1124
    %v4414 = vunpack.c.h.b16 %v1124
    %v4415 = vunpack.c.l.b16 %v1125
    %v4416 = vunpack.c.h.b16 %v1125
    %v4417 = vunpack.c.l.b16 %v1126
    %v4418 = vunpack.c.h.b16 %v1126
    %v4419 = vunpack.c.l.b16 %v1127
    %v4420 = vunpack.c.h.b16 %v1127
    %v4421 = vunpack.c.l.b16 %v1128
    %v4422 = vunpack.c.h.b16 %v1128
    %v4423 = vunpack.c.l.b16 %v1129
    %v4424 = vunpack.c.h.b16 %v1129
    %v4425 = vunpack.c.l.b16 %v1130
    %v4426 = vunpack.c.h.b16 %v1130
    %v4427 = vunpack.c.l.b16 %v1131
    %v4428 = vunpack.c.h.b16 %v1131
    %v4429 = vunpack.c.l.b16 %v1132
    %v4430 = vunpack.c.h.b16 %v1132
    %v4431 = vunpack.c.l.b16 %v1133
    %v4432 = vunpack.c.h.b16 %v1133
    %v4433 = vunpack.c.l.b16 %v1134
    %v4434 = vunpack.c.h.b16 %v1134
    %v4435 = vunpack.c.l.b16 %v1135
    %v4436 = vunpack.c.h.b16 %v1135
    %v4437 = vunpack.c.l.b16 %v1136
    %v4438 = vunpack.c.h.b16 %v1136
    %v4439 = vunpack.c.l.b16 %v1137
    %v4440 = vunpack.c.h.b16 %v1137
    %v4441 = vunpack.c.l.b16 %v1138
    %v4442 = vunpack.c.h.b16 %v1138
    %v4443 = vunpack.c.l.b16 %v1139
    %v4444 = vunpack.c.h.b16 %v1139
    %v4445 = vunpack.c.l.b16 %v1140
    %v4446 = vunpack.c.h.b16 %v1140
    %v4447 = vunpack.c.l.b16 %v1141
    %v4448 = vunpack.c.h.b16 %v1141
    %v4449 = vunpack.c.l.b16 %v1142
    %v4450 = vunpack.c.h.b16 %v1142
    %v4451 = vpack.c.b16 %v2405, %v2403
    %v4452 = vpack.c.b16 %v2406, %v2404
    %v4453 = vpack.c.b16 %v2409, %v2407
    %v4454 = vpack.c.b16 %v2410, %v2408
    %v4455 = vpack.c.b16 %v2413, %v2411
    %v4456 = vpack.c.b16 %v2414, %v2412
    %v4457 = vpack.c.b16 %v2417, %v2415
    %v4458 = vpack.c.b16 %v2418, %v2416
    %v4459 = vpack.c.b16 %v2421, %v2419
    %v4460 = vpack.c.b16 %v2422, %v2420
    %v4461 = vpack.c.b16 %v2425, %v2423
    %v4462 = vpack.c.b16 %v2426, %v2424
    %v4463 = vpack.c.b16 %v2429, %v2427
    %v4464 = vpack.c.b16 %v2430, %v2428
    %v4465 = vpack.c.b16 %v2433, %v2431
    %v4466 = vpack.c.b16 %v2434, %v2432
    %v4467 = vpack.c.b16 %v2437, %v2435
    %v4468 = vpack.c.b16 %v2438, %v2436
    %v4469 = vpack.c.b16 %v2441, %v2439
    %v4470 = vpack.c.b16 %v2442, %v2440
    %v4471 = vpack.c.b16 %v2445, %v2443
    %v4472 = vpack.c.b16 %v2446, %v2444
    %v4473 = vpack.c.b16 %v2449, %v2447
    %v4474 = vpack.c.b16 %v2450, %v2448
    %v4475 = vpack.c.b16 %v2453, %v2451
    %v4476 = vpack.c.b16 %v2454, %v2452
    %v4477 = vpack.c.b16 %v2457, %v2455
    %v4478 = vpack.c.b16 %v2458, %v2456
    %v4479 = vpack.c.b16 %v2461, %v2459
    %v4480 = vpack.c.b16 %v2462, %v2460
    %v4481 = vpack.c.b16 %v2465, %v2463
    %v4482 = vpack.c.b16 %v2466, %v2464
    %v4483 = vpack.c.b16 %v2469, %v2467
    %v4484 = vpack.c.b16 %v2470, %v2468
    %v4485 = vpack.c.b16 %v2473, %v2471
    %v4486 = vpack.c.b16 %v2474, %v2472
    %v4487 = vpack.c.b16 %v2477, %v2475
    %v4488 = vpack.c.b16 %v2478, %v2476
    %v4489 = vpack.c.b16 %v2481, %v2479
    %v4490 = vpack.c.b16 %v2482, %v2480
    %v4491 = vpack.c.b16 %v2485, %v2483
    %v4492 = vpack.c.b16 %v2486, %v2484
    %v4493 = vpack.c.b16 %v2489, %v2487
    %v4494 = vpack.c.b16 %v2490, %v2488
    %v4495 = vpack.c.b16 %v2493, %v2491
    %v4496 = vpack.c.b16 %v2494, %v2492
    %v4497 = vpack.c.b16 %v2497, %v2495
    %v4498 = vpack.c.b16 %v2498, %v2496
    %v4499 = vpack.c.b16 %v2501, %v2499
    %v4500 = vpack.c.b16 %v2502, %v2500
    %v4501 = vpack.c.b16 %v2505, %v2503
    %v4502 = vpack.c.b16 %v2506, %v2504
    %v4503 = vpack.c.b16 %v2509, %v2507
    %v4504 = vpack.c.b16 %v2510, %v2508
    %v4505 = vpack.c.b16 %v2513, %v2511
    %v4506 = vpack.c.b16 %v2514, %v2512
    %v4507 = vpack.c.b16 %v2517, %v2515
    %v4508 = vpack.c.b16 %v2518, %v2516
    %v4509 = vpack.c.b16 %v2521, %v2519
    %v4510 = vpack.c.b16 %v2522, %v2520
    %v4511 = vpack.c.b16 %v2525, %v2523
    %v4512 = vpack.c.b16 %v2526, %v2524
    %v4513 = vpack.c.b16 %v2529, %v2527
    %v4514 = vpack.c.b16 %v2530, %v2528
    %v4515 = vpack.c.b16 %v2533, %v2531
    %v4516 = vpack.c.b16 %v2534, %v2532
    %v4517 = vpack.c.b16 %v2537, %v2535
    %v4518 = vpack.c.b16 %v2538, %v2536
    %v4519 = vpack.c.b16 %v2541, %v2539
    %v4520 = vpack.c.b16 %v2542, %v2540
    %v4521 = vpack.c.b16 %v2545, %v2543
    %v4522 = vpack.c.b16 %v2546, %v2544
    %v4523 = vpack.c.b16 %v2549, %v2547
    %v4524 = vpack.c.b16 %v2550, %v2548
    %v4525 = vpack.c.b16 %v2553, %v2551
    %v4526 = vpack.c.b16 %v2554, %v2552
    %v4527 = vpack.c.b16 %v2557, %v2555
    %v4528 = vpack.c.b16 %v2558, %v2556
    %v4529 = vpack.c.b16 %v2561, %v2559
    %v4530 = vpack.c.b16 %v2562, %v2560
    %v4531 = vpack.c.b16 %v2565, %v2563
    %v4532 = vpack.c.b16 %v2566, %v2564
    %v4533 = vpack.c.b16 %v2569, %v2567
    %v4534 = vpack.c.b16 %v2570, %v2568
    %v4535 = vpack.c.b16 %v2573, %v2571
    %v4536 = vpack.c.b16 %v2574, %v2572
    %v4537 = vpack.c.b16 %v2577, %v2575
    %v4538 = vpack.c.b16 %v2578, %v2576
    %v4539 = vpack.c.b16 %v2581, %v2579
    %v4540 = vpack.c.b16 %v2582, %v2580
    %v4541 = vpack.c.b16 %v2585, %v2583
    %v4542 = vpack.c.b16 %v2586, %v2584
    %v4543 = vpack.c.b16 %v2589, %v2587
    %v4544 = vpack.c.b16 %v2590, %v2588
    %v4545 = vpack.c.b16 %v2593, %v2591
    %v4546 = vpack.c.b16 %v2594, %v2592
    %v4547 = vpack.c.b16 %v2597, %v2595
    %v4548 = vpack.c.b16 %v2598, %v2596
    %v4549 = vpack.c.b16 %v2601, %v2599
    %v4550 = vpack.c.b16 %v2602, %v2600
    %v4551 = vpack.c.b16 %v2605, %v2603
    %v4552 = vpack.c.b16 %v2606, %v2604
    %v4553 = vpack.c.b16 %v2609, %v2607
    %v4554 = vpack.c.b16 %v2610, %v2608
    %v4555 = vpack.c.b16 %v2613, %v2611
    %v4556 = vpack.c.b16 %v2614, %v2612
    %v4557 = vpack.c.b16 %v2617, %v2615
    %v4558 = vpack.c.b16 %v2618, %v2616
    %v4559 = vpack.c.b16 %v2621, %v2619
    %v4560 = vpack.c.b16 %v2622, %v2620
    %v4561 = vpack.c.b16 %v2625, %v2623
    %v4562 = vpack.c.b16 %v2626, %v2624
    %v4563 = vpack.c.b16 %v2629, %v2627
    %v4564 = vpack.c.b16 %v2630, %v2628
    %v4565 = vpack.c.b16 %v2633, %v2631
    %v4566 = vpack.c.b16 %v2634, %v2632
    %v4567 = vpack.c.b16 %v2637, %v2635
    %v4568 = vpack.c.b16 %v2638, %v2636
    %v4569 = vpack.c.b16 %v2641, %v2639
    %v4570 = vpack.c.b16 %v2642, %v2640
    %v4571 = vpack.c.b16 %v2645, %v2643
    %v4572 = vpack.c.b16 %v2646, %v2644
    %v4573 = vpack.c.b16 %v2649, %v2647
    %v4574 = vpack.c.b16 %v2650, %v2648
    %v4575 = vpack.c.b16 %v2653, %v2651
    %v4576 = vpack.c.b16 %v2654, %v2652
    %v4577 = vpack.c.b16 %v2657, %v2655
    %v4578 = vpack.c.b16 %v2658, %v2656
    %v4579 = vpack.c.b16 %v2661, %v2659
    %v4580 = vpack.c.b16 %v2662, %v2660
    %v4581 = vpack.c.b16 %v2665, %v2663
    %v4582 = vpack.c.b16 %v2666, %v2664
    %v4583 = vpack.c.b16 %v2669, %v2667
    %v4584 = vpack.c.b16 %v2670, %v2668
    %v4585 = vpack.c.b16 %v2673, %v2671
    %v4586 = vpack.c.b16 %v2674, %v2672
    %v4587 = vpack.c.b16 %v2677, %v2675
    %v4588 = vpack.c.b16 %v2678, %v2676
    %v4589 = vpack.c.b16 %v2681, %v2679
    %v4590 = vpack.c.b16 %v2682, %v2680
    %v4591 = vpack.c.b16 %v2685, %v2683
    %v4592 = vpack.c.b16 %v2686, %v2684
    %v4593 = vpack.c.b16 %v2689, %v2687
    %v4594 = vpack.c.b16 %v2690, %v2688
    %v4595 = vpack.c.b16 %v2693, %v2691
    %v4596 = vpack.c.b16 %v2694, %v2692
    %v4597 = vpack.c.b16 %v2697, %v2695
    %v4598 = vpack.c.b16 %v2698, %v2696
    %v4599 = vpack.c.b16 %v2701, %v2699
    %v4600 = vpack.c.b16 %v2702, %v2700
    %v4601 = vpack.c.b16 %v2705, %v2703
    %v4602 = vpack.c.b16 %v2706, %v2704
    %v4603 = vpack.c.b16 %v2709, %v2707
    %v4604 = vpack.c.b16 %v2710, %v2708
    %v4605 = vpack.c.b16 %v2713, %v2711
    %v4606 = vpack.c.b16 %v2714, %v2712
    %v4607 = vpack.c.b16 %v2717, %v2715
    %v4608 = vpack.c.b16 %v2718, %v2716
    %v4609 = vpack.c.b16 %v2721, %v2719
    %v4610 = vpack.c.b16 %v2722, %v2720
    %v4611 = vpack.c.b16 %v2725, %v2723
    %v4612 = vpack.c.b16 %v2726, %v2724
    %v4613 = vpack.c.b16 %v2729, %v2727
    %v4614 = vpack.c.b16 %v2730, %v2728
    %v4615 = vpack.c.b16 %v2733, %v2731
    %v4616 = vpack.c.b16 %v2734, %v2732
    %v4617 = vpack.c.b16 %v2737, %v2735
    %v4618 = vpack.c.b16 %v2738, %v2736
    %v4619 = vpack.c.b16 %v2741, %v2739
    %v4620 = vpack.c.b16 %v2742, %v2740
    %v4621 = vpack.c.b16 %v2745, %v2743
    %v4622 = vpack.c.b16 %v2746, %v2744
    %v4623 = vpack.c.b16 %v2749, %v2747
    %v4624 = vpack.c.b16 %v2750, %v2748
    %v4625 = vpack.c.b16 %v2753, %v2751
    %v4626 = vpack.c.b16 %v2754, %v2752
    %v4627 = vpack.c.b16 %v2757, %v2755
    %v4628 = vpack.c.b16 %v2758, %v2756
    %v4629 = vpack.c.b16 %v2761, %v2759
    %v4630 = vpack.c.b16 %v2762, %v2760
    %v4631 = vpack.c.b16 %v2765, %v2763
    %v4632 = vpack.c.b16 %v2766, %v2764
    %v4633 = vpack.c.b16 %v2769, %v2767
    %v4634 = vpack.c.b16 %v2770, %v2768
    %v4635 = vpack.c.b16 %v2773, %v2771
    %v4636 = vpack.c.b16 %v2774, %v2772
    %v4637 = vpack.c.b16 %v2777, %v2775
    %v4638 = vpack.c.b16 %v2778, %v2776
    %v4639 = vpack.c.b16 %v2781, %v2779
    %v4640 = vpack.c.b16 %v2782, %v2780
    %v4641 = vpack.c.b16 %v2785, %v2783
    %v4642 = vpack.c.b16 %v2786, %v2784
    %v4643 = vpack.c.b16 %v2789, %v2787
    %v4644 = vpack.c.b16 %v2790, %v2788
    %v4645 = vpack.c.b16 %v2793, %v2791
    %v4646 = vpack.c.b16 %v2794, %v2792
    %v4647 = vpack.c.b16 %v2797, %v2795
    %v4648 = vpack.c.b16 %v2798, %v2796
    %v4649 = vpack.c.b16 %v2801, %v2799
    %v4650 = vpack.c.b16 %v2802, %v2800
    %v4651 = vpack.c.b16 %v2805, %v2803
    %v4652 = vpack.c.b16 %v2806, %v2804
    %v4653 = vpack.c.b16 %v2809, %v2807
    %v4654 = vpack.c.b16 %v2810, %v2808
    %v4655 = vpack.c.b16 %v2813, %v2811
    %v4656 = vpack.c.b16 %v2814, %v2812
    %v4657 = vpack.c.b16 %v2817, %v2815
    %v4658 = vpack.c.b16 %v2818, %v2816
    %v4659 = vpack.c.b16 %v2821, %v2819
    %v4660 = vpack.c.b16 %v2822, %v2820
    %v4661 = vpack.c.b16 %v2825, %v2823
    %v4662 = vpack.c.b16 %v2826, %v2824
    %v4663 = vpack.c.b16 %v2829, %v2827
    %v4664 = vpack.c.b16 %v2830, %v2828
    %v4665 = vpack.c.b16 %v2833, %v2831
    %v4666 = vpack.c.b16 %v2834, %v2832
    %v4667 = vpack.c.b16 %v2837, %v2835
    %v4668 = vpack.c.b16 %v2838, %v2836
    %v4669 = vpack.c.b16 %v2841, %v2839
    %v4670 = vpack.c.b16 %v2842, %v2840
    %v4671 = vpack.c.b16 %v2845, %v2843
    %v4672 = vpack.c.b16 %v2846, %v2844
    %v4673 = vpack.c.b16 %v2849, %v2847
    %v4674 = vpack.c.b16 %v2850, %v2848
    %v4675 = vpack.c.b16 %v2853, %v2851
    %v4676 = vpack.c.b16 %v2854, %v2852
    %v4677 = vpack.c.b16 %v2857, %v2855
    %v4678 = vpack.c.b16 %v2858, %v2856
    %v4679 = vpack.c.b16 %v2861, %v2859
    %v4680 = vpack.c.b16 %v2862, %v2860
    %v4681 = vpack.c.b16 %v2865, %v2863
    %v4682 = vpack.c.b16 %v2866, %v2864
    %v4683 = vpack.c.b16 %v2869, %v2867
    %v4684 = vpack.c.b16 %v2870, %v2868
    %v4685 = vpack.c.b16 %v2873, %v2871
    %v4686 = vpack.c.b16 %v2874, %v2872
    %v4687 = vpack.c.b16 %v2877, %v2875
    %v4688 = vpack.c.b16 %v2878, %v2876
    %v4689 = vpack.c.b16 %v2881, %v2879
    %v4690 = vpack.c.b16 %v2882, %v2880
    %v4691 = vpack.c.b16 %v2885, %v2883
    %v4692 = vpack.c.b16 %v2886, %v2884
    %v4693 = vpack.c.b16 %v2889, %v2887
    %v4694 = vpack.c.b16 %v2890, %v2888
    %v4695 = vpack.c.b16 %v2893, %v2891
    %v4696 = vpack.c.b16 %v2894, %v2892
    %v4697 = vpack.c.b16 %v2897, %v2895
    %v4698 = vpack.c.b16 %v2898, %v2896
    %v4699 = vpack.c.b16 %v2901, %v2899
    %v4700 = vpack.c.b16 %v2902, %v2900
    %v4701 = vpack.c.b16 %v2905, %v2903
    %v4702 = vpack.c.b16 %v2906, %v2904
    %v4703 = vpack.c.b16 %v2909, %v2907
    %v4704 = vpack.c.b16 %v2910, %v2908
    %v4705 = vpack.c.b16 %v2913, %v2911
    %v4706 = vpack.c.b16 %v2914, %v2912
    %v4707 = vpack.c.b16 %v2917, %v2915
    %v4708 = vpack.c.b16 %v2918, %v2916
    %v4709 = vpack.c.b16 %v2921, %v2919
    %v4710 = vpack.c.b16 %v2922, %v2920
    %v4711 = vpack.c.b16 %v2925, %v2923
    %v4712 = vpack.c.b16 %v2926, %v2924
    %v4713 = vpack.c.b16 %v2929, %v2927
    %v4714 = vpack.c.b16 %v2930, %v2928
    %v4715 = vpack.c.b16 %v2933, %v2931
    %v4716 = vpack.c.b16 %v2934, %v2932
    %v4717 = vpack.c.b16 %v2937, %v2935
    %v4718 = vpack.c.b16 %v2938, %v2936
    %v4719 = vpack.c.b16 %v2941, %v2939
    %v4720 = vpack.c.b16 %v2942, %v2940
    %v4721 = vpack.c.b16 %v2945, %v2943
    %v4722 = vpack.c.b16 %v2946, %v2944
    %v4723 = vpack.c.b16 %v2949, %v2947
    %v4724 = vpack.c.b16 %v2950, %v2948
    %v4725 = vpack.c.b16 %v2953, %v2951
    %v4726 = vpack.c.b16 %v2954, %v2952
    %v4727 = vpack.c.b16 %v2957, %v2955
    %v4728 = vpack.c.b16 %v2958, %v2956
    %v4729 = vpack.c.b16 %v2961, %v2959
    %v4730 = vpack.c.b16 %v2962, %v2960
    %v4731 = vpack.c.b16 %v2965, %v2963
    %v4732 = vpack.c.b16 %v2966, %v2964
    %v4733 = vpack.c.b16 %v2969, %v2967
    %v4734 = vpack.c.b16 %v2970, %v2968
    %v4735 = vpack.c.b16 %v2973, %v2971
    %v4736 = vpack.c.b16 %v2974, %v2972
    %v4737 = vpack.c.b16 %v2977, %v2975
    %v4738 = vpack.c.b16 %v2978, %v2976
    %v4739 = vpack.c.b16 %v2981, %v2979
    %v4740 = vpack.c.b16 %v2982, %v2980
    %v4741 = vpack.c.b16 %v2985, %v2983
    %v4742 = vpack.c.b16 %v2986, %v2984
    %v4743 = vpack.c.b16 %v2989, %v2987
    %v4744 = vpack.c.b16 %v2990, %v2988
    %v4745 = vpack.c.b16 %v2993, %v2991
    %v4746 = vpack.c.b16 %v2994, %v2992
    %v4747 = vpack.c.b16 %v2997, %v2995
    %v4748 = vpack.c.b16 %v2998, %v2996
    %v4749 = vpack.c.b16 %v3001, %v2999
    %v4750 = vpack.c.b16 %v3002, %v3000
    %v4751 = vpack.c.b16 %v3005, %v3003
    %v4752 = vpack.c.b16 %v3006, %v3004
    %v4753 = vpack.c.b16 %v3009, %v3007
    %v4754 = vpack.c.b16 %v3010, %v3008
    %v4755 = vpack.c.b16 %v3013, %v3011
    %v4756 = vpack.c.b16 %v3014, %v3012
    %v4757 = vpack.c.b16 %v3017, %v3015
    %v4758 = vpack.c.b16 %v3018, %v3016
    %v4759 = vpack.c.b16 %v3021, %v3019
    %v4760 = vpack.c.b16 %v3022, %v3020
    %v4761 = vpack.c.b16 %v3025, %v3023
    %v4762 = vpack.c.b16 %v3026, %v3024
    %v4763 = vpack.c.b16 %v3029, %v3027
    %v4764 = vpack.c.b16 %v3030, %v3028
    %v4765 = vpack.c.b16 %v3033, %v3031
    %v4766 = vpack.c.b16 %v3034, %v3032
    %v4767 = vpack.c.b16 %v3037, %v3035
    %v4768 = vpack.c.b16 %v3038, %v3036
    %v4769 = vpack.c.b16 %v3041, %v3039
    %v4770 = vpack.c.b16 %v3042, %v3040
    %v4771 = vpack.c.b16 %v3045, %v3043
    %v4772 = vpack.c.b16 %v3046, %v3044
    %v4773 = vpack.c.b16 %v3049, %v3047
    %v4774 = vpack.c.b16 %v3050, %v3048
    %v4775 = vpack.c.b16 %v3053, %v3051
    %v4776 = vpack.c.b16 %v3054, %v3052
    %v4777 = vpack.c.b16 %v3057, %v3055
    %v4778 = vpack.c.b16 %v3058, %v3056
    %v4779 = vpack.c.b16 %v3061, %v3059
    %v4780 = vpack.c.b16 %v3062, %v3060
    %v4781 = vpack.c.b16 %v3065, %v3063
    %v4782 = vpack.c.b16 %v3066, %v3064
    %v4783 = vpack.c.b16 %v3069, %v3067
    %v4784 = vpack.c.b16 %v3070, %v3068
    %v4785 = vpack.c.b16 %v3073, %v3071
    %v4786 = vpack.c.b16 %v3074, %v3072
    %v4787 = vpack.c.b16 %v3077, %v3075
    %v4788 = vpack.c.b16 %v3078, %v3076
    %v4789 = vpack.c.b16 %v3081, %v3079
    %v4790 = vpack.c.b16 %v3082, %v3080
    %v4791 = vpack.c.b16 %v3085, %v3083
    %v4792 = vpack.c.b16 %v3086, %v3084
    %v4793 = vpack.c.b16 %v3089, %v3087
    %v4794 = vpack.c.b16 %v3090, %v3088
    %v4795 = vpack.c.b16 %v3093, %v3091
    %v4796 = vpack.c.b16 %v3094, %v3092
    %v4797 = vpack.c.b16 %v3097, %v3095
    %v4798 = vpack.c.b16 %v3098, %v3096
    %v4799 = vpack.c.b16 %v3101, %v3099
    %v4800 = vpack.c.b16 %v3102, %v3100
    %v4801 = vpack.c.b16 %v3105, %v3103
    %v4802 = vpack.c.b16 %v3106, %v3104
    %v4803 = vpack.c.b16 %v3109, %v3107
    %v4804 = vpack.c.b16 %v3110, %v3108
    %v4805 = vpack.c.b16 %v3113, %v3111
    %v4806 = vpack.c.b16 %v3114, %v3112
    %v4807 = vpack.c.b16 %v3117, %v3115
    %v4808 = vpack.c.b16 %v3118, %v3116
    %v4809 = vpack.c.b16 %v3121, %v3119
    %v4810 = vpack.c.b16 %v3122, %v3120
    %v4811 = vpack.c.b16 %v3125, %v3123
    %v4812 = vpack.c.b16 %v3126, %v3124
    %v4813 = vpack.c.b16 %v3129, %v3127
    %v4814 = vpack.c.b16 %v3130, %v3128
    %v4815 = vpack.c.b16 %v3133, %v3131
    %v4816 = vpack.c.b16 %v3134, %v3132
    %v4817 = vpack.c.b16 %v3137, %v3135
    %v4818 = vpack.c.b16 %v3138, %v3136
    %v4819 = vpack.c.b16 %v3141, %v3139
    %v4820 = vpack.c.b16 %v3142, %v3140
    %v4821 = vpack.c.b16 %v3145, %v3143
    %v4822 = vpack.c.b16 %v3146, %v3144
    %v4823 = vpack.c.b16 %v3149, %v3147
    %v4824 = vpack.c.b16 %v3150, %v3148
    %v4825 = vpack.c.b16 %v3153, %v3151
    %v4826 = vpack.c.b16 %v3154, %v3152
    %v4827 = vpack.c.b16 %v3157, %v3155
    %v4828 = vpack.c.b16 %v3158, %v3156
    %v4829 = vpack.c.b16 %v3161, %v3159
    %v4830 = vpack.c.b16 %v3162, %v3160
    %v4831 = vpack.c.b16 %v3165, %v3163
    %v4832 = vpack.c.b16 %v3166, %v3164
    %v4833 = vpack.c.b16 %v3169, %v3167
    %v4834 = vpack.c.b16 %v3170, %v3168
    %v4835 = vpack.c.b16 %v3173, %v3171
    %v4836 = vpack.c.b16 %v3174, %v3172
    %v4837 = vpack.c.b16 %v3177, %v3175
    %v4838 = vpack.c.b16 %v3178, %v3176
    %v4839 = vpack.c.b16 %v3181, %v3179
    %v4840 = vpack.c.b16 %v3182, %v3180
    %v4841 = vpack.c.b16 %v3185, %v3183
    %v4842 = vpack.c.b16 %v3186, %v3184
    %v4843 = vpack.c.b16 %v3189, %v3187
    %v4844 = vpack.c.b16 %v3190, %v3188
    %v4845 = vpack.c.b16 %v3193, %v3191
    %v4846 = vpack.c.b16 %v3194, %v3192
    %v4847 = vpack.c.b16 %v3197, %v3195
    %v4848 = vpack.c.b16 %v3198, %v3196
    %v4849 = vpack.c.b16 %v3201, %v3199
    %v4850 = vpack.c.b16 %v3202, %v3200
    %v4851 = vpack.c.b16 %v3205, %v3203
    %v4852 = vpack.c.b16 %v3206, %v3204
    %v4853 = vpack.c.b16 %v3209, %v3207
    %v4854 = vpack.c.b16 %v3210, %v3208
    %v4855 = vpack.c.b16 %v3213, %v3211
    %v4856 = vpack.c.b16 %v3214, %v3212
    %v4857 = vpack.c.b16 %v3217, %v3215
    %v4858 = vpack.c.b16 %v3218, %v3216
    %v4859 = vpack.c.b16 %v3221, %v3219
    %v4860 = vpack.c.b16 %v3222, %v3220
    %v4861 = vpack.c.b16 %v3225, %v3223
    %v4862 = vpack.c.b16 %v3226, %v3224
    %v4863 = vpack.c.b16 %v3229, %v3227
    %v4864 = vpack.c.b16 %v3230, %v3228
    %v4865 = vpack.c.b16 %v3233, %v3231
    %v4866 = vpack.c.b16 %v3234, %v3232
    %v4867 = vpack.c.b16 %v3237, %v3235
    %v4868 = vpack.c.b16 %v3238, %v3236
    %v4869 = vpack.c.b16 %v3241, %v3239
    %v4870 = vpack.c.b16 %v3242, %v3240
    %v4871 = vpack.c.b16 %v3245, %v3243
    %v4872 = vpack.c.b16 %v3246, %v3244
    %v4873 = vpack.c.b16 %v3249, %v3247
    %v4874 = vpack.c.b16 %v3250, %v3248
    %v4875 = vpack.c.b16 %v3253, %v3251
    %v4876 = vpack.c.b16 %v3254, %v3252
    %v4877 = vpack.c.b16 %v3257, %v3255
    %v4878 = vpack.c.b16 %v3258, %v3256
    %v4879 = vpack.c.b16 %v3261, %v3259
    %v4880 = vpack.c.b16 %v3262, %v3260
    %v4881 = vpack.c.b16 %v3265, %v3263
    %v4882 = vpack.c.b16 %v3266, %v3264
    %v4883 = vpack.c.b16 %v3269, %v3267
    %v4884 = vpack.c.b16 %v3270, %v3268
    %v4885 = vpack.c.b16 %v3273, %v3271
    %v4886 = vpack.c.b16 %v3274, %v3272
    %v4887 = vpack.c.b16 %v3277, %v3275
    %v4888 = vpack.c.b16 %v3278, %v3276
    %v4889 = vpack.c.b16 %v3281, %v3279
    %v4890 = vpack.c.b16 %v3282, %v3280
    %v4891 = vpack.c.b16 %v3285, %v3283
    %v4892 = vpack.c.b16 %v3286, %v3284
    %v4893 = vpack.c.b16 %v3289, %v3287
    %v4894 = vpack.c.b16 %v3290, %v3288
    %v4895 = vpack.c.b16 %v3293, %v3291
    %v4896 = vpack.c.b16 %v3294, %v3292
    %v4897 = vpack.c.b16 %v3297, %v3295
    %v4898 = vpack.c.b16 %v3298, %v3296
    %v4899 = vpack.c.b16 %v3301, %v3299
    %v4900 = vpack.c.b16 %v3302, %v3300
    %v4901 = vpack.c.b16 %v3305, %v3303
    %v4902 = vpack.c.b16 %v3306, %v3304
    %v4903 = vpack.c.b16 %v3309, %v3307
    %v4904 = vpack.c.b16 %v3310, %v3308
    %v4905 = vpack.c.b16 %v3313, %v3311
    %v4906 = vpack.c.b16 %v3314, %v3312
    %v4907 = vpack.c.b16 %v3317, %v3315
    %v4908 = vpack.c.b16 %v3318, %v3316
    %v4909 = vpack.c.b16 %v3321, %v3319
    %v4910 = vpack.c.b16 %v3322, %v3320
    %v4911 = vpack.c.b16 %v3325, %v3323
    %v4912 = vpack.c.b16 %v3326, %v3324
    %v4913 = vpack.c.b16 %v3329, %v3327
    %v4914 = vpack.c.b16 %v3330, %v3328
    %v4915 = vpack.c.b16 %v3333, %v3331
    %v4916 = vpack.c.b16 %v3334, %v3332
    %v4917 = vpack.c.b16 %v3337, %v3335
    %v4918 = vpack.c.b16 %v3338, %v3336
    %v4919 = vpack.c.b16 %v3341, %v3339
    %v4920 = vpack.c.b16 %v3342, %v3340
    %v4921 = vpack.c.b16 %v3345, %v3343
    %v4922 = vpack.c.b16 %v3346, %v3344
    %v4923 = vpack.c.b16 %v3349, %v3347
    %v4924 = vpack.c.b16 %v3350, %v3348
    %v4925 = vpack.c.b16 %v3353, %v3351
    %v4926 = vpack.c.b16 %v3354, %v3352
    %v4927 = vpack.c.b16 %v3357, %v3355
    %v4928 = vpack.c.b16 %v3358, %v3356
    %v4929 = vpack.c.b16 %v3361, %v3359
    %v4930 = vpack.c.b16 %v3362, %v3360
    %v4931 = vpack.c.b16 %v3365, %v3363
    %v4932 = vpack.c.b16 %v3366, %v3364
    %v4933 = vpack.c.b16 %v3369, %v3367
    %v4934 = vpack.c.b16 %v3370, %v3368
    %v4935 = vpack.c.b16 %v3373, %v3371
    %v4936 = vpack.c.b16 %v3374, %v3372
    %v4937 = vpack.c.b16 %v3377, %v3375
    %v4938 = vpack.c.b16 %v3378, %v3376
    %v4939 = vpack.c.b16 %v3381, %v3379
    %v4940 = vpack.c.b16 %v3382, %v3380
    %v4941 = vpack.c.b16 %v3385, %v3383
    %v4942 = vpack.c.b16 %v3386, %v3384
    %v4943 = vpack.c.b16 %v3389, %v3387
    %v4944 = vpack.c.b16 %v3390, %v3388
    %v4945 = vpack.c.b16 %v3393, %v3391
    %v4946 = vpack.c.b16 %v3394, %v3392
    %v4947 = vpack.c.b16 %v3397, %v3395
    %v4948 = vpack.c.b16 %v3398, %v3396
    %v4949 = vpack.c.b16 %v3401, %v3399
    %v4950 = vpack.c.b16 %v3402, %v3400
    %v4951 = vpack.c.b16 %v3405, %v3403
    %v4952 = vpack.c.b16 %v3406, %v3404
    %v4953 = vpack.c.b16 %v3409, %v3407
    %v4954 = vpack.c.b16 %v3410, %v3408
    %v4955 = vpack.c.b16 %v3413, %v3411
    %v4956 = vpack.c.b16 %v3414, %v3412
    %v4957 = vpack.c.b16 %v3417, %v3415
    %v4958 = vpack.c.b16 %v3418, %v3416
    %v4959 = vpack.c.b16 %v3421, %v3419
    %v4960 = vpack.c.b16 %v3422, %v3420
    %v4961 = vpack.c.b16 %v3425, %v3423
    %v4962 = vpack.c.b16 %v3426, %v3424
    %v4963 = vpack.c.b16 %v3429, %v3427
    %v4964 = vpack.c.b16 %v3430, %v3428
    %v4965 = vpack.c.b16 %v3433, %v3431
    %v4966 = vpack.c.b16 %v3434, %v3432
    %v4967 = vpack.c.b16 %v3437, %v3435
    %v4968 = vpack.c.b16 %v3438, %v3436
    %v4969 = vpack.c.b16 %v3441, %v3439
    %v4970 = vpack.c.b16 %v3442, %v3440
    %v4971 = vpack.c.b16 %v3445, %v3443
    %v4972 = vpack.c.b16 %v3446, %v3444
    %v4973 = vpack.c.b16 %v3449, %v3447
    %v4974 = vpack.c.b16 %v3450, %v3448
    %v4975 = vpack.c.b16 %v3453, %v3451
    %v4976 = vpack.c.b16 %v3454, %v3452
    %v4977 = vpack.c.b16 %v3457, %v3455
    %v4978 = vpack.c.b16 %v3458, %v3456
    %v4979 = vpack.c.b16 %v3461, %v3459
    %v4980 = vpack.c.b16 %v3462, %v3460
    %v4981 = vpack.c.b16 %v3465, %v3463
    %v4982 = vpack.c.b16 %v3466, %v3464
    %v4983 = vpack.c.b16 %v3469, %v3467
    %v4984 = vpack.c.b16 %v3470, %v3468
    %v4985 = vpack.c.b16 %v3473, %v3471
    %v4986 = vpack.c.b16 %v3474, %v3472
    %v4987 = vpack.c.b16 %v3477, %v3475
    %v4988 = vpack.c.b16 %v3478, %v3476
    %v4989 = vpack.c.b16 %v3481, %v3479
    %v4990 = vpack.c.b16 %v3482, %v3480
    %v4991 = vpack.c.b16 %v3485, %v3483
    %v4992 = vpack.c.b16 %v3486, %v3484
    %v4993 = vpack.c.b16 %v3489, %v3487
    %v4994 = vpack.c.b16 %v3490, %v3488
    %v4995 = vpack.c.b16 %v3493, %v3491
    %v4996 = vpack.c.b16 %v3494, %v3492
    %v4997 = vpack.c.b16 %v3497, %v3495
    %v4998 = vpack.c.b16 %v3498, %v3496
    %v4999 = vpack.c.b16 %v3501, %v3499
    %v5000 = vpack.c.b16 %v3502, %v3500
    %v5001 = vpack.c.b16 %v3505, %v3503
    %v5002 = vpack.c.b16 %v3506, %v3504
    %v5003 = vpack.c.b16 %v3509, %v3507
    %v5004 = vpack.c.b16 %v3510, %v3508
    %v5005 = vpack.c.b16 %v3513, %v3511
    %v5006 = vpack.c.b16 %v3514, %v3512
    %v5007 = vpack.c.b16 %v3517, %v3515
    %v5008 = vpack.c.b16 %v3518, %v3516
    %v5009 = vpack.c.b16 %v3521, %v3519
    %v5010 = vpack.c.b16 %v3522, %v3520
    %v5011 = vpack.c.b16 %v3525, %v3523
    %v5012 = vpack.c.b16 %v3526, %v3524
    %v5013 = vpack.c.b16 %v3529, %v3527
    %v5014 = vpack.c.b16 %v3530, %v3528
    %v5015 = vpack.c.b16 %v3533, %v3531
    %v5016 = vpack.c.b16 %v3534, %v3532
    %v5017 = vpack.c.b16 %v3537, %v3535
    %v5018 = vpack.c.b16 %v3538, %v3536
    %v5019 = vpack.c.b16 %v3541, %v3539
    %v5020 = vpack.c.b16 %v3542, %v3540
    %v5021 = vpack.c.b16 %v3545, %v3543
    %v5022 = vpack.c.b16 %v3546, %v3544
    %v5023 = vpack.c.b16 %v3549, %v3547
    %v5024 = vpack.c.b16 %v3550, %v3548
    %v5025 = vpack.c.b16 %v3553, %v3551
    %v5026 = vpack.c.b16 %v3554, %v3552
    %v5027 = vpack.c.b16 %v3557, %v3555
    %v5028 = vpack.c.b16 %v3558, %v3556
    %v5029 = vpack.c.b16 %v3561, %v3559
    %v5030 = vpack.c.b16 %v3562, %v3560
    %v5031 = vpack.c.b16 %v3565, %v3563
    %v5032 = vpack.c.b16 %v3566, %v3564
    %v5033 = vpack.c.b16 %v3569, %v3567
    %v5034 = vpack.c.b16 %v3570, %v3568
    %v5035 = vpack.c.b16 %v3573, %v3571
    %v5036 = vpack.c.b16 %v3574, %v3572
    %v5037 = vpack.c.b16 %v3577, %v3575
    %v5038 = vpack.c.b16 %v3578, %v3576
    %v5039 = vpack.c.b16 %v3581, %v3579
    %v5040 = vpack.c.b16 %v3582, %v3580
    %v5041 = vpack.c.b16 %v3585, %v3583
    %v5042 = vpack.c.b16 %v3586, %v3584
    %v5043 = vpack.c.b16 %v3589, %v3587
    %v5044 = vpack.c.b16 %v3590, %v3588
    %v5045 = vpack.c.b16 %v3593, %v3591
    %v5046 = vpack.c.b16 %v3594, %v3592
    %v5047 = vpack.c.b16 %v3597, %v3595
    %v5048 = vpack.c.b16 %v3598, %v3596
    %v5049 = vpack.c.b16 %v3601, %v3599
    %v5050 = vpack.c.b16 %v3602, %v3600
    %v5051 = vpack.c.b16 %v3605, %v3603
    %v5052 = vpack.c.b16 %v3606, %v3604
    %v5053 = vpack.c.b16 %v3609, %v3607
    %v5054 = vpack.c.b16 %v3610, %v3608
    %v5055 = vpack.c.b16 %v3613, %v3611
    %v5056 = vpack.c.b16 %v3614, %v3612
    %v5057 = vpack.c.b16 %v3617, %v3615
    %v5058 = vpack.c.b16 %v3618, %v3616
    %v5059 = vpack.c.b16 %v3621, %v3619
    %v5060 = vpack.c.b16 %v3622, %v3620
    %v5061 = vpack.c.b16 %v3625, %v3623
    %v5062 = vpack.c.b16 %v3626, %v3624
    %v5063 = vpack.c.b16 %v3629, %v3627
    %v5064 = vpack.c.b16 %v3630, %v3628
    %v5065 = vpack.c.b16 %v3633, %v3631
    %v5066 = vpack.c.b16 %v3634, %v3632
    %v5067 = vpack.c.b16 %v3637, %v3635
    %v5068 = vpack.c.b16 %v3638, %v3636
    %v5069 = vpack.c.b16 %v3641, %v3639
    %v5070 = vpack.c.b16 %v3642, %v3640
    %v5071 = vpack.c.b16 %v3645, %v3643
    %v5072 = vpack.c.b16 %v3646, %v3644
    %v5073 = vpack.c.b16 %v3649, %v3647
    %v5074 = vpack.c.b16 %v3650, %v3648
    %v5075 = vpack.c.b16 %v3653, %v3651
    %v5076 = vpack.c.b16 %v3654, %v3652
    %v5077 = vpack.c.b16 %v3657, %v3655
    %v5078 = vpack.c.b16 %v3658, %v3656
    %v5079 = vpack.c.b16 %v3661, %v3659
    %v5080 = vpack.c.b16 %v3662, %v3660
    %v5081 = vpack.c.b16 %v3665, %v3663
    %v5082 = vpack.c.b16 %v3666, %v3664
    %v5083 = vpack.c.b16 %v3669, %v3667
    %v5084 = vpack.c.b16 %v3670, %v3668
    %v5085 = vpack.c.b16 %v3673, %v3671
    %v5086 = vpack.c.b16 %v3674, %v3672
    %v5087 = vpack.c.b16 %v3677, %v3675
    %v5088 = vpack.c.b16 %v3678, %v3676
    %v5089 = vpack.c.b16 %v3681, %v3679
    %v5090 = vpack.c.b16 %v3682, %v3680
    %v5091 = vpack.c.b16 %v3685, %v3683
    %v5092 = vpack.c.b16 %v3686, %v3684
    %v5093 = vpack.c.b16 %v3689, %v3687
    %v5094 = vpack.c.b16 %v3690, %v3688
    %v5095 = vpack.c.b16 %v3693, %v3691
    %v5096 = vpack.c.b16 %v3694, %v3692
    %v5097 = vpack.c.b16 %v3697, %v3695
    %v5098 = vpack.c.b16 %v3698, %v3696
    %v5099 = vpack.c.b16 %v3701, %v3699
    %v5100 = vpack.c.b16 %v3702, %v3700
    %v5101 = vpack.c.b16 %v3705, %v3703
    %v5102 = vpack.c.b16 %v3706, %v3704
    %v5103 = vpack.c.b16 %v3709, %v3707
    %v5104 = vpack.c.b16 %v3710, %v3708
    %v5105 = vpack.c.b16 %v3713, %v3711
    %v5106 = vpack.c.b16 %v3714, %v3712
    %v5107 = vpack.c.b16 %v3717, %v3715
    %v5108 = vpack.c.b16 %v3718, %v3716
    %v5109 = vpack.c.b16 %v3721, %v3719
    %v5110 = vpack.c.b16 %v3722, %v3720
    %v5111 = vpack.c.b16 %v3725, %v3723
    %v5112 = vpack.c.b16 %v3726, %v3724
    %v5113 = vpack.c.b16 %v3729, %v3727
    %v5114 = vpack.c.b16 %v3730, %v3728
    %v5115 = vpack.c.b16 %v3733, %v3731
    %v5116 = vpack.c.b16 %v3734, %v3732
    %v5117 = vpack.c.b16 %v3737, %v3735
    %v5118 = vpack.c.b16 %v3738, %v3736
    %v5119 = vpack.c.b16 %v3741, %v3739
    %v5120 = vpack.c.b16 %v3742, %v3740
    %v5121 = vpack.c.b16 %v3745, %v3743
    %v5122 = vpack.c.b16 %v3746, %v3744
    %v5123 = vpack.c.b16 %v3749, %v3747
    %v5124 = vpack.c.b16 %v3750, %v3748
    %v5125 = vpack.c.b16 %v3753, %v3751
    %v5126 = vpack.c.b16 %v3754, %v3752
    %v5127 = vpack.c.b16 %v3757, %v3755
    %v5128 = vpack.c.b16 %v3758, %v3756
    %v5129 = vpack.c.b16 %v3761, %v3759
    %v5130 = vpack.c.b16 %v3762, %v3760
    %v5131 = vpack.c.b16 %v3765, %v3763
    %v5132 = vpack.c.b16 %v3766, %v3764
    %v5133 = vpack.c.b16 %v3769, %v3767
    %v5134 = vpack.c.b16 %v3770, %v3768
    %v5135 = vpack.c.b16 %v3773, %v3771
    %v5136 = vpack.c.b16 %v3774, %v3772
    %v5137 = vpack.c.b16 %v3777, %v3775
    %v5138 = vpack.c.b16 %v3778, %v3776
    %v5139 = vpack.c.b16 %v3781, %v3779
    %v5140 = vpack.c.b16 %v3782, %v3780
    %v5141 = vpack.c.b16 %v3785, %v3783
    %v5142 = vpack.c.b16 %v3786, %v3784
    %v5143 = vpack.c.b16 %v3789, %v3787
    %v5144 = vpack.c.b16 %v3790, %v3788
    %v5145 = vpack.c.b16 %v3793, %v3791
    %v5146 = vpack.c.b16 %v3794, %v3792
    %v5147 = vpack.c.b16 %v3797, %v3795
    %v5148 = vpack.c.b16 %v3798, %v3796
    %v5149 = vpack.c.b16 %v3801, %v3799
    %v5150 = vpack.c.b16 %v3802, %v3800
    %v5151 = vpack.c.b16 %v3805, %v3803
    %v5152 = vpack.c.b16 %v3806, %v3804
    %v5153 = vpack.c.b16 %v3809, %v3807
    %v5154 = vpack.c.b16 %v3810, %v3808
    %v5155 = vpack.c.b16 %v3813, %v3811
    %v5156 = vpack.c.b16 %v3814, %v3812
    %v5157 = vpack.c.b16 %v3817, %v3815
    %v5158 = vpack.c.b16 %v3818, %v3816
    %v5159 = vpack.c.b16 %v3821, %v3819
    %v5160 = vpack.c.b16 %v3822, %v3820
    %v5161 = vpack.c.b16 %v3825, %v3823
    %v5162 = vpack.c.b16 %v3826, %v3824
    %v5163 = vpack.c.b16 %v3829, %v3827
    %v5164 = vpack.c.b16 %v3830, %v3828
    %v5165 = vpack.c.b16 %v3833, %v3831
    %v5166 = vpack.c.b16 %v3834, %v3832
    %v5167 = vpack.c.b16 %v3837, %v3835
    %v5168 = vpack.c.b16 %v3838, %v3836
    %v5169 = vpack.c.b16 %v3841, %v3839
    %v5170 = vpack.c.b16 %v3842, %v3840
    %v5171 = vpack.c.b16 %v3845, %v3843
    %v5172 = vpack.c.b16 %v3846, %v3844
    %v5173 = vpack.c.b16 %v3849, %v3847
    %v5174 = vpack.c.b16 %v3850, %v3848
    %v5175 = vpack.c.b16 %v3853, %v3851
    %v5176 = vpack.c.b16 %v3854, %v3852
    %v5177 = vpack.c.b16 %v3857, %v3855
    %v5178 = vpack.c.b16 %v3858, %v3856
    %v5179 = vpack.c.b16 %v3861, %v3859
    %v5180 = vpack.c.b16 %v3862, %v3860
    %v5181 = vpack.c.b16 %v3865, %v3863
    %v5182 = vpack.c.b16 %v3866, %v3864
    %v5183 = vpack.c.b16 %v3869, %v3867
    %v5184 = vpack.c.b16 %v3870, %v3868
    %v5185 = vpack.c.b16 %v3873, %v3871
    %v5186 = vpack.c.b16 %v3874, %v3872
    %v5187 = vpack.c.b16 %v3877, %v3875
    %v5188 = vpack.c.b16 %v3878, %v3876
    %v5189 = vpack.c.b16 %v3881, %v3879
    %v5190 = vpack.c.b16 %v3882, %v3880
    %v5191 = vpack.c.b16 %v3885, %v3883
    %v5192 = vpack.c.b16 %v3886, %v3884
    %v5193 = vpack.c.b16 %v3889, %v3887
    %v5194 = vpack.c.b16 %v3890, %v3888
    %v5195 = vpack.c.b16 %v3893, %v3891
    %v5196 = vpack.c.b16 %v3894, %v3892
    %v5197 = vpack.c.b16 %v3897, %v3895
    %v5198 = vpack.c.b16 %v3898, %v3896
    %v5199 = vpack.c.b16 %v3901, %v3899
    %v5200 = vpack.c.b16 %v3902, %v3900
    %v5201 = vpack.c.b16 %v3905, %v3903
    %v5202 = vpack.c.b16 %v3906, %v3904
    %v5203 = vpack.c.b16 %v3909, %v3907
    %v5204 = vpack.c.b16 %v3910, %v3908
    %v5205 = vpack.c.b16 %v3913, %v3911
    %v5206 = vpack.c.b16 %v3914, %v3912
    %v5207 = vpack.c.b16 %v3917, %v3915
    %v5208 = vpack.c.b16 %v3918, %v3916
    %v5209 = vpack.c.b16 %v3921, %v3919
    %v5210 = vpack.c.b16 %v3922, %v3920
    %v5211 = vpack.c.b16 %v3925, %v3923
    %v5212 = vpack.c.b16 %v3926, %v3924
    %v5213 = vpack.c.b16 %v3929, %v3927
    %v5214 = vpack.c.b16 %v3930, %v3928
    %v5215 = vpack.c.b16 %v3933, %v3931
    %v5216 = vpack.c.b16 %v3934, %v3932
    %v5217 = vpack.c.b16 %v3937, %v3935
    %v5218 = vpack.c.b16 %v3938, %v3936
    %v5219 = vpack.c.b16 %v3941, %v3939
    %v5220 = vpack.c.b16 %v3942, %v3940
    %v5221 = vpack.c.b16 %v3945, %v3943
    %v5222 = vpack.c.b16 %v3946, %v3944
    %v5223 = vpack.c.b16 %v3949, %v3947
    %v5224 = vpack.c.b16 %v3950, %v3948
    %v5225 = vpack.c.b16 %v3953, %v3951
    %v5226 = vpack.c.b16 %v3954, %v3952
    %v5227 = vpack.c.b16 %v3957, %v3955
    %v5228 = vpack.c.b16 %v3958, %v3956
    %v5229 = vpack.c.b16 %v3961, %v3959
    %v5230 = vpack.c.b16 %v3962, %v3960
    %v5231 = vpack.c.b16 %v3965, %v3963
    %v5232 = vpack.c.b16 %v3966, %v3964
    %v5233 = vpack.c.b16 %v3969, %v3967
    %v5234 = vpack.c.b16 %v3970, %v3968
    %v5235 = vpack.c.b16 %v3973, %v3971
    %v5236 = vpack.c.b16 %v3974, %v3972
    %v5237 = vpack.c.b16 %v3977, %v3975
    %v5238 = vpack.c.b16 %v3978, %v3976
    %v5239 = vpack.c.b16 %v3981, %v3979
    %v5240 = vpack.c.b16 %v3982, %v3980
    %v5241 = vpack.c.b16 %v3985, %v3983
    %v5242 = vpack.c.b16 %v3986, %v3984
    %v5243 = vpack.c.b16 %v3989, %v3987
    %v5244 = vpack.c.b16 %v3990, %v3988
    %v5245 = vpack.c.b16 %v3993, %v3991
    %v5246 = vpack.c.b16 %v3994, %v3992
    %v5247 = vpack.c.b16 %v3997, %v3995
    %v5248 = vpack.c.b16 %v3998, %v3996
    %v5249 = vpack.c.b16 %v4001, %v3999
    %v5250 = vpack.c.b16 %v4002, %v4000
    %v5251 = vpack.c.b16 %v4005, %v4003
    %v5252 = vpack.c.b16 %v4006, %v4004
    %v5253 = vpack.c.b16 %v4009, %v4007
    %v5254 = vpack.c.b16 %v4010, %v4008
    %v5255 = vpack.c.b16 %v4013, %v4011
    %v5256 = vpack.c.b16 %v4014, %v4012
    %v5257 = vpack.c.b16 %v4017, %v4015
    %v5258 = vpack.c.b16 %v4018, %v4016
    %v5259 = vpack.c.b16 %v4021, %v4019
    %v5260 = vpack.c.b16 %v4022, %v4020
    %v5261 = vpack.c.b16 %v4025, %v4023
    %v5262 = vpack.c.b16 %v4026, %v4024
    %v5263 = vpack.c.b16 %v4029, %v4027
    %v5264 = vpack.c.b16 %v4030, %v4028
    %v5265 = vpack.c.b16 %v4033, %v4031
    %v5266 = vpack.c.b16 %v4034, %v4032
    %v5267 = vpack.c.b16 %v4037, %v4035
    %v5268 = vpack.c.b16 %v4038, %v4036
    %v5269 = vpack.c.b16 %v4041, %v4039
    %v5270 = vpack.c.b16 %v4042, %v4040
    %v5271 = vpack.c.b16 %v4045, %v4043
    %v5272 = vpack.c.b16 %v4046, %v4044
    %v5273 = vpack.c.b16 %v4049, %v4047
    %v5274 = vpack.c.b16 %v4050, %v4048
    %v5275 = vpack.c.b16 %v4053, %v4051
    %v5276 = vpack.c.b16 %v4054, %v4052
    %v5277 = vpack.c.b16 %v4057, %v4055
    %v5278 = vpack.c.b16 %v4058, %v4056
    %v5279 = vpack.c.b16 %v4061, %v4059
    %v5280 = vpack.c.b16 %v4062, %v4060
    %v5281 = vpack.c.b16 %v4065, %v4063
    %v5282 = vpack.c.b16 %v4066, %v4064
    %v5283 = vpack.c.b16 %v4069, %v4067
    %v5284 = vpack.c.b16 %v4070, %v4068
    %v5285 = vpack.c.b16 %v4073, %v4071
    %v5286 = vpack.c.b16 %v4074, %v4072
    %v5287 = vpack.c.b16 %v4077, %v4075
    %v5288 = vpack.c.b16 %v4078, %v4076
    %v5289 = vpack.c.b16 %v4081, %v4079
    %v5290 = vpack.c.b16 %v4082, %v4080
    %v5291 = vpack.c.b16 %v4085, %v4083
    %v5292 = vpack.c.b16 %v4086, %v4084
    %v5293 = vpack.c.b16 %v4089, %v4087
    %v5294 = vpack.c.b16 %v4090, %v4088
    %v5295 = vpack.c.b16 %v4093, %v4091
    %v5296 = vpack.c.b16 %v4094, %v4092
    %v5297 = vpack.c.b16 %v4097, %v4095
    %v5298 = vpack.c.b16 %v4098, %v4096
    %v5299 = vpack.c.b16 %v4101, %v4099
    %v5300 = vpack.c.b16 %v4102, %v4100
    %v5301 = vpack.c.b16 %v4105, %v4103
    %v5302 = vpack.c.b16 %v4106, %v4104
    %v5303 = vpack.c.b16 %v4109, %v4107
    %v5304 = vpack.c.b16 %v4110, %v4108
    %v5305 = vpack.c.b16 %v4113, %v4111
    %v5306 = vpack.c.b16 %v4114, %v4112
    %v5307 = vpack.c.b16 %v4117, %v4115
    %v5308 = vpack.c.b16 %v4118, %v4116
    %v5309 = vpack.c.b16 %v4121, %v4119
    %v5310 = vpack.c.b16 %v4122, %v4120
    %v5311 = vpack.c.b16 %v4125, %v4123
    %v5312 = vpack.c.b16 %v4126, %v4124
    %v5313 = vpack.c.b16 %v4129, %v4127
    %v5314 = vpack.c.b16 %v4130, %v4128
    %v5315 = vpack.c.b16 %v4133, %v4131
    %v5316 = vpack.c.b16 %v4134, %v4132
    %v5317 = vpack.c.b16 %v4137, %v4135
    %v5318 = vpack.c.b16 %v4138, %v4136
    %v5319 = vpack.c.b16 %v4141, %v4139
    %v5320 = vpack.c.b16 %v4142, %v4140
    %v5321 = vpack.c.b16 %v4145, %v4143
    %v5322 = vpack.c.b16 %v4146, %v4144
    %v5323 = vpack.c.b16 %v4149, %v4147
    %v5324 = vpack.c.b16 %v4150, %v4148
    %v5325 = vpack.c.b16 %v4153, %v4151
    %v5326 = vpack.c.b16 %v4154, %v4152
    %v5327 = vpack.c.b16 %v4157, %v4155
    %v5328 = vpack.c.b16 %v4158, %v4156
    %v5329 = vpack.c.b16 %v4161, %v4159
    %v5330 = vpack.c.b16 %v4162, %v4160
    %v5331 = vpack.c.b16 %v4165, %v4163
    %v5332 = vpack.c.b16 %v4166, %v4164
    %v5333 = vpack.c.b16 %v4169, %v4167
    %v5334 = vpack.c.b16 %v4170, %v4168
    %v5335 = vpack.c.b16 %v4173, %v4171
    %v5336 = vpack.c.b16 %v4174, %v4172
    %v5337 = vpack.c.b16 %v4177, %v4175
    %v5338 = vpack.c.b16 %v4178, %v4176
    %v5339 = vpack.c.b16 %v4181, %v4179
    %v5340 = vpack.c.b16 %v4182, %v4180
    %v5341 = vpack.c.b16 %v4185, %v4183
    %v5342 = vpack.c.b16 %v4186, %v4184
    %v5343 = vpack.c.b16 %v4189, %v4187
    %v5344 = vpack.c.b16 %v4190, %v4188
    %v5345 = vpack.c.b16 %v4193, %v4191
    %v5346 = vpack.c.b16 %v4194, %v4192
    %v5347 = vpack.c.b16 %v4197, %v4195
    %v5348 = vpack.c.b16 %v4198, %v4196
    %v5349 = vpack.c.b16 %v4201, %v4199
    %v5350 = vpack.c.b16 %v4202, %v4200
    %v5351 = vpack.c.b16 %v4205, %v4203
    %v5352 = vpack.c.b16 %v4206, %v4204
    %v5353 = vpack.c.b16 %v4209, %v4207
    %v5354 = vpack.c.b16 %v4210, %v4208
    %v5355 = vpack.c.b16 %v4213, %v4211
    %v5356 = vpack.c.b16 %v4214, %v4212
    %v5357 = vpack.c.b16 %v4217, %v4215
    %v5358 = vpack.c.b16 %v4218, %v4216
    %v5359 = vpack.c.b16 %v4221, %v4219
    %v5360 = vpack.c.b16 %v4222, %v4220
    %v5361 = vpack.c.b16 %v4225, %v4223
    %v5362 = vpack.c.b16 %v4226, %v4224
    %v5363 = vpack.c.b16 %v4229, %v4227
    %v5364 = vpack.c.b16 %v4230, %v4228
    %v5365 = vpack.c.b16 %v4233, %v4231
    %v5366 = vpack.c.b16 %v4234, %v4232
    %v5367 = vpack.c.b16 %v4237, %v4235
    %v5368 = vpack.c.b16 %v4238, %v4236
    %v5369 = vpack.c.b16 %v4241, %v4239
    %v5370 = vpack.c.b16 %v4242, %v4240
    %v5371 = vpack.c.b16 %v4245, %v4243
    %v5372 = vpack.c.b16 %v4246, %v4244
    %v5373 = vpack.c.b16 %v4249, %v4247
    %v5374 = vpack.c.b16 %v4250, %v4248
    %v5375 = vpack.c.b16 %v4253, %v4251
    %v5376 = vpack.c.b16 %v4254, %v4252
    %v5377 = vpack.c.b16 %v4257, %v4255
    %v5378 = vpack.c.b16 %v4258, %v4256
    %v5379 = vpack.c.b16 %v4261, %v4259
    %v5380 = vpack.c.b16 %v4262, %v4260
    %v5381 = vpack.c.b16 %v4265, %v4263
    %v5382 = vpack.c.b16 %v4266, %v4264
    %v5383 = vpack.c.b16 %v4269, %v4267
    %v5384 = vpack.c.b16 %v4270, %v4268
    %v5385 = vpack.c.b16 %v4273, %v4271
    %v5386 = vpack.c.b16 %v4274, %v4272
    %v5387 = vpack.c.b16 %v4277, %v4275
    %v5388 = vpack.c.b16 %v4278, %v4276
    %v5389 = vpack.c.b16 %v4281, %v4279
    %v5390 = vpack.c.b16 %v4282, %v4280
    %v5391 = vpack.c.b16 %v4285, %v4283
    %v5392 = vpack.c.b16 %v4286, %v4284
    %v5393 = vpack.c.b16 %v4289, %v4287
    %v5394 = vpack.c.b16 %v4290, %v4288
    %v5395 = vpack.c.b16 %v4293, %v4291
    %v5396 = vpack.c.b16 %v4294, %v4292
    %v5397 = vpack.c.b16 %v4297, %v4295
    %v5398 = vpack.c.b16 %v4298, %v4296
    %v5399 = vpack.c.b16 %v4301, %v4299
    %v5400 = vpack.c.b16 %v4302, %v4300
    %v5401 = vpack.c.b16 %v4305, %v4303
    %v5402 = vpack.c.b16 %v4306, %v4304
    %v5403 = vpack.c.b16 %v4309, %v4307
    %v5404 = vpack.c.b16 %v4310, %v4308
    %v5405 = vpack.c.b16 %v4313, %v4311
    %v5406 = vpack.c.b16 %v4314, %v4312
    %v5407 = vpack.c.b16 %v4317, %v4315
    %v5408 = vpack.c.b16 %v4318, %v4316
    %v5409 = vpack.c.b16 %v4321, %v4319
    %v5410 = vpack.c.b16 %v4322, %v4320
    %v5411 = vpack.c.b16 %v4325, %v4323
    %v5412 = vpack.c.b16 %v4326, %v4324
    %v5413 = vpack.c.b16 %v4329, %v4327
    %v5414 = vpack.c.b16 %v4330, %v4328
    %v5415 = vpack.c.b16 %v4333, %v4331
    %v5416 = vpack.c.b16 %v4334, %v4332
    %v5417 = vpack.c.b16 %v4337, %v4335
    %v5418 = vpack.c.b16 %v4338, %v4336
    %v5419 = vpack.c.b16 %v4341, %v4339
    %v5420 = vpack.c.b16 %v4342, %v4340
    %v5421 = vpack.c.b16 %v4345, %v4343
    %v5422 = vpack.c.b16 %v4346, %v4344
    %v5423 = vpack.c.b16 %v4349, %v4347
    %v5424 = vpack.c.b16 %v4350, %v4348
    %v5425 = vpack.c.b16 %v4353, %v4351
    %v5426 = vpack.c.b16 %v4354, %v4352
    %v5427 = vpack.c.b16 %v4357, %v4355
    %v5428 = vpack.c.b16 %v4358, %v4356
    %v5429 = vpack.c.b16 %v4361, %v4359
    %v5430 = vpack.c.b16 %v4362, %v4360
    %v5431 = vpack.c.b16 %v4365, %v4363
    %v5432 = vpack.c.b16 %v4366, %v4364
    %v5433 = vpack.c.b16 %v4369, %v4367
    %v5434 = vpack.c.b16 %v4370, %v4368
    %v5435 = vpack.c.b16 %v4373, %v4371
    %v5436 = vpack.c.b16 %v4374, %v4372
    %v5437 = vpack.c.b16 %v4377, %v4375
    %v5438 = vpack.c.b16 %v4378, %v4376
    %v5439 = vpack.c.b16 %v4381, %v4379
    %v5440 = vpack.c.b16 %v4382, %v4380
    %v5441 = vpack.c.b16 %v4385, %v4383
    %v5442 = vpack.c.b16 %v4386, %v4384
    %v5443 = vpack.c.b16 %v4389, %v4387
    %v5444 = vpack.c.b16 %v4390, %v4388
    %v5445 = vpack.c.b16 %v4393, %v4391
    %v5446 = vpack.c.b16 %v4394, %v4392
    %v5447 = vpack.c.b16 %v4397, %v4395
    %v5448 = vpack.c.b16 %v4398, %v4396
    %v5449 = vpack.c.b16 %v4401, %v4399
    %v5450 = vpack.c.b16 %v4402, %v4400
    %v5451 = vpack.c.b16 %v4405, %v4403
    %v5452 = vpack.c.b16 %v4406, %v4404
    %v5453 = vpack.c.b16 %v4409, %v4407
    %v5454 = vpack.c.b16 %v4410, %v4408
    %v5455 = vpack.c.b16 %v4413, %v4411
    %v5456 = vpack.c.b16 %v4414, %v4412
    %v5457 = vpack.c.b16 %v4417, %v4415
    %v5458 = vpack.c.b16 %v4418, %v4416
    %v5459 = vpack.c.b16 %v4421, %v4419
    %v5460 = vpack.c.b16 %v4422, %v4420
    %v5461 = vpack.c.b16 %v4425, %v4423
    %v5462 = vpack.c.b16 %v4426, %v4424
    %v5463 = vpack.c.b16 %v4429, %v4427
    %v5464 = vpack.c.b16 %v4430, %v4428
    %v5465 = vpack.c.b16 %v4433, %v4431
    %v5466 = vpack.c.b16 %v4434, %v4432
    %v5467 = vpack.c.b16 %v4437, %v4435
    %v5468 = vpack.c.b16 %v4438, %v4436
    %v5469 = vpack.c.b16 %v4441, %v4439
    %v5470 = vpack.c.b16 %v4442, %v4440
    %v5471 = vpack.c.b16 %v4445, %v4443
    %v5472 = vpack.c.b16 %v4446, %v4444
    %v5473 = vpack.c.b16 %v4449, %v4447
    %v5474 = vpack.c.b16 %v4450, %v4448
    %6499 = vmatprep.subr.bf16.mxu0 %v4466
    %6500 = vmatpush1.bf16.msra.mxu0 %v4465
    %6501 = vmatprep.subr.bf16.mxu0 %v4464
    %6502 = vmatpush1.bf16.msra.mxu0 %v4463
    %6503 = vmatprep.subr.bf16.mxu0 %v4462
    %6504 = vmatpush1.bf16.msra.mxu0 %v4461
    %6505 = vmatprep.subr.bf16.mxu0 %v4460
    %6506 = vmatpush1.bf16.msra.mxu0 %v4459
    %6507 = vmatprep.subr.bf16.mxu0 %v4458
    %6508 = vmatpush1.bf16.msra.mxu0 %v4457
    %6509 = vmatprep.subr.bf16.mxu0 %v4456
    %6510 = vmatpush1.bf16.msra.mxu0 %v4455
    %6511 = vmatprep.subr.bf16.mxu0 %v4454
    %6512 = vmatpush1.bf16.msra.mxu0 %v4453
    %6513 = vmatprep.subr.bf16.mxu0 %v4452
    %6514 = vmatpush1.bf16.msra.mxu0 %v4451
    %6515 = vmatprep.subr.bf16.mxu0 %v4482
    %6516 = vmatpush2.bf16.msra.mxu0 %v4481
    %6517 = vmatprep.subr.bf16.mxu0 %v4480
    %6518 = vmatpush2.bf16.msra.mxu0 %v4479
    %6519 = vmatprep.subr.bf16.mxu0 %v4478
    %6520 = vmatpush2.bf16.msra.mxu0 %v4477
    %6521 = vmatprep.subr.bf16.mxu0 %v4476
    %6522 = vmatpush2.bf16.msra.mxu0 %v4475
    %6523 = vmatprep.subr.bf16.mxu0 %v4474
    %6524 = vmatpush2.bf16.msra.mxu0 %v4473
    %6525 = vmatprep.subr.bf16.mxu0 %v4472
    %6526 = vmatpush2.bf16.msra.mxu0 %v4471
    %6527 = vmatprep.subr.bf16.mxu0 %v4470
    %6528 = vmatpush2.bf16.msra.mxu0 %v4469
    %6529 = vmatprep.subr.bf16.mxu0 %v4468
    %6530 = vmatpush2.bf16.msra.mxu0 %v4467
    %6531 = vmatprep.mubr.bf16.mxu0 %v1252
    %6532 = vmatmul.mubr.bf16.gmra.mxu0 %v1251
    %v6533 = vpop.f32.mrf.mxu0
    %v6534 = vadd.f32 %v1148, %v6533
    %v6535 = vpop.f32.mrf.mxu0
    %v6536 = vadd.f32 %v1152, %v6535
    %v6537 = vpop.f32.mrf.mxu0
    %v6538 = vpop.f32.mrf.mxu0
    %6539 = vdwg.mxu0
    %6540 = vmatprep.subr.bf16.mxu0 %v4498
    %6541 = vmatpush1.bf16.msra.mxu0 %v4497
    %6542 = vmatprep.subr.bf16.mxu0 %v4496
    %6543 = vmatpush1.bf16.msra.mxu0 %v4495
    %6544 = vmatprep.subr.bf16.mxu0 %v4494
    %6545 = vmatpush1.bf16.msra.mxu0 %v4493
    %6546 = vmatprep.subr.bf16.mxu0 %v4492
    %6547 = vmatpush1.bf16.msra.mxu0 %v4491
    %6548 = vmatprep.subr.bf16.mxu0 %v4490
    %6549 = vmatpush1.bf16.msra.mxu0 %v4489
    %6550 = vmatprep.subr.bf16.mxu0 %v4488
    %6551 = vmatpush1.bf16.msra.mxu0 %v4487
    %6552 = vmatprep.subr.bf16.mxu0 %v4486
    %6553 = vmatpush1.bf16.msra.mxu0 %v4485
    %6554 = vmatprep.subr.bf16.mxu0 %v4484
    %6555 = vmatpush1.bf16.msra.mxu0 %v4483
    %6556 = vmatprep.subr.bf16.mxu0 %v4514
    %6557 = vmatpush2.bf16.msra.mxu0 %v4513
    %6558 = vmatprep.subr.bf16.mxu0 %v4512
    %6559 = vmatpush2.bf16.msra.mxu0 %v4511
    %6560 = vmatprep.subr.bf16.mxu0 %v4510
    %6561 = vmatpush2.bf16.msra.mxu0 %v4509
    %6562 = vmatprep.subr.bf16.mxu0 %v4508
    %6563 = vmatpush2.bf16.msra.mxu0 %v4507
    %6564 = vmatprep.subr.bf16.mxu0 %v4506
    %6565 = vmatpush2.bf16.msra.mxu0 %v4505
    %6566 = vmatprep.subr.bf16.mxu0 %v4504
    %6567 = vmatpush2.bf16.msra.mxu0 %v4503
    %6568 = vmatprep.subr.bf16.mxu0 %v4502
    %6569 = vmatpush2.bf16.msra.mxu0 %v4501
    %6570 = vmatprep.subr.bf16.mxu0 %v4500
    %6571 = vmatpush2.bf16.msra.mxu0 %v4499
    %6572 = vmatprep.mubr.bf16.mxu0 %v1254
    %6573 = vmatmul.mubr.bf16.gmra.mxu0 %v1253
    %v6574 = vpop.f32.mrf.mxu0
    %v6575 = vadd.f32 %v6534, %v6574
    %v6576 = vpop.f32.mrf.mxu0
    %v6577 = vadd.f32 %v6536, %v6576
    %v6578 = vpop.f32.mrf.mxu0
    %v6579 = vpop.f32.mrf.mxu0
    %6580 = vdwg.mxu0
    %6581 = vmatprep.subr.bf16.mxu0 %v4530
    %6582 = vmatpush1.bf16.msra.mxu0 %v4529
    %6583 = vmatprep.subr.bf16.mxu0 %v4528
    %6584 = vmatpush1.bf16.msra.mxu0 %v4527
    %6585 = vmatprep.subr.bf16.mxu0 %v4526
    %6586 = vmatpush1.bf16.msra.mxu0 %v4525
    %6587 = vmatprep.subr.bf16.mxu0 %v4524
    %6588 = vmatpush1.bf16.msra.mxu0 %v4523
    %6589 = vmatprep.subr.bf16.mxu0 %v4522
    %6590 = vmatpush1.bf16.msra.mxu0 %v4521
    %6591 = vmatprep.subr.bf16.mxu0 %v4520
    %6592 = vmatpush1.bf16.msra.mxu0 %v4519
    %6593 = vmatprep.subr.bf16.mxu0 %v4518
    %6594 = vmatpush1.bf16.msra.mxu0 %v4517
    %6595 = vmatprep.subr.bf16.mxu0 %v4516
    %6596 = vmatpush1.bf16.msra.mxu0 %v4515
    %6597 = vmatprep.subr.bf16.mxu0 %v4546
    %6598 = vmatpush2.bf16.msra.mxu0 %v4545
    %6599 = vmatprep.subr.bf16.mxu0 %v4544
    %6600 = vmatpush2.bf16.msra.mxu0 %v4543
    %6601 = vmatprep.subr.bf16.mxu0 %v4542
    %6602 = vmatpush2.bf16.msra.mxu0 %v4541
    %6603 = vmatprep.subr.bf16.mxu0 %v4540
    %6604 = vmatpush2.bf16.msra.mxu0 %v4539
    %6605 = vmatprep.subr.bf16.mxu0 %v4538
    %6606 = vmatpush2.bf16.msra.mxu0 %v4537
    %6607 = vmatprep.subr.bf16.mxu0 %v4536
    %6608 = vmatpush2.bf16.msra.mxu0 %v4535
    %6609 = vmatprep.subr.bf16.mxu0 %v4534
    %6610 = vmatpush2.bf16.msra.mxu0 %v4533
    %6611 = vmatprep.subr.bf16.mxu0 %v4532
    %6612 = vmatpush2.bf16.msra.mxu0 %v4531
    %6613 = vmatprep.mubr.bf16.mxu0 %v1256
    %6614 = vmatmul.mubr.bf16.gmra.mxu0 %v1255
    %v6615 = vpop.f32.mrf.mxu0
    %v6616 = vadd.f32 %v6575, %v6615
    %v6617 = vpop.f32.mrf.mxu0
    %v6618 = vadd.f32 %v6577, %v6617
    %v6619 = vpop.f32.mrf.mxu0
    %v6620 = vpop.f32.mrf.mxu0
    %6621 = vdwg.mxu0
    %6622 = vmatprep.subr.bf16.mxu0 %v4562
    %6623 = vmatpush1.bf16.msra.mxu0 %v4561
    %6624 = vmatprep.subr.bf16.mxu0 %v4560
    %6625 = vmatpush1.bf16.msra.mxu0 %v4559
    %6626 = vmatprep.subr.bf16.mxu0 %v4558
    %6627 = vmatpush1.bf16.msra.mxu0 %v4557
    %6628 = vmatprep.subr.bf16.mxu0 %v4556
    %6629 = vmatpush1.bf16.msra.mxu0 %v4555
    %6630 = vmatprep.subr.bf16.mxu0 %v4554
    %6631 = vmatpush1.bf16.msra.mxu0 %v4553
    %6632 = vmatprep.subr.bf16.mxu0 %v4552
    %6633 = vmatpush1.bf16.msra.mxu0 %v4551
    %6634 = vmatprep.subr.bf16.mxu0 %v4550
    %6635 = vmatpush1.bf16.msra.mxu0 %v4549
    %6636 = vmatprep.subr.bf16.mxu0 %v4548
    %6637 = vmatpush1.bf16.msra.mxu0 %v4547
    %6638 = vmatprep.subr.bf16.mxu0 %v4578
    %6639 = vmatpush2.bf16.msra.mxu0 %v4577
    %6640 = vmatprep.subr.bf16.mxu0 %v4576
    %6641 = vmatpush2.bf16.msra.mxu0 %v4575
    %6642 = vmatprep.subr.bf16.mxu0 %v4574
    %6643 = vmatpush2.bf16.msra.mxu0 %v4573
    %6644 = vmatprep.subr.bf16.mxu0 %v4572
    %6645 = vmatpush2.bf16.msra.mxu0 %v4571
    %6646 = vmatprep.subr.bf16.mxu0 %v4570
    %6647 = vmatpush2.bf16.msra.mxu0 %v4569
    %6648 = vmatprep.subr.bf16.mxu0 %v4568
    %6649 = vmatpush2.bf16.msra.mxu0 %v4567
    %6650 = vmatprep.subr.bf16.mxu0 %v4566
    %6651 = vmatpush2.bf16.msra.mxu0 %v4565
    %6652 = vmatprep.subr.bf16.mxu0 %v4564
    %6653 = vmatpush2.bf16.msra.mxu0 %v4563
    %6654 = vmatprep.mubr.bf16.mxu0 %v1258
    %6655 = vmatmul.mubr.bf16.gmra.mxu0 %v1257
    %v6656 = vpop.f32.mrf.mxu0
    %v6657 = vadd.f32 %v6616, %v6656
    %v6658 = vpop.f32.mrf.mxu0
    %v6659 = vadd.f32 %v6618, %v6658
    %v6660 = vpop.f32.mrf.mxu0
    %v6661 = vpop.f32.mrf.mxu0
    %6662 = vdwg.mxu0
    %6663 = vmatprep.subr.bf16.mxu0 %v4594
    %6664 = vmatpush1.bf16.msra.mxu0 %v4593
    %6665 = vmatprep.subr.bf16.mxu0 %v4592
    %6666 = vmatpush1.bf16.msra.mxu0 %v4591
    %6667 = vmatprep.subr.bf16.mxu0 %v4590
    %6668 = vmatpush1.bf16.msra.mxu0 %v4589
    %6669 = vmatprep.subr.bf16.mxu0 %v4588
    %6670 = vmatpush1.bf16.msra.mxu0 %v4587
    %6671 = vmatprep.subr.bf16.mxu0 %v4586
    %6672 = vmatpush1.bf16.msra.mxu0 %v4585
    %6673 = vmatprep.subr.bf16.mxu0 %v4584
    %6674 = vmatpush1.bf16.msra.mxu0 %v4583
    %6675 = vmatprep.subr.bf16.mxu0 %v4582
    %6676 = vmatpush1.bf16.msra.mxu0 %v4581
    %6677 = vmatprep.subr.bf16.mxu0 %v4580
    %6678 = vmatpush1.bf16.msra.mxu0 %v4579
    %6679 = vmatprep.subr.bf16.mxu0 %v4610
    %6680 = vmatpush2.bf16.msra.mxu0 %v4609
    %6681 = vmatprep.subr.bf16.mxu0 %v4608
    %6682 = vmatpush2.bf16.msra.mxu0 %v4607
    %6683 = vmatprep.subr.bf16.mxu0 %v4606
    %6684 = vmatpush2.bf16.msra.mxu0 %v4605
    %6685 = vmatprep.subr.bf16.mxu0 %v4604
    %6686 = vmatpush2.bf16.msra.mxu0 %v4603
    %6687 = vmatprep.subr.bf16.mxu0 %v4602
    %6688 = vmatpush2.bf16.msra.mxu0 %v4601
    %6689 = vmatprep.subr.bf16.mxu0 %v4600
    %6690 = vmatpush2.bf16.msra.mxu0 %v4599
    %6691 = vmatprep.subr.bf16.mxu0 %v4598
    %6692 = vmatpush2.bf16.msra.mxu0 %v4597
    %6693 = vmatprep.subr.bf16.mxu0 %v4596
    %6694 = vmatpush2.bf16.msra.mxu0 %v4595
    %6695 = vmatprep.mubr.bf16.mxu0 %v1260
    %6696 = vmatmul.mubr.bf16.gmra.mxu0 %v1259
    %v6697 = vpop.f32.mrf.mxu0
    %v6698 = vadd.f32 %v6657, %v6697
    %v6699 = vpop.f32.mrf.mxu0
    %v6700 = vadd.f32 %v6659, %v6699
    %v6701 = vpop.f32.mrf.mxu0
    %v6702 = vpop.f32.mrf.mxu0
    %6703 = vdwg.mxu0
    %6704 = vmatprep.subr.bf16.mxu0 %v4626
    %6705 = vmatpush1.bf16.msra.mxu0 %v4625
    %6706 = vmatprep.subr.bf16.mxu0 %v4624
    %6707 = vmatpush1.bf16.msra.mxu0 %v4623
    %6708 = vmatprep.subr.bf16.mxu0 %v4622
    %6709 = vmatpush1.bf16.msra.mxu0 %v4621
    %6710 = vmatprep.subr.bf16.mxu0 %v4620
    %6711 = vmatpush1.bf16.msra.mxu0 %v4619
    %6712 = vmatprep.subr.bf16.mxu0 %v4618
    %6713 = vmatpush1.bf16.msra.mxu0 %v4617
    %6714 = vmatprep.subr.bf16.mxu0 %v4616
    %6715 = vmatpush1.bf16.msra.mxu0 %v4615
    %6716 = vmatprep.subr.bf16.mxu0 %v4614
    %6717 = vmatpush1.bf16.msra.mxu0 %v4613
    %6718 = vmatprep.subr.bf16.mxu0 %v4612
    %6719 = vmatpush1.bf16.msra.mxu0 %v4611
    %6720 = vmatprep.subr.bf16.mxu0 %v4642
    %6721 = vmatpush2.bf16.msra.mxu0 %v4641
    %6722 = vmatprep.subr.bf16.mxu0 %v4640
    %6723 = vmatpush2.bf16.msra.mxu0 %v4639
    %6724 = vmatprep.subr.bf16.mxu0 %v4638
    %6725 = vmatpush2.bf16.msra.mxu0 %v4637
    %6726 = vmatprep.subr.bf16.mxu0 %v4636
    %6727 = vmatpush2.bf16.msra.mxu0 %v4635
    %6728 = vmatprep.subr.bf16.mxu0 %v4634
    %6729 = vmatpush2.bf16.msra.mxu0 %v4633
    %6730 = vmatprep.subr.bf16.mxu0 %v4632
    %6731 = vmatpush2.bf16.msra.mxu0 %v4631
    %6732 = vmatprep.subr.bf16.mxu0 %v4630
    %6733 = vmatpush2.bf16.msra.mxu0 %v4629
    %6734 = vmatprep.subr.bf16.mxu0 %v4628
    %6735 = vmatpush2.bf16.msra.mxu0 %v4627
    %6736 = vmatprep.mubr.bf16.mxu0 %v1262
    %6737 = vmatmul.mubr.bf16.gmra.mxu0 %v1261
    %v6738 = vpop.f32.mrf.mxu0
    %v6739 = vadd.f32 %v6698, %v6738
    %v6740 = vpop.f32.mrf.mxu0
    %v6741 = vadd.f32 %v6700, %v6740
    %v6742 = vpop.f32.mrf.mxu0
    %v6743 = vpop.f32.mrf.mxu0
    %6744 = vdwg.mxu0
    %6745 = vmatprep.subr.bf16.mxu0 %v4658
    %6746 = vmatpush1.bf16.msra.mxu0 %v4657
    %6747 = vmatprep.subr.bf16.mxu0 %v4656
    %6748 = vmatpush1.bf16.msra.mxu0 %v4655
    %6749 = vmatprep.subr.bf16.mxu0 %v4654
    %6750 = vmatpush1.bf16.msra.mxu0 %v4653
    %6751 = vmatprep.subr.bf16.mxu0 %v4652
    %6752 = vmatpush1.bf16.msra.mxu0 %v4651
    %6753 = vmatprep.subr.bf16.mxu0 %v4650
    %6754 = vmatpush1.bf16.msra.mxu0 %v4649
    %6755 = vmatprep.subr.bf16.mxu0 %v4648
    %6756 = vmatpush1.bf16.msra.mxu0 %v4647
    %6757 = vmatprep.subr.bf16.mxu0 %v4646
    %6758 = vmatpush1.bf16.msra.mxu0 %v4645
    %6759 = vmatprep.subr.bf16.mxu0 %v4644
    %6760 = vmatpush1.bf16.msra.mxu0 %v4643
    %6761 = vmatprep.subr.bf16.mxu0 %v4674
    %6762 = vmatpush2.bf16.msra.mxu0 %v4673
    %6763 = vmatprep.subr.bf16.mxu0 %v4672
    %6764 = vmatpush2.bf16.msra.mxu0 %v4671
    %6765 = vmatprep.subr.bf16.mxu0 %v4670
    %6766 = vmatpush2.bf16.msra.mxu0 %v4669
    %6767 = vmatprep.subr.bf16.mxu0 %v4668
    %6768 = vmatpush2.bf16.msra.mxu0 %v4667
    %6769 = vmatprep.subr.bf16.mxu0 %v4666
    %6770 = vmatpush2.bf16.msra.mxu0 %v4665
    %6771 = vmatprep.subr.bf16.mxu0 %v4664
    %6772 = vmatpush2.bf16.msra.mxu0 %v4663
    %6773 = vmatprep.subr.bf16.mxu0 %v4662
    %6774 = vmatpush2.bf16.msra.mxu0 %v4661
    %6775 = vmatprep.subr.bf16.mxu0 %v4660
    %6776 = vmatpush2.bf16.msra.mxu0 %v4659
    %6777 = vmatprep.mubr.bf16.mxu0 %v1264
    %6778 = vmatmul.mubr.bf16.gmra.mxu0 %v1263
    %v6779 = vpop.f32.mrf.mxu0
    %v6780 = vadd.f32 %v6739, %v6779
    %v6781 = vpop.f32.mrf.mxu0
    %v6782 = vadd.f32 %v6741, %v6781
    %v6783 = vpop.f32.mrf.mxu0
    %v6784 = vpop.f32.mrf.mxu0
    %6785 = vdwg.mxu0
    %6786 = vmatprep.subr.bf16.mxu0 %v4690
    %6787 = vmatpush1.bf16.msra.mxu0 %v4689
    %6788 = vmatprep.subr.bf16.mxu0 %v4688
    %6789 = vmatpush1.bf16.msra.mxu0 %v4687
    %6790 = vmatprep.subr.bf16.mxu0 %v4686
    %6791 = vmatpush1.bf16.msra.mxu0 %v4685
    %6792 = vmatprep.subr.bf16.mxu0 %v4684
    %6793 = vmatpush1.bf16.msra.mxu0 %v4683
    %6794 = vmatprep.subr.bf16.mxu0 %v4682
    %6795 = vmatpush1.bf16.msra.mxu0 %v4681
    %6796 = vmatprep.subr.bf16.mxu0 %v4680
    %6797 = vmatpush1.bf16.msra.mxu0 %v4679
    %6798 = vmatprep.subr.bf16.mxu0 %v4678
    %6799 = vmatpush1.bf16.msra.mxu0 %v4677
    %6800 = vmatprep.subr.bf16.mxu0 %v4676
    %6801 = vmatpush1.bf16.msra.mxu0 %v4675
    %6802 = vmatprep.subr.bf16.mxu0 %v4706
    %6803 = vmatpush2.bf16.msra.mxu0 %v4705
    %6804 = vmatprep.subr.bf16.mxu0 %v4704
    %6805 = vmatpush2.bf16.msra.mxu0 %v4703
    %6806 = vmatprep.subr.bf16.mxu0 %v4702
    %6807 = vmatpush2.bf16.msra.mxu0 %v4701
    %6808 = vmatprep.subr.bf16.mxu0 %v4700
    %6809 = vmatpush2.bf16.msra.mxu0 %v4699
    %6810 = vmatprep.subr.bf16.mxu0 %v4698
    %6811 = vmatpush2.bf16.msra.mxu0 %v4697
    %6812 = vmatprep.subr.bf16.mxu0 %v4696
    %6813 = vmatpush2.bf16.msra.mxu0 %v4695
    %6814 = vmatprep.subr.bf16.mxu0 %v4694
    %6815 = vmatpush2.bf16.msra.mxu0 %v4693
    %6816 = vmatprep.subr.bf16.mxu0 %v4692
    %6817 = vmatpush2.bf16.msra.mxu0 %v4691
    %6818 = vmatprep.mubr.bf16.mxu0 %v1266
    %6819 = vmatmul.mubr.bf16.gmra.mxu0 %v1265
    %v6820 = vpop.f32.mrf.mxu0
    %v6821 = vadd.f32 %v6780, %v6820
    %v6822 = vpop.f32.mrf.mxu0
    %v6823 = vadd.f32 %v6782, %v6822
    %v6824 = vpop.f32.mrf.mxu0
    %v6825 = vpop.f32.mrf.mxu0
    %6826 = vdwg.mxu0
    %6827 = vmatprep.subr.bf16.mxu0 %v4722
    %6828 = vmatpush1.bf16.msra.mxu0 %v4721
    %6829 = vmatprep.subr.bf16.mxu0 %v4720
    %6830 = vmatpush1.bf16.msra.mxu0 %v4719
    %6831 = vmatprep.subr.bf16.mxu0 %v4718
    %6832 = vmatpush1.bf16.msra.mxu0 %v4717
    %6833 = vmatprep.subr.bf16.mxu0 %v4716
    %6834 = vmatpush1.bf16.msra.mxu0 %v4715
    %6835 = vmatprep.subr.bf16.mxu0 %v4714
    %6836 = vmatpush1.bf16.msra.mxu0 %v4713
    %6837 = vmatprep.subr.bf16.mxu0 %v4712
    %6838 = vmatpush1.bf16.msra.mxu0 %v4711
    %6839 = vmatprep.subr.bf16.mxu0 %v4710
    %6840 = vmatpush1.bf16.msra.mxu0 %v4709
    %6841 = vmatprep.subr.bf16.mxu0 %v4708
    %6842 = vmatpush1.bf16.msra.mxu0 %v4707
    %6843 = vmatprep.subr.bf16.mxu0 %v4738
    %6844 = vmatpush2.bf16.msra.mxu0 %v4737
    %6845 = vmatprep.subr.bf16.mxu0 %v4736
    %6846 = vmatpush2.bf16.msra.mxu0 %v4735
    %6847 = vmatprep.subr.bf16.mxu0 %v4734
    %6848 = vmatpush2.bf16.msra.mxu0 %v4733
    %6849 = vmatprep.subr.bf16.mxu0 %v4732
    %6850 = vmatpush2.bf16.msra.mxu0 %v4731
    %6851 = vmatprep.subr.bf16.mxu0 %v4730
    %6852 = vmatpush2.bf16.msra.mxu0 %v4729
    %6853 = vmatprep.subr.bf16.mxu0 %v4728
    %6854 = vmatpush2.bf16.msra.mxu0 %v4727
    %6855 = vmatprep.subr.bf16.mxu0 %v4726
    %6856 = vmatpush2.bf16.msra.mxu0 %v4725
    %6857 = vmatprep.subr.bf16.mxu0 %v4724
    %6858 = vmatpush2.bf16.msra.mxu0 %v4723
    %6859 = vmatprep.mubr.bf16.mxu0 %v1268
    %6860 = vmatmul.mubr.bf16.gmra.mxu0 %v1267
    %v6861 = vpop.f32.mrf.mxu0
    %v6862 = vadd.f32 %v6821, %v6861
    %v6863 = vpop.f32.mrf.mxu0
    %v6864 = vadd.f32 %v6823, %v6863
    %v6865 = vpop.f32.mrf.mxu0
    %v6866 = vpop.f32.mrf.mxu0
    %6867 = vdwg.mxu0
    %6868 = vmatprep.subr.bf16.mxu0 %v4754
    %6869 = vmatpush1.bf16.msra.mxu0 %v4753
    %6870 = vmatprep.subr.bf16.mxu0 %v4752
    %6871 = vmatpush1.bf16.msra.mxu0 %v4751
    %6872 = vmatprep.subr.bf16.mxu0 %v4750
    %6873 = vmatpush1.bf16.msra.mxu0 %v4749
    %6874 = vmatprep.subr.bf16.mxu0 %v4748
    %6875 = vmatpush1.bf16.msra.mxu0 %v4747
    %6876 = vmatprep.subr.bf16.mxu0 %v4746
    %6877 = vmatpush1.bf16.msra.mxu0 %v4745
    %6878 = vmatprep.subr.bf16.mxu0 %v4744
    %6879 = vmatpush1.bf16.msra.mxu0 %v4743
    %6880 = vmatprep.subr.bf16.mxu0 %v4742
    %6881 = vmatpush1.bf16.msra.mxu0 %v4741
    %6882 = vmatprep.subr.bf16.mxu0 %v4740
    %6883 = vmatpush1.bf16.msra.mxu0 %v4739
    %6884 = vmatprep.subr.bf16.mxu0 %v4770
    %6885 = vmatpush2.bf16.msra.mxu0 %v4769
    %6886 = vmatprep.subr.bf16.mxu0 %v4768
    %6887 = vmatpush2.bf16.msra.mxu0 %v4767
    %6888 = vmatprep.subr.bf16.mxu0 %v4766
    %6889 = vmatpush2.bf16.msra.mxu0 %v4765
    %6890 = vmatprep.subr.bf16.mxu0 %v4764
    %6891 = vmatpush2.bf16.msra.mxu0 %v4763
    %6892 = vmatprep.subr.bf16.mxu0 %v4762
    %6893 = vmatpush2.bf16.msra.mxu0 %v4761
    %6894 = vmatprep.subr.bf16.mxu0 %v4760
    %6895 = vmatpush2.bf16.msra.mxu0 %v4759
    %6896 = vmatprep.subr.bf16.mxu0 %v4758
    %6897 = vmatpush2.bf16.msra.mxu0 %v4757
    %6898 = vmatprep.subr.bf16.mxu0 %v4756
    %6899 = vmatpush2.bf16.msra.mxu0 %v4755
    %6900 = vmatprep.mubr.bf16.mxu0 %v1270
    %6901 = vmatmul.mubr.bf16.gmra.mxu0 %v1269
    %v6902 = vpop.f32.mrf.mxu0
    %v6903 = vadd.f32 %v6862, %v6902
    %v6904 = vpop.f32.mrf.mxu0
    %v6905 = vadd.f32 %v6864, %v6904
    %v6906 = vpop.f32.mrf.mxu0
    %v6907 = vpop.f32.mrf.mxu0
    %6908 = vdwg.mxu0
    %6909 = vmatprep.subr.bf16.mxu0 %v4786
    %6910 = vmatpush1.bf16.msra.mxu0 %v4785
    %6911 = vmatprep.subr.bf16.mxu0 %v4784
    %6912 = vmatpush1.bf16.msra.mxu0 %v4783
    %6913 = vmatprep.subr.bf16.mxu0 %v4782
    %6914 = vmatpush1.bf16.msra.mxu0 %v4781
    %6915 = vmatprep.subr.bf16.mxu0 %v4780
    %6916 = vmatpush1.bf16.msra.mxu0 %v4779
    %6917 = vmatprep.subr.bf16.mxu0 %v4778
    %6918 = vmatpush1.bf16.msra.mxu0 %v4777
    %6919 = vmatprep.subr.bf16.mxu0 %v4776
    %6920 = vmatpush1.bf16.msra.mxu0 %v4775
    %6921 = vmatprep.subr.bf16.mxu0 %v4774
    %6922 = vmatpush1.bf16.msra.mxu0 %v4773
    %6923 = vmatprep.subr.bf16.mxu0 %v4772
    %6924 = vmatpush1.bf16.msra.mxu0 %v4771
    %6925 = vmatprep.subr.bf16.mxu0 %v4802
    %6926 = vmatpush2.bf16.msra.mxu0 %v4801
    %6927 = vmatprep.subr.bf16.mxu0 %v4800
    %6928 = vmatpush2.bf16.msra.mxu0 %v4799
    %6929 = vmatprep.subr.bf16.mxu0 %v4798
    %6930 = vmatpush2.bf16.msra.mxu0 %v4797
    %6931 = vmatprep.subr.bf16.mxu0 %v4796
    %6932 = vmatpush2.bf16.msra.mxu0 %v4795
    %6933 = vmatprep.subr.bf16.mxu0 %v4794
    %6934 = vmatpush2.bf16.msra.mxu0 %v4793
    %6935 = vmatprep.subr.bf16.mxu0 %v4792
    %6936 = vmatpush2.bf16.msra.mxu0 %v4791
    %6937 = vmatprep.subr.bf16.mxu0 %v4790
    %6938 = vmatpush2.bf16.msra.mxu0 %v4789
    %6939 = vmatprep.subr.bf16.mxu0 %v4788
    %6940 = vmatpush2.bf16.msra.mxu0 %v4787
    %6941 = vmatprep.mubr.bf16.mxu0 %v1272
    %6942 = vmatmul.mubr.bf16.gmra.mxu0 %v1271
    %v6943 = vpop.f32.mrf.mxu0
    %v6944 = vadd.f32 %v6903, %v6943
    %v6945 = vpop.f32.mrf.mxu0
    %v6946 = vadd.f32 %v6905, %v6945
    %v6947 = vpop.f32.mrf.mxu0
    %v6948 = vpop.f32.mrf.mxu0
    %6949 = vdwg.mxu0
    %6950 = vmatprep.subr.bf16.mxu0 %v4818
    %6951 = vmatpush1.bf16.msra.mxu0 %v4817
    %6952 = vmatprep.subr.bf16.mxu0 %v4816
    %6953 = vmatpush1.bf16.msra.mxu0 %v4815
    %6954 = vmatprep.subr.bf16.mxu0 %v4814
    %6955 = vmatpush1.bf16.msra.mxu0 %v4813
    %6956 = vmatprep.subr.bf16.mxu0 %v4812
    %6957 = vmatpush1.bf16.msra.mxu0 %v4811
    %6958 = vmatprep.subr.bf16.mxu0 %v4810
    %6959 = vmatpush1.bf16.msra.mxu0 %v4809
    %6960 = vmatprep.subr.bf16.mxu0 %v4808
    %6961 = vmatpush1.bf16.msra.mxu0 %v4807
    %6962 = vmatprep.subr.bf16.mxu0 %v4806
    %6963 = vmatpush1.bf16.msra.mxu0 %v4805
    %6964 = vmatprep.subr.bf16.mxu0 %v4804
    %6965 = vmatpush1.bf16.msra.mxu0 %v4803
    %6966 = vmatprep.subr.bf16.mxu0 %v4834
    %6967 = vmatpush2.bf16.msra.mxu0 %v4833
    %6968 = vmatprep.subr.bf16.mxu0 %v4832
    %6969 = vmatpush2.bf16.msra.mxu0 %v4831
    %6970 = vmatprep.subr.bf16.mxu0 %v4830
    %6971 = vmatpush2.bf16.msra.mxu0 %v4829
    %6972 = vmatprep.subr.bf16.mxu0 %v4828
    %6973 = vmatpush2.bf16.msra.mxu0 %v4827
    %6974 = vmatprep.subr.bf16.mxu0 %v4826
    %6975 = vmatpush2.bf16.msra.mxu0 %v4825
    %6976 = vmatprep.subr.bf16.mxu0 %v4824
    %6977 = vmatpush2.bf16.msra.mxu0 %v4823
    %6978 = vmatprep.subr.bf16.mxu0 %v4822
    %6979 = vmatpush2.bf16.msra.mxu0 %v4821
    %6980 = vmatprep.subr.bf16.mxu0 %v4820
    %6981 = vmatpush2.bf16.msra.mxu0 %v4819
    %6982 = vmatprep.mubr.bf16.mxu0 %v1274
    %6983 = vmatmul.mubr.bf16.gmra.mxu0 %v1273
    %v6984 = vpop.f32.mrf.mxu0
    %v6985 = vadd.f32 %v6944, %v6984
    %v6986 = vpop.f32.mrf.mxu0
    %v6987 = vadd.f32 %v6946, %v6986
    %v6988 = vpop.f32.mrf.mxu0
    %v6989 = vpop.f32.mrf.mxu0
    %6990 = vdwg.mxu0
    %6991 = vmatprep.subr.bf16.mxu0 %v4850
    %6992 = vmatpush1.bf16.msra.mxu0 %v4849
    %6993 = vmatprep.subr.bf16.mxu0 %v4848
    %6994 = vmatpush1.bf16.msra.mxu0 %v4847
    %6995 = vmatprep.subr.bf16.mxu0 %v4846
    %6996 = vmatpush1.bf16.msra.mxu0 %v4845
    %6997 = vmatprep.subr.bf16.mxu0 %v4844
    %6998 = vmatpush1.bf16.msra.mxu0 %v4843
    %6999 = vmatprep.subr.bf16.mxu0 %v4842
    %7000 = vmatpush1.bf16.msra.mxu0 %v4841
    %7001 = vmatprep.subr.bf16.mxu0 %v4840
    %7002 = vmatpush1.bf16.msra.mxu0 %v4839
    %7003 = vmatprep.subr.bf16.mxu0 %v4838
    %7004 = vmatpush1.bf16.msra.mxu0 %v4837
    %7005 = vmatprep.subr.bf16.mxu0 %v4836
    %7006 = vmatpush1.bf16.msra.mxu0 %v4835
    %7007 = vmatprep.subr.bf16.mxu0 %v4866
    %7008 = vmatpush2.bf16.msra.mxu0 %v4865
    %7009 = vmatprep.subr.bf16.mxu0 %v4864
    %7010 = vmatpush2.bf16.msra.mxu0 %v4863
    %7011 = vmatprep.subr.bf16.mxu0 %v4862
    %7012 = vmatpush2.bf16.msra.mxu0 %v4861
    %7013 = vmatprep.subr.bf16.mxu0 %v4860
    %7014 = vmatpush2.bf16.msra.mxu0 %v4859
    %7015 = vmatprep.subr.bf16.mxu0 %v4858
    %7016 = vmatpush2.bf16.msra.mxu0 %v4857
    %7017 = vmatprep.subr.bf16.mxu0 %v4856
    %7018 = vmatpush2.bf16.msra.mxu0 %v4855
    %7019 = vmatprep.subr.bf16.mxu0 %v4854
    %7020 = vmatpush2.bf16.msra.mxu0 %v4853
    %7021 = vmatprep.subr.bf16.mxu0 %v4852
    %7022 = vmatpush2.bf16.msra.mxu0 %v4851
    %7023 = vmatprep.mubr.bf16.mxu0 %v1276
    %7024 = vmatmul.mubr.bf16.gmra.mxu0 %v1275
    %v7025 = vpop.f32.mrf.mxu0
    %v7026 = vadd.f32 %v6985, %v7025
    %v7027 = vpop.f32.mrf.mxu0
    %v7028 = vadd.f32 %v6987, %v7027
    %v7029 = vpop.f32.mrf.mxu0
    %v7030 = vpop.f32.mrf.mxu0
    %7031 = vdwg.mxu0
    %7032 = vmatprep.subr.bf16.mxu0 %v4882
    %7033 = vmatpush1.bf16.msra.mxu0 %v4881
    %7034 = vmatprep.subr.bf16.mxu0 %v4880
    %7035 = vmatpush1.bf16.msra.mxu0 %v4879
    %7036 = vmatprep.subr.bf16.mxu0 %v4878
    %7037 = vmatpush1.bf16.msra.mxu0 %v4877
    %7038 = vmatprep.subr.bf16.mxu0 %v4876
    %7039 = vmatpush1.bf16.msra.mxu0 %v4875
    %7040 = vmatprep.subr.bf16.mxu0 %v4874
    %7041 = vmatpush1.bf16.msra.mxu0 %v4873
    %7042 = vmatprep.subr.bf16.mxu0 %v4872
    %7043 = vmatpush1.bf16.msra.mxu0 %v4871
    %7044 = vmatprep.subr.bf16.mxu0 %v4870
    %7045 = vmatpush1.bf16.msra.mxu0 %v4869
    %7046 = vmatprep.subr.bf16.mxu0 %v4868
    %7047 = vmatpush1.bf16.msra.mxu0 %v4867
    %7048 = vmatprep.subr.bf16.mxu0 %v4898
    %7049 = vmatpush2.bf16.msra.mxu0 %v4897
    %7050 = vmatprep.subr.bf16.mxu0 %v4896
    %7051 = vmatpush2.bf16.msra.mxu0 %v4895
    %7052 = vmatprep.subr.bf16.mxu0 %v4894
    %7053 = vmatpush2.bf16.msra.mxu0 %v4893
    %7054 = vmatprep.subr.bf16.mxu0 %v4892
    %7055 = vmatpush2.bf16.msra.mxu0 %v4891
    %7056 = vmatprep.subr.bf16.mxu0 %v4890
    %7057 = vmatpush2.bf16.msra.mxu0 %v4889
    %7058 = vmatprep.subr.bf16.mxu0 %v4888
    %7059 = vmatpush2.bf16.msra.mxu0 %v4887
    %7060 = vmatprep.subr.bf16.mxu0 %v4886
    %7061 = vmatpush2.bf16.msra.mxu0 %v4885
    %7062 = vmatprep.subr.bf16.mxu0 %v4884
    %7063 = vmatpush2.bf16.msra.mxu0 %v4883
    %7064 = vmatprep.mubr.bf16.mxu0 %v1278
    %7065 = vmatmul.mubr.bf16.gmra.mxu0 %v1277
    %v7066 = vpop.f32.mrf.mxu0
    %v7067 = vadd.f32 %v7026, %v7066
    %v7068 = vpop.f32.mrf.mxu0
    %v7069 = vadd.f32 %v7028, %v7068
    %v7070 = vpop.f32.mrf.mxu0
    %v7071 = vpop.f32.mrf.mxu0
    %7072 = vdwg.mxu0
    %7073 = vmatprep.subr.bf16.mxu0 %v4914
    %7074 = vmatpush1.bf16.msra.mxu0 %v4913
    %7075 = vmatprep.subr.bf16.mxu0 %v4912
    %7076 = vmatpush1.bf16.msra.mxu0 %v4911
    %7077 = vmatprep.subr.bf16.mxu0 %v4910
    %7078 = vmatpush1.bf16.msra.mxu0 %v4909
    %7079 = vmatprep.subr.bf16.mxu0 %v4908
    %7080 = vmatpush1.bf16.msra.mxu0 %v4907
    %7081 = vmatprep.subr.bf16.mxu0 %v4906
    %7082 = vmatpush1.bf16.msra.mxu0 %v4905
    %7083 = vmatprep.subr.bf16.mxu0 %v4904
    %7084 = vmatpush1.bf16.msra.mxu0 %v4903
    %7085 = vmatprep.subr.bf16.mxu0 %v4902
    %7086 = vmatpush1.bf16.msra.mxu0 %v4901
    %7087 = vmatprep.subr.bf16.mxu0 %v4900
    %7088 = vmatpush1.bf16.msra.mxu0 %v4899
    %7089 = vmatprep.subr.bf16.mxu0 %v4930
    %7090 = vmatpush2.bf16.msra.mxu0 %v4929
    %7091 = vmatprep.subr.bf16.mxu0 %v4928
    %7092 = vmatpush2.bf16.msra.mxu0 %v4927
    %7093 = vmatprep.subr.bf16.mxu0 %v4926
    %7094 = vmatpush2.bf16.msra.mxu0 %v4925
    %7095 = vmatprep.subr.bf16.mxu0 %v4924
    %7096 = vmatpush2.bf16.msra.mxu0 %v4923
    %7097 = vmatprep.subr.bf16.mxu0 %v4922
    %7098 = vmatpush2.bf16.msra.mxu0 %v4921
    %7099 = vmatprep.subr.bf16.mxu0 %v4920
    %7100 = vmatpush2.bf16.msra.mxu0 %v4919
    %7101 = vmatprep.subr.bf16.mxu0 %v4918
    %7102 = vmatpush2.bf16.msra.mxu0 %v4917
    %7103 = vmatprep.subr.bf16.mxu0 %v4916
    %7104 = vmatpush2.bf16.msra.mxu0 %v4915
    %7105 = vmatprep.mubr.bf16.mxu0 %v1280
    %7106 = vmatmul.mubr.bf16.gmra.mxu0 %v1279
    %v7107 = vpop.f32.mrf.mxu0
    %v7108 = vadd.f32 %v7067, %v7107
    %v7109 = vpop.f32.mrf.mxu0
    %v7110 = vadd.f32 %v7069, %v7109
    %v7111 = vpop.f32.mrf.mxu0
    %v7112 = vpop.f32.mrf.mxu0
    %7113 = vdwg.mxu0
    %7114 = vmatprep.subr.bf16.mxu0 %v4946
    %7115 = vmatpush1.bf16.msra.mxu0 %v4945
    %7116 = vmatprep.subr.bf16.mxu0 %v4944
    %7117 = vmatpush1.bf16.msra.mxu0 %v4943
    %7118 = vmatprep.subr.bf16.mxu0 %v4942
    %7119 = vmatpush1.bf16.msra.mxu0 %v4941
    %7120 = vmatprep.subr.bf16.mxu0 %v4940
    %7121 = vmatpush1.bf16.msra.mxu0 %v4939
    %7122 = vmatprep.subr.bf16.mxu0 %v4938
    %7123 = vmatpush1.bf16.msra.mxu0 %v4937
    %7124 = vmatprep.subr.bf16.mxu0 %v4936
    %7125 = vmatpush1.bf16.msra.mxu0 %v4935
    %7126 = vmatprep.subr.bf16.mxu0 %v4934
    %7127 = vmatpush1.bf16.msra.mxu0 %v4933
    %7128 = vmatprep.subr.bf16.mxu0 %v4932
    %7129 = vmatpush1.bf16.msra.mxu0 %v4931
    %7130 = vmatprep.subr.bf16.mxu0 %v4962
    %7131 = vmatpush2.bf16.msra.mxu0 %v4961
    %7132 = vmatprep.subr.bf16.mxu0 %v4960
    %7133 = vmatpush2.bf16.msra.mxu0 %v4959
    %7134 = vmatprep.subr.bf16.mxu0 %v4958
    %7135 = vmatpush2.bf16.msra.mxu0 %v4957
    %7136 = vmatprep.subr.bf16.mxu0 %v4956
    %7137 = vmatpush2.bf16.msra.mxu0 %v4955
    %7138 = vmatprep.subr.bf16.mxu0 %v4954
    %7139 = vmatpush2.bf16.msra.mxu0 %v4953
    %7140 = vmatprep.subr.bf16.mxu0 %v4952
    %7141 = vmatpush2.bf16.msra.mxu0 %v4951
    %7142 = vmatprep.subr.bf16.mxu0 %v4950
    %7143 = vmatpush2.bf16.msra.mxu0 %v4949
    %7144 = vmatprep.subr.bf16.mxu0 %v4948
    %7145 = vmatpush2.bf16.msra.mxu0 %v4947
    %7146 = vmatprep.mubr.bf16.mxu0 %v1282
    %7147 = vmatmul.mubr.bf16.gmra.mxu0 %v1281
    %v7148 = vpop.f32.mrf.mxu0
    %v7149 = vadd.f32 %v7108, %v7148
    %v7150 = vpop.f32.mrf.mxu0
    %v7151 = vadd.f32 %v7110, %v7150
    %v7152 = vpop.f32.mrf.mxu0
    %v7153 = vpop.f32.mrf.mxu0
    %7154 = vdwg.mxu0
    %7155 = vmatprep.subr.bf16.mxu0 %v4978
    %7156 = vmatpush1.bf16.msra.mxu0 %v4977
    %7157 = vmatprep.subr.bf16.mxu0 %v4976
    %7158 = vmatpush1.bf16.msra.mxu0 %v4975
    %7159 = vmatprep.subr.bf16.mxu0 %v4974
    %7160 = vmatpush1.bf16.msra.mxu0 %v4973
    %7161 = vmatprep.subr.bf16.mxu0 %v4972
    %7162 = vmatpush1.bf16.msra.mxu0 %v4971
    %7163 = vmatprep.subr.bf16.mxu0 %v4970
    %7164 = vmatpush1.bf16.msra.mxu0 %v4969
    %7165 = vmatprep.subr.bf16.mxu0 %v4968
    %7166 = vmatpush1.bf16.msra.mxu0 %v4967
    %7167 = vmatprep.subr.bf16.mxu0 %v4966
    %7168 = vmatpush1.bf16.msra.mxu0 %v4965
    %7169 = vmatprep.subr.bf16.mxu0 %v4964
    %7170 = vmatpush1.bf16.msra.mxu0 %v4963
    %7171 = vmatprep.subr.bf16.mxu0 %v4994
    %7172 = vmatpush2.bf16.msra.mxu0 %v4993
    %7173 = vmatprep.subr.bf16.mxu0 %v4992
    %7174 = vmatpush2.bf16.msra.mxu0 %v4991
    %7175 = vmatprep.subr.bf16.mxu0 %v4990
    %7176 = vmatpush2.bf16.msra.mxu0 %v4989
    %7177 = vmatprep.subr.bf16.mxu0 %v4988
    %7178 = vmatpush2.bf16.msra.mxu0 %v4987
    %7179 = vmatprep.subr.bf16.mxu0 %v4986
    %7180 = vmatpush2.bf16.msra.mxu0 %v4985
    %7181 = vmatprep.subr.bf16.mxu0 %v4984
    %7182 = vmatpush2.bf16.msra.mxu0 %v4983
    %7183 = vmatprep.subr.bf16.mxu0 %v4982
    %7184 = vmatpush2.bf16.msra.mxu0 %v4981
    %7185 = vmatprep.subr.bf16.mxu0 %v4980
    %7186 = vmatpush2.bf16.msra.mxu0 %v4979
    %7187 = vmatprep.mubr.bf16.mxu0 %v1284
    %7188 = vmatmul.mubr.bf16.gmra.mxu0 %v1283
    %v7189 = vpop.f32.mrf.mxu0
    %v7190 = vadd.f32 %v7149, %v7189
    %v7191 = vpop.f32.mrf.mxu0
    %v7192 = vadd.f32 %v7151, %v7191
    %v7193 = vpop.f32.mrf.mxu0
    %v7194 = vpop.f32.mrf.mxu0
    %7195 = vdwg.mxu0
    %7196 = vmatprep.subr.bf16.mxu0 %v5010
    %7197 = vmatpush1.bf16.msra.mxu0 %v5009
    %7198 = vmatprep.subr.bf16.mxu0 %v5008
    %7199 = vmatpush1.bf16.msra.mxu0 %v5007
    %7200 = vmatprep.subr.bf16.mxu0 %v5006
    %7201 = vmatpush1.bf16.msra.mxu0 %v5005
    %7202 = vmatprep.subr.bf16.mxu0 %v5004
    %7203 = vmatpush1.bf16.msra.mxu0 %v5003
    %7204 = vmatprep.subr.bf16.mxu0 %v5002
    %7205 = vmatpush1.bf16.msra.mxu0 %v5001
    %7206 = vmatprep.subr.bf16.mxu0 %v5000
    %7207 = vmatpush1.bf16.msra.mxu0 %v4999
    %7208 = vmatprep.subr.bf16.mxu0 %v4998
    %7209 = vmatpush1.bf16.msra.mxu0 %v4997
    %7210 = vmatprep.subr.bf16.mxu0 %v4996
    %7211 = vmatpush1.bf16.msra.mxu0 %v4995
    %7212 = vmatprep.subr.bf16.mxu0 %v5026
    %7213 = vmatpush2.bf16.msra.mxu0 %v5025
    %7214 = vmatprep.subr.bf16.mxu0 %v5024
    %7215 = vmatpush2.bf16.msra.mxu0 %v5023
    %7216 = vmatprep.subr.bf16.mxu0 %v5022
    %7217 = vmatpush2.bf16.msra.mxu0 %v5021
    %7218 = vmatprep.subr.bf16.mxu0 %v5020
    %7219 = vmatpush2.bf16.msra.mxu0 %v5019
    %7220 = vmatprep.subr.bf16.mxu0 %v5018
    %7221 = vmatpush2.bf16.msra.mxu0 %v5017
    %7222 = vmatprep.subr.bf16.mxu0 %v5016
    %7223 = vmatpush2.bf16.msra.mxu0 %v5015
    %7224 = vmatprep.subr.bf16.mxu0 %v5014
    %7225 = vmatpush2.bf16.msra.mxu0 %v5013
    %7226 = vmatprep.subr.bf16.mxu0 %v5012
    %7227 = vmatpush2.bf16.msra.mxu0 %v5011
    %7228 = vmatprep.mubr.bf16.mxu0 %v1286
    %7229 = vmatmul.mubr.bf16.gmra.mxu0 %v1285
    %v7230 = vpop.f32.mrf.mxu0
    %v7231 = vadd.f32 %v7190, %v7230
    %v7232 = vpop.f32.mrf.mxu0
    %v7233 = vadd.f32 %v7192, %v7232
    %v7234 = vpop.f32.mrf.mxu0
    %v7235 = vpop.f32.mrf.mxu0
    %7236 = vdwg.mxu0
    %7237 = vmatprep.subr.bf16.mxu0 %v5042
    %7238 = vmatpush1.bf16.msra.mxu0 %v5041
    %7239 = vmatprep.subr.bf16.mxu0 %v5040
    %7240 = vmatpush1.bf16.msra.mxu0 %v5039
    %7241 = vmatprep.subr.bf16.mxu0 %v5038
    %7242 = vmatpush1.bf16.msra.mxu0 %v5037
    %7243 = vmatprep.subr.bf16.mxu0 %v5036
    %7244 = vmatpush1.bf16.msra.mxu0 %v5035
    %7245 = vmatprep.subr.bf16.mxu0 %v5034
    %7246 = vmatpush1.bf16.msra.mxu0 %v5033
    %7247 = vmatprep.subr.bf16.mxu0 %v5032
    %7248 = vmatpush1.bf16.msra.mxu0 %v5031
    %7249 = vmatprep.subr.bf16.mxu0 %v5030
    %7250 = vmatpush1.bf16.msra.mxu0 %v5029
    %7251 = vmatprep.subr.bf16.mxu0 %v5028
    %7252 = vmatpush1.bf16.msra.mxu0 %v5027
    %7253 = vmatprep.subr.bf16.mxu0 %v5058
    %7254 = vmatpush2.bf16.msra.mxu0 %v5057
    %7255 = vmatprep.subr.bf16.mxu0 %v5056
    %7256 = vmatpush2.bf16.msra.mxu0 %v5055
    %7257 = vmatprep.subr.bf16.mxu0 %v5054
    %7258 = vmatpush2.bf16.msra.mxu0 %v5053
    %7259 = vmatprep.subr.bf16.mxu0 %v5052
    %7260 = vmatpush2.bf16.msra.mxu0 %v5051
    %7261 = vmatprep.subr.bf16.mxu0 %v5050
    %7262 = vmatpush2.bf16.msra.mxu0 %v5049
    %7263 = vmatprep.subr.bf16.mxu0 %v5048
    %7264 = vmatpush2.bf16.msra.mxu0 %v5047
    %7265 = vmatprep.subr.bf16.mxu0 %v5046
    %7266 = vmatpush2.bf16.msra.mxu0 %v5045
    %7267 = vmatprep.subr.bf16.mxu0 %v5044
    %7268 = vmatpush2.bf16.msra.mxu0 %v5043
    %7269 = vmatprep.mubr.bf16.mxu0 %v1288
    %7270 = vmatmul.mubr.bf16.gmra.mxu0 %v1287
    %v7271 = vpop.f32.mrf.mxu0
    %v7272 = vadd.f32 %v7231, %v7271
    %v7273 = vpop.f32.mrf.mxu0
    %v7274 = vadd.f32 %v7233, %v7273
    %v7275 = vpop.f32.mrf.mxu0
    %v7276 = vpop.f32.mrf.mxu0
    %7277 = vdwg.mxu0
    %7278 = vmatprep.subr.bf16.mxu0 %v5074
    %7279 = vmatpush1.bf16.msra.mxu0 %v5073
    %7280 = vmatprep.subr.bf16.mxu0 %v5072
    %7281 = vmatpush1.bf16.msra.mxu0 %v5071
    %7282 = vmatprep.subr.bf16.mxu0 %v5070
    %7283 = vmatpush1.bf16.msra.mxu0 %v5069
    %7284 = vmatprep.subr.bf16.mxu0 %v5068
    %7285 = vmatpush1.bf16.msra.mxu0 %v5067
    %7286 = vmatprep.subr.bf16.mxu0 %v5066
    %7287 = vmatpush1.bf16.msra.mxu0 %v5065
    %7288 = vmatprep.subr.bf16.mxu0 %v5064
    %7289 = vmatpush1.bf16.msra.mxu0 %v5063
    %7290 = vmatprep.subr.bf16.mxu0 %v5062
    %7291 = vmatpush1.bf16.msra.mxu0 %v5061
    %7292 = vmatprep.subr.bf16.mxu0 %v5060
    %7293 = vmatpush1.bf16.msra.mxu0 %v5059
    %7294 = vmatprep.subr.bf16.mxu0 %v5090
    %7295 = vmatpush2.bf16.msra.mxu0 %v5089
    %7296 = vmatprep.subr.bf16.mxu0 %v5088
    %7297 = vmatpush2.bf16.msra.mxu0 %v5087
    %7298 = vmatprep.subr.bf16.mxu0 %v5086
    %7299 = vmatpush2.bf16.msra.mxu0 %v5085
    %7300 = vmatprep.subr.bf16.mxu0 %v5084
    %7301 = vmatpush2.bf16.msra.mxu0 %v5083
    %7302 = vmatprep.subr.bf16.mxu0 %v5082
    %7303 = vmatpush2.bf16.msra.mxu0 %v5081
    %7304 = vmatprep.subr.bf16.mxu0 %v5080
    %7305 = vmatpush2.bf16.msra.mxu0 %v5079
    %7306 = vmatprep.subr.bf16.mxu0 %v5078
    %7307 = vmatpush2.bf16.msra.mxu0 %v5077
    %7308 = vmatprep.subr.bf16.mxu0 %v5076
    %7309 = vmatpush2.bf16.msra.mxu0 %v5075
    %7310 = vmatprep.mubr.bf16.mxu0 %v1290
    %7311 = vmatmul.mubr.bf16.gmra.mxu0 %v1289
    %v7312 = vpop.f32.mrf.mxu0
    %v7313 = vadd.f32 %v7272, %v7312
    %v7314 = vpop.f32.mrf.mxu0
    %v7315 = vadd.f32 %v7274, %v7314
    %v7316 = vpop.f32.mrf.mxu0
    %v7317 = vpop.f32.mrf.mxu0
    %7318 = vdwg.mxu0
    %7319 = vmatprep.subr.bf16.mxu0 %v5106
    %7320 = vmatpush1.bf16.msra.mxu0 %v5105
    %7321 = vmatprep.subr.bf16.mxu0 %v5104
    %7322 = vmatpush1.bf16.msra.mxu0 %v5103
    %7323 = vmatprep.subr.bf16.mxu0 %v5102
    %7324 = vmatpush1.bf16.msra.mxu0 %v5101
    %7325 = vmatprep.subr.bf16.mxu0 %v5100
    %7326 = vmatpush1.bf16.msra.mxu0 %v5099
    %7327 = vmatprep.subr.bf16.mxu0 %v5098
    %7328 = vmatpush1.bf16.msra.mxu0 %v5097
    %7329 = vmatprep.subr.bf16.mxu0 %v5096
    %7330 = vmatpush1.bf16.msra.mxu0 %v5095
    %7331 = vmatprep.subr.bf16.mxu0 %v5094
    %7332 = vmatpush1.bf16.msra.mxu0 %v5093
    %7333 = vmatprep.subr.bf16.mxu0 %v5092
    %7334 = vmatpush1.bf16.msra.mxu0 %v5091
    %7335 = vmatprep.subr.bf16.mxu0 %v5122
    %7336 = vmatpush2.bf16.msra.mxu0 %v5121
    %7337 = vmatprep.subr.bf16.mxu0 %v5120
    %7338 = vmatpush2.bf16.msra.mxu0 %v5119
    %7339 = vmatprep.subr.bf16.mxu0 %v5118
    %7340 = vmatpush2.bf16.msra.mxu0 %v5117
    %7341 = vmatprep.subr.bf16.mxu0 %v5116
    %7342 = vmatpush2.bf16.msra.mxu0 %v5115
    %7343 = vmatprep.subr.bf16.mxu0 %v5114
    %7344 = vmatpush2.bf16.msra.mxu0 %v5113
    %7345 = vmatprep.subr.bf16.mxu0 %v5112
    %7346 = vmatpush2.bf16.msra.mxu0 %v5111
    %7347 = vmatprep.subr.bf16.mxu0 %v5110
    %7348 = vmatpush2.bf16.msra.mxu0 %v5109
    %7349 = vmatprep.subr.bf16.mxu0 %v5108
    %7350 = vmatpush2.bf16.msra.mxu0 %v5107
    %7351 = vmatprep.mubr.bf16.mxu0 %v1292
    %7352 = vmatmul.mubr.bf16.gmra.mxu0 %v1291
    %v7353 = vpop.f32.mrf.mxu0
    %v7354 = vadd.f32 %v7313, %v7353
    %v7355 = vpop.f32.mrf.mxu0
    %v7356 = vadd.f32 %v7315, %v7355
    %v7357 = vpop.f32.mrf.mxu0
    %v7358 = vpop.f32.mrf.mxu0
    %7359 = vdwg.mxu0
    %7360 = vmatprep.subr.bf16.mxu0 %v5138
    %7361 = vmatpush1.bf16.msra.mxu0 %v5137
    %7362 = vmatprep.subr.bf16.mxu0 %v5136
    %7363 = vmatpush1.bf16.msra.mxu0 %v5135
    %7364 = vmatprep.subr.bf16.mxu0 %v5134
    %7365 = vmatpush1.bf16.msra.mxu0 %v5133
    %7366 = vmatprep.subr.bf16.mxu0 %v5132
    %7367 = vmatpush1.bf16.msra.mxu0 %v5131
    %7368 = vmatprep.subr.bf16.mxu0 %v5130
    %7369 = vmatpush1.bf16.msra.mxu0 %v5129
    %7370 = vmatprep.subr.bf16.mxu0 %v5128
    %7371 = vmatpush1.bf16.msra.mxu0 %v5127
    %7372 = vmatprep.subr.bf16.mxu0 %v5126
    %7373 = vmatpush1.bf16.msra.mxu0 %v5125
    %7374 = vmatprep.subr.bf16.mxu0 %v5124
    %7375 = vmatpush1.bf16.msra.mxu0 %v5123
    %7376 = vmatprep.subr.bf16.mxu0 %v5154
    %7377 = vmatpush2.bf16.msra.mxu0 %v5153
    %7378 = vmatprep.subr.bf16.mxu0 %v5152
    %7379 = vmatpush2.bf16.msra.mxu0 %v5151
    %7380 = vmatprep.subr.bf16.mxu0 %v5150
    %7381 = vmatpush2.bf16.msra.mxu0 %v5149
    %7382 = vmatprep.subr.bf16.mxu0 %v5148
    %7383 = vmatpush2.bf16.msra.mxu0 %v5147
    %7384 = vmatprep.subr.bf16.mxu0 %v5146
    %7385 = vmatpush2.bf16.msra.mxu0 %v5145
    %7386 = vmatprep.subr.bf16.mxu0 %v5144
    %7387 = vmatpush2.bf16.msra.mxu0 %v5143
    %7388 = vmatprep.subr.bf16.mxu0 %v5142
    %7389 = vmatpush2.bf16.msra.mxu0 %v5141
    %7390 = vmatprep.subr.bf16.mxu0 %v5140
    %7391 = vmatpush2.bf16.msra.mxu0 %v5139
    %7392 = vmatprep.mubr.bf16.mxu0 %v1294
    %7393 = vmatmul.mubr.bf16.gmra.mxu0 %v1293
    %v7394 = vpop.f32.mrf.mxu0
    %v7395 = vadd.f32 %v7354, %v7394
    %v7396 = vpop.f32.mrf.mxu0
    %v7397 = vadd.f32 %v7356, %v7396
    %v7398 = vpop.f32.mrf.mxu0
    %v7399 = vpop.f32.mrf.mxu0
    %7400 = vdwg.mxu0
    %7401 = vmatprep.subr.bf16.mxu0 %v5170
    %7402 = vmatpush1.bf16.msra.mxu0 %v5169
    %7403 = vmatprep.subr.bf16.mxu0 %v5168
    %7404 = vmatpush1.bf16.msra.mxu0 %v5167
    %7405 = vmatprep.subr.bf16.mxu0 %v5166
    %7406 = vmatpush1.bf16.msra.mxu0 %v5165
    %7407 = vmatprep.subr.bf16.mxu0 %v5164
    %7408 = vmatpush1.bf16.msra.mxu0 %v5163
    %7409 = vmatprep.subr.bf16.mxu0 %v5162
    %7410 = vmatpush1.bf16.msra.mxu0 %v5161
    %7411 = vmatprep.subr.bf16.mxu0 %v5160
    %7412 = vmatpush1.bf16.msra.mxu0 %v5159
    %7413 = vmatprep.subr.bf16.mxu0 %v5158
    %7414 = vmatpush1.bf16.msra.mxu0 %v5157
    %7415 = vmatprep.subr.bf16.mxu0 %v5156
    %7416 = vmatpush1.bf16.msra.mxu0 %v5155
    %7417 = vmatprep.subr.bf16.mxu0 %v5186
    %7418 = vmatpush2.bf16.msra.mxu0 %v5185
    %7419 = vmatprep.subr.bf16.mxu0 %v5184
    %7420 = vmatpush2.bf16.msra.mxu0 %v5183
    %7421 = vmatprep.subr.bf16.mxu0 %v5182
    %7422 = vmatpush2.bf16.msra.mxu0 %v5181
    %7423 = vmatprep.subr.bf16.mxu0 %v5180
    %7424 = vmatpush2.bf16.msra.mxu0 %v5179
    %7425 = vmatprep.subr.bf16.mxu0 %v5178
    %7426 = vmatpush2.bf16.msra.mxu0 %v5177
    %7427 = vmatprep.subr.bf16.mxu0 %v5176
    %7428 = vmatpush2.bf16.msra.mxu0 %v5175
    %7429 = vmatprep.subr.bf16.mxu0 %v5174
    %7430 = vmatpush2.bf16.msra.mxu0 %v5173
    %7431 = vmatprep.subr.bf16.mxu0 %v5172
    %7432 = vmatpush2.bf16.msra.mxu0 %v5171
    %7433 = vmatprep.mubr.bf16.mxu0 %v1296
    %7434 = vmatmul.mubr.bf16.gmra.mxu0 %v1295
    %v7435 = vpop.f32.mrf.mxu0
    %v7436 = vadd.f32 %v7395, %v7435
    %v7437 = vpop.f32.mrf.mxu0
    %v7438 = vadd.f32 %v7397, %v7437
    %v7439 = vpop.f32.mrf.mxu0
    %v7440 = vpop.f32.mrf.mxu0
    %7441 = vdwg.mxu0
    %7442 = vmatprep.subr.bf16.mxu0 %v5202
    %7443 = vmatpush1.bf16.msra.mxu0 %v5201
    %7444 = vmatprep.subr.bf16.mxu0 %v5200
    %7445 = vmatpush1.bf16.msra.mxu0 %v5199
    %7446 = vmatprep.subr.bf16.mxu0 %v5198
    %7447 = vmatpush1.bf16.msra.mxu0 %v5197
    %7448 = vmatprep.subr.bf16.mxu0 %v5196
    %7449 = vmatpush1.bf16.msra.mxu0 %v5195
    %7450 = vmatprep.subr.bf16.mxu0 %v5194
    %7451 = vmatpush1.bf16.msra.mxu0 %v5193
    %7452 = vmatprep.subr.bf16.mxu0 %v5192
    %7453 = vmatpush1.bf16.msra.mxu0 %v5191
    %7454 = vmatprep.subr.bf16.mxu0 %v5190
    %7455 = vmatpush1.bf16.msra.mxu0 %v5189
    %7456 = vmatprep.subr.bf16.mxu0 %v5188
    %7457 = vmatpush1.bf16.msra.mxu0 %v5187
    %7458 = vmatprep.subr.bf16.mxu0 %v5218
    %7459 = vmatpush2.bf16.msra.mxu0 %v5217
    %7460 = vmatprep.subr.bf16.mxu0 %v5216
    %7461 = vmatpush2.bf16.msra.mxu0 %v5215
    %7462 = vmatprep.subr.bf16.mxu0 %v5214
    %7463 = vmatpush2.bf16.msra.mxu0 %v5213
    %7464 = vmatprep.subr.bf16.mxu0 %v5212
    %7465 = vmatpush2.bf16.msra.mxu0 %v5211
    %7466 = vmatprep.subr.bf16.mxu0 %v5210
    %7467 = vmatpush2.bf16.msra.mxu0 %v5209
    %7468 = vmatprep.subr.bf16.mxu0 %v5208
    %7469 = vmatpush2.bf16.msra.mxu0 %v5207
    %7470 = vmatprep.subr.bf16.mxu0 %v5206
    %7471 = vmatpush2.bf16.msra.mxu0 %v5205
    %7472 = vmatprep.subr.bf16.mxu0 %v5204
    %7473 = vmatpush2.bf16.msra.mxu0 %v5203
    %7474 = vmatprep.mubr.bf16.mxu0 %v1298
    %7475 = vmatmul.mubr.bf16.gmra.mxu0 %v1297
    %v7476 = vpop.f32.mrf.mxu0
    %v7477 = vadd.f32 %v7436, %v7476
    %v7478 = vpop.f32.mrf.mxu0
    %v7479 = vadd.f32 %v7438, %v7478
    %v7480 = vpop.f32.mrf.mxu0
    %v7481 = vpop.f32.mrf.mxu0
    %7482 = vdwg.mxu0
    %7483 = vmatprep.subr.bf16.mxu0 %v5234
    %7484 = vmatpush1.bf16.msra.mxu0 %v5233
    %7485 = vmatprep.subr.bf16.mxu0 %v5232
    %7486 = vmatpush1.bf16.msra.mxu0 %v5231
    %7487 = vmatprep.subr.bf16.mxu0 %v5230
    %7488 = vmatpush1.bf16.msra.mxu0 %v5229
    %7489 = vmatprep.subr.bf16.mxu0 %v5228
    %7490 = vmatpush1.bf16.msra.mxu0 %v5227
    %7491 = vmatprep.subr.bf16.mxu0 %v5226
    %7492 = vmatpush1.bf16.msra.mxu0 %v5225
    %7493 = vmatprep.subr.bf16.mxu0 %v5224
    %7494 = vmatpush1.bf16.msra.mxu0 %v5223
    %7495 = vmatprep.subr.bf16.mxu0 %v5222
    %7496 = vmatpush1.bf16.msra.mxu0 %v5221
    %7497 = vmatprep.subr.bf16.mxu0 %v5220
    %7498 = vmatpush1.bf16.msra.mxu0 %v5219
    %7499 = vmatprep.subr.bf16.mxu0 %v5250
    %7500 = vmatpush2.bf16.msra.mxu0 %v5249
    %7501 = vmatprep.subr.bf16.mxu0 %v5248
    %7502 = vmatpush2.bf16.msra.mxu0 %v5247
    %7503 = vmatprep.subr.bf16.mxu0 %v5246
    %7504 = vmatpush2.bf16.msra.mxu0 %v5245
    %7505 = vmatprep.subr.bf16.mxu0 %v5244
    %7506 = vmatpush2.bf16.msra.mxu0 %v5243
    %7507 = vmatprep.subr.bf16.mxu0 %v5242
    %7508 = vmatpush2.bf16.msra.mxu0 %v5241
    %7509 = vmatprep.subr.bf16.mxu0 %v5240
    %7510 = vmatpush2.bf16.msra.mxu0 %v5239
    %7511 = vmatprep.subr.bf16.mxu0 %v5238
    %7512 = vmatpush2.bf16.msra.mxu0 %v5237
    %7513 = vmatprep.subr.bf16.mxu0 %v5236
    %7514 = vmatpush2.bf16.msra.mxu0 %v5235
    %7515 = vmatprep.mubr.bf16.mxu0 %v1300
    %7516 = vmatmul.mubr.bf16.gmra.mxu0 %v1299
    %v7517 = vpop.f32.mrf.mxu0
    %v7518 = vadd.f32 %v7477, %v7517
    %v7519 = vpop.f32.mrf.mxu0
    %v7520 = vadd.f32 %v7479, %v7519
    %v7521 = vpop.f32.mrf.mxu0
    %v7522 = vpop.f32.mrf.mxu0
    %7523 = vdwg.mxu0
    %7524 = vmatprep.subr.bf16.mxu0 %v5266
    %7525 = vmatpush1.bf16.msra.mxu0 %v5265
    %7526 = vmatprep.subr.bf16.mxu0 %v5264
    %7527 = vmatpush1.bf16.msra.mxu0 %v5263
    %7528 = vmatprep.subr.bf16.mxu0 %v5262
    %7529 = vmatpush1.bf16.msra.mxu0 %v5261
    %7530 = vmatprep.subr.bf16.mxu0 %v5260
    %7531 = vmatpush1.bf16.msra.mxu0 %v5259
    %7532 = vmatprep.subr.bf16.mxu0 %v5258
    %7533 = vmatpush1.bf16.msra.mxu0 %v5257
    %7534 = vmatprep.subr.bf16.mxu0 %v5256
    %7535 = vmatpush1.bf16.msra.mxu0 %v5255
    %7536 = vmatprep.subr.bf16.mxu0 %v5254
    %7537 = vmatpush1.bf16.msra.mxu0 %v5253
    %7538 = vmatprep.subr.bf16.mxu0 %v5252
    %7539 = vmatpush1.bf16.msra.mxu0 %v5251
    %7540 = vmatprep.subr.bf16.mxu0 %v5282
    %7541 = vmatpush2.bf16.msra.mxu0 %v5281
    %7542 = vmatprep.subr.bf16.mxu0 %v5280
    %7543 = vmatpush2.bf16.msra.mxu0 %v5279
    %7544 = vmatprep.subr.bf16.mxu0 %v5278
    %7545 = vmatpush2.bf16.msra.mxu0 %v5277
    %7546 = vmatprep.subr.bf16.mxu0 %v5276
    %7547 = vmatpush2.bf16.msra.mxu0 %v5275
    %7548 = vmatprep.subr.bf16.mxu0 %v5274
    %7549 = vmatpush2.bf16.msra.mxu0 %v5273
    %7550 = vmatprep.subr.bf16.mxu0 %v5272
    %7551 = vmatpush2.bf16.msra.mxu0 %v5271
    %7552 = vmatprep.subr.bf16.mxu0 %v5270
    %7553 = vmatpush2.bf16.msra.mxu0 %v5269
    %7554 = vmatprep.subr.bf16.mxu0 %v5268
    %7555 = vmatpush2.bf16.msra.mxu0 %v5267
    %7556 = vmatprep.mubr.bf16.mxu0 %v1302
    %7557 = vmatmul.mubr.bf16.gmra.mxu0 %v1301
    %v7558 = vpop.f32.mrf.mxu0
    %v7559 = vadd.f32 %v7518, %v7558
    %v7560 = vpop.f32.mrf.mxu0
    %v7561 = vadd.f32 %v7520, %v7560
    %v7562 = vpop.f32.mrf.mxu0
    %v7563 = vpop.f32.mrf.mxu0
    %7564 = vdwg.mxu0
    %7565 = vmatprep.subr.bf16.mxu0 %v5298
    %7566 = vmatpush1.bf16.msra.mxu0 %v5297
    %7567 = vmatprep.subr.bf16.mxu0 %v5296
    %7568 = vmatpush1.bf16.msra.mxu0 %v5295
    %7569 = vmatprep.subr.bf16.mxu0 %v5294
    %7570 = vmatpush1.bf16.msra.mxu0 %v5293
    %7571 = vmatprep.subr.bf16.mxu0 %v5292
    %7572 = vmatpush1.bf16.msra.mxu0 %v5291
    %7573 = vmatprep.subr.bf16.mxu0 %v5290
    %7574 = vmatpush1.bf16.msra.mxu0 %v5289
    %7575 = vmatprep.subr.bf16.mxu0 %v5288
    %7576 = vmatpush1.bf16.msra.mxu0 %v5287
    %7577 = vmatprep.subr.bf16.mxu0 %v5286
    %7578 = vmatpush1.bf16.msra.mxu0 %v5285
    %7579 = vmatprep.subr.bf16.mxu0 %v5284
    %7580 = vmatpush1.bf16.msra.mxu0 %v5283
    %7581 = vmatprep.subr.bf16.mxu0 %v5314
    %7582 = vmatpush2.bf16.msra.mxu0 %v5313
    %7583 = vmatprep.subr.bf16.mxu0 %v5312
    %7584 = vmatpush2.bf16.msra.mxu0 %v5311
    %7585 = vmatprep.subr.bf16.mxu0 %v5310
    %7586 = vmatpush2.bf16.msra.mxu0 %v5309
    %7587 = vmatprep.subr.bf16.mxu0 %v5308
    %7588 = vmatpush2.bf16.msra.mxu0 %v5307
    %7589 = vmatprep.subr.bf16.mxu0 %v5306
    %7590 = vmatpush2.bf16.msra.mxu0 %v5305
    %7591 = vmatprep.subr.bf16.mxu0 %v5304
    %7592 = vmatpush2.bf16.msra.mxu0 %v5303
    %7593 = vmatprep.subr.bf16.mxu0 %v5302
    %7594 = vmatpush2.bf16.msra.mxu0 %v5301
    %7595 = vmatprep.subr.bf16.mxu0 %v5300
    %7596 = vmatpush2.bf16.msra.mxu0 %v5299
    %7597 = vmatprep.mubr.bf16.mxu0 %v1304
    %7598 = vmatmul.mubr.bf16.gmra.mxu0 %v1303
    %v7599 = vpop.f32.mrf.mxu0
    %v7600 = vadd.f32 %v7559, %v7599
    %v7601 = vpop.f32.mrf.mxu0
    %v7602 = vadd.f32 %v7561, %v7601
    %v7603 = vpop.f32.mrf.mxu0
    %v7604 = vpop.f32.mrf.mxu0
    %7605 = vdwg.mxu0
    %7606 = vmatprep.subr.bf16.mxu0 %v5330
    %7607 = vmatpush1.bf16.msra.mxu0 %v5329
    %7608 = vmatprep.subr.bf16.mxu0 %v5328
    %7609 = vmatpush1.bf16.msra.mxu0 %v5327
    %7610 = vmatprep.subr.bf16.mxu0 %v5326
    %7611 = vmatpush1.bf16.msra.mxu0 %v5325
    %7612 = vmatprep.subr.bf16.mxu0 %v5324
    %7613 = vmatpush1.bf16.msra.mxu0 %v5323
    %7614 = vmatprep.subr.bf16.mxu0 %v5322
    %7615 = vmatpush1.bf16.msra.mxu0 %v5321
    %7616 = vmatprep.subr.bf16.mxu0 %v5320
    %7617 = vmatpush1.bf16.msra.mxu0 %v5319
    %7618 = vmatprep.subr.bf16.mxu0 %v5318
    %7619 = vmatpush1.bf16.msra.mxu0 %v5317
    %7620 = vmatprep.subr.bf16.mxu0 %v5316
    %7621 = vmatpush1.bf16.msra.mxu0 %v5315
    %7622 = vmatprep.subr.bf16.mxu0 %v5346
    %7623 = vmatpush2.bf16.msra.mxu0 %v5345
    %7624 = vmatprep.subr.bf16.mxu0 %v5344
    %7625 = vmatpush2.bf16.msra.mxu0 %v5343
    %7626 = vmatprep.subr.bf16.mxu0 %v5342
    %7627 = vmatpush2.bf16.msra.mxu0 %v5341
    %7628 = vmatprep.subr.bf16.mxu0 %v5340
    %7629 = vmatpush2.bf16.msra.mxu0 %v5339
    %7630 = vmatprep.subr.bf16.mxu0 %v5338
    %7631 = vmatpush2.bf16.msra.mxu0 %v5337
    %7632 = vmatprep.subr.bf16.mxu0 %v5336
    %7633 = vmatpush2.bf16.msra.mxu0 %v5335
    %7634 = vmatprep.subr.bf16.mxu0 %v5334
    %7635 = vmatpush2.bf16.msra.mxu0 %v5333
    %7636 = vmatprep.subr.bf16.mxu0 %v5332
    %7637 = vmatpush2.bf16.msra.mxu0 %v5331
    %7638 = vmatprep.mubr.bf16.mxu0 %v1306
    %7639 = vmatmul.mubr.bf16.gmra.mxu0 %v1305
    %v7640 = vpop.f32.mrf.mxu0
    %v7641 = vadd.f32 %v7600, %v7640
    %v7642 = vpop.f32.mrf.mxu0
    %v7643 = vadd.f32 %v7602, %v7642
    %v7644 = vpop.f32.mrf.mxu0
    %v7645 = vpop.f32.mrf.mxu0
    %7646 = vdwg.mxu0
    %7647 = vmatprep.subr.bf16.mxu0 %v5362
    %7648 = vmatpush1.bf16.msra.mxu0 %v5361
    %7649 = vmatprep.subr.bf16.mxu0 %v5360
    %7650 = vmatpush1.bf16.msra.mxu0 %v5359
    %7651 = vmatprep.subr.bf16.mxu0 %v5358
    %7652 = vmatpush1.bf16.msra.mxu0 %v5357
    %7653 = vmatprep.subr.bf16.mxu0 %v5356
    %7654 = vmatpush1.bf16.msra.mxu0 %v5355
    %7655 = vmatprep.subr.bf16.mxu0 %v5354
    %7656 = vmatpush1.bf16.msra.mxu0 %v5353
    %7657 = vmatprep.subr.bf16.mxu0 %v5352
    %7658 = vmatpush1.bf16.msra.mxu0 %v5351
    %7659 = vmatprep.subr.bf16.mxu0 %v5350
    %7660 = vmatpush1.bf16.msra.mxu0 %v5349
    %7661 = vmatprep.subr.bf16.mxu0 %v5348
    %7662 = vmatpush1.bf16.msra.mxu0 %v5347
    %7663 = vmatprep.subr.bf16.mxu0 %v5378
    %7664 = vmatpush2.bf16.msra.mxu0 %v5377
    %7665 = vmatprep.subr.bf16.mxu0 %v5376
    %7666 = vmatpush2.bf16.msra.mxu0 %v5375
    %7667 = vmatprep.subr.bf16.mxu0 %v5374
    %7668 = vmatpush2.bf16.msra.mxu0 %v5373
    %7669 = vmatprep.subr.bf16.mxu0 %v5372
    %7670 = vmatpush2.bf16.msra.mxu0 %v5371
    %7671 = vmatprep.subr.bf16.mxu0 %v5370
    %7672 = vmatpush2.bf16.msra.mxu0 %v5369
    %7673 = vmatprep.subr.bf16.mxu0 %v5368
    %7674 = vmatpush2.bf16.msra.mxu0 %v5367
    %7675 = vmatprep.subr.bf16.mxu0 %v5366
    %7676 = vmatpush2.bf16.msra.mxu0 %v5365
    %7677 = vmatprep.subr.bf16.mxu0 %v5364
    %7678 = vmatpush2.bf16.msra.mxu0 %v5363
    %7679 = vmatprep.mubr.bf16.mxu0 %v1308
    %7680 = vmatmul.mubr.bf16.gmra.mxu0 %v1307
    %v7681 = vpop.f32.mrf.mxu0
    %v7682 = vadd.f32 %v7641, %v7681
    %v7683 = vpop.f32.mrf.mxu0
    %v7684 = vadd.f32 %v7643, %v7683
    %v7685 = vpop.f32.mrf.mxu0
    %v7686 = vpop.f32.mrf.mxu0
    %7687 = vdwg.mxu0
    %7688 = vmatprep.subr.bf16.mxu0 %v5394
    %7689 = vmatpush1.bf16.msra.mxu0 %v5393
    %7690 = vmatprep.subr.bf16.mxu0 %v5392
    %7691 = vmatpush1.bf16.msra.mxu0 %v5391
    %7692 = vmatprep.subr.bf16.mxu0 %v5390
    %7693 = vmatpush1.bf16.msra.mxu0 %v5389
    %7694 = vmatprep.subr.bf16.mxu0 %v5388
    %7695 = vmatpush1.bf16.msra.mxu0 %v5387
    %7696 = vmatprep.subr.bf16.mxu0 %v5386
    %7697 = vmatpush1.bf16.msra.mxu0 %v5385
    %7698 = vmatprep.subr.bf16.mxu0 %v5384
    %7699 = vmatpush1.bf16.msra.mxu0 %v5383
    %7700 = vmatprep.subr.bf16.mxu0 %v5382
    %7701 = vmatpush1.bf16.msra.mxu0 %v5381
    %7702 = vmatprep.subr.bf16.mxu0 %v5380
    %7703 = vmatpush1.bf16.msra.mxu0 %v5379
    %7704 = vmatprep.subr.bf16.mxu0 %v5410
    %7705 = vmatpush2.bf16.msra.mxu0 %v5409
    %7706 = vmatprep.subr.bf16.mxu0 %v5408
    %7707 = vmatpush2.bf16.msra.mxu0 %v5407
    %7708 = vmatprep.subr.bf16.mxu0 %v5406
    %7709 = vmatpush2.bf16.msra.mxu0 %v5405
    %7710 = vmatprep.subr.bf16.mxu0 %v5404
    %7711 = vmatpush2.bf16.msra.mxu0 %v5403
    %7712 = vmatprep.subr.bf16.mxu0 %v5402
    %7713 = vmatpush2.bf16.msra.mxu0 %v5401
    %7714 = vmatprep.subr.bf16.mxu0 %v5400
    %7715 = vmatpush2.bf16.msra.mxu0 %v5399
    %7716 = vmatprep.subr.bf16.mxu0 %v5398
    %7717 = vmatpush2.bf16.msra.mxu0 %v5397
    %7718 = vmatprep.subr.bf16.mxu0 %v5396
    %7719 = vmatpush2.bf16.msra.mxu0 %v5395
    %7720 = vmatprep.mubr.bf16.mxu0 %v1310
    %7721 = vmatmul.mubr.bf16.gmra.mxu0 %v1309
    %v7722 = vpop.f32.mrf.mxu0
    %v7723 = vadd.f32 %v7682, %v7722
    %v7724 = vpop.f32.mrf.mxu0
    %v7725 = vadd.f32 %v7684, %v7724
    %v7726 = vpop.f32.mrf.mxu0
    %v7727 = vpop.f32.mrf.mxu0
    %7728 = vdwg.mxu0
    %7729 = vmatprep.subr.bf16.mxu0 %v5426
    %7730 = vmatpush1.bf16.msra.mxu0 %v5425
    %7731 = vmatprep.subr.bf16.mxu0 %v5424
    %7732 = vmatpush1.bf16.msra.mxu0 %v5423
    %7733 = vmatprep.subr.bf16.mxu0 %v5422
    %7734 = vmatpush1.bf16.msra.mxu0 %v5421
    %7735 = vmatprep.subr.bf16.mxu0 %v5420
    %7736 = vmatpush1.bf16.msra.mxu0 %v5419
    %7737 = vmatprep.subr.bf16.mxu0 %v5418
    %7738 = vmatpush1.bf16.msra.mxu0 %v5417
    %7739 = vmatprep.subr.bf16.mxu0 %v5416
    %7740 = vmatpush1.bf16.msra.mxu0 %v5415
    %7741 = vmatprep.subr.bf16.mxu0 %v5414
    %7742 = vmatpush1.bf16.msra.mxu0 %v5413
    %7743 = vmatprep.subr.bf16.mxu0 %v5412
    %7744 = vmatpush1.bf16.msra.mxu0 %v5411
    %7745 = vmatprep.subr.bf16.mxu0 %v5442
    %7746 = vmatpush2.bf16.msra.mxu0 %v5441
    %7747 = vmatprep.subr.bf16.mxu0 %v5440
    %7748 = vmatpush2.bf16.msra.mxu0 %v5439
    %7749 = vmatprep.subr.bf16.mxu0 %v5438
    %7750 = vmatpush2.bf16.msra.mxu0 %v5437
    %7751 = vmatprep.subr.bf16.mxu0 %v5436
    %7752 = vmatpush2.bf16.msra.mxu0 %v5435
    %7753 = vmatprep.subr.bf16.mxu0 %v5434
    %7754 = vmatpush2.bf16.msra.mxu0 %v5433
    %7755 = vmatprep.subr.bf16.mxu0 %v5432
    %7756 = vmatpush2.bf16.msra.mxu0 %v5431
    %7757 = vmatprep.subr.bf16.mxu0 %v5430
    %7758 = vmatpush2.bf16.msra.mxu0 %v5429
    %7759 = vmatprep.subr.bf16.mxu0 %v5428
    %7760 = vmatpush2.bf16.msra.mxu0 %v5427
    %7761 = vmatprep.mubr.bf16.mxu0 %v1312
    %7762 = vmatmul.mubr.bf16.gmra.mxu0 %v1311
    %v7763 = vpop.f32.mrf.mxu0
    %v7764 = vadd.f32 %v7723, %v7763
    %v7765 = vpop.f32.mrf.mxu0
    %v7766 = vadd.f32 %v7725, %v7765
    %v7767 = vpop.f32.mrf.mxu0
    %v7768 = vpop.f32.mrf.mxu0
    %7769 = vdwg.mxu0
    %7770 = vmatprep.subr.bf16.mxu0 %v5458
    %7771 = vmatpush1.bf16.msra.mxu0 %v5457
    %7772 = vmatprep.subr.bf16.mxu0 %v5456
    %7773 = vmatpush1.bf16.msra.mxu0 %v5455
    %7774 = vmatprep.subr.bf16.mxu0 %v5454
    %7775 = vmatpush1.bf16.msra.mxu0 %v5453
    %7776 = vmatprep.subr.bf16.mxu0 %v5452
    %7777 = vmatpush1.bf16.msra.mxu0 %v5451
    %7778 = vmatprep.subr.bf16.mxu0 %v5450
    %7779 = vmatpush1.bf16.msra.mxu0 %v5449
    %7780 = vmatprep.subr.bf16.mxu0 %v5448
    %7781 = vmatpush1.bf16.msra.mxu0 %v5447
    %7782 = vmatprep.subr.bf16.mxu0 %v5446
    %7783 = vmatpush1.bf16.msra.mxu0 %v5445
    %7784 = vmatprep.subr.bf16.mxu0 %v5444
    %7785 = vmatpush1.bf16.msra.mxu0 %v5443
    %7786 = vmatprep.subr.bf16.mxu0 %v5474
    %7787 = vmatpush2.bf16.msra.mxu0 %v5473
    %7788 = vmatprep.subr.bf16.mxu0 %v5472
    %7789 = vmatpush2.bf16.msra.mxu0 %v5471
    %7790 = vmatprep.subr.bf16.mxu0 %v5470
    %7791 = vmatpush2.bf16.msra.mxu0 %v5469
    %7792 = vmatprep.subr.bf16.mxu0 %v5468
    %7793 = vmatpush2.bf16.msra.mxu0 %v5467
    %7794 = vmatprep.subr.bf16.mxu0 %v5466
    %7795 = vmatpush2.bf16.msra.mxu0 %v5465
    %7796 = vmatprep.subr.bf16.mxu0 %v5464
    %7797 = vmatpush2.bf16.msra.mxu0 %v5463
    %7798 = vmatprep.subr.bf16.mxu0 %v5462
    %7799 = vmatpush2.bf16.msra.mxu0 %v5461
    %7800 = vmatprep.subr.bf16.mxu0 %v5460
    %7801 = vmatpush2.bf16.msra.mxu0 %v5459
    %7802 = vmatprep.mubr.bf16.mxu0 %v1314
    %7803 = vmatmul.mubr.bf16.gmra.mxu0 %v1313
    %v7804 = vpop.f32.mrf.mxu0
    %v7805 = vadd.f32 %v7764, %v7804
    %v7806 = vpop.f32.mrf.mxu0
    %v7807 = vadd.f32 %v7766, %v7806
    %v7808 = vpop.f32.mrf.mxu0
    %v7809 = vpop.f32.mrf.mxu0
    %7810 = vdwg.mxu0
    %vm7811 = vcmp.gt.f32.partialorder %v7805, 0.0
    %vm7812 = vcmp.gt.f32.partialorder %v7807, 0.0
    %v7813 = vmul.f32 %v7805, 0.01
    %v7814 = vmul.f32 %v7807, 0.01
    %v7815 = vsel %vm7811, %v7805, %v7813
    %v7816 = vsel %vm7812, %v7807, %v7814
    %v7817 = vld [vmem:[%s3] sm:$0xff]
    %v7818 = vld [vmem:[%s3 + $0x8] sm:$0xff]
    %v7819 = vld [vmem:[%s3 + $0x10] sm:$0xff]
    %v7820 = vld [vmem:[%s3 + $0x18] sm:$0xff]
    %v7821 = vld [vmem:[%s3 + $0x20] sm:$0xff]
    %v7822 = vld [vmem:[%s3 + $0x28] sm:$0xff]
    %v7823 = vld [vmem:[%s3 + $0x30] sm:$0xff]
    %v7824 = vld [vmem:[%s3 + $0x38] sm:$0xff]
    %v7825 = vld [vmem:[%s3 + $0x40] sm:$0xff]
    %v7826 = vld [vmem:[%s3 + $0x48] sm:$0xff]
    %v7827 = vld [vmem:[%s3 + $0x50] sm:$0xff]
    %v7828 = vld [vmem:[%s3 + $0x58] sm:$0xff]
    %v7829 = vld [vmem:[%s3 + $0x60] sm:$0xff]
    %v7830 = vld [vmem:[%s3 + $0x68] sm:$0xff]
    %v7831 = vld [vmem:[%s3 + $0x70] sm:$0xff]
    %v7832 = vld [vmem:[%s3 + $0x78] sm:$0xff]
    %v7833 = vld [vmem:[%s3 + $0x80] sm:$0xff]
    %v7834 = vld [vmem:[%s3 + $0x88] sm:$0xff]
    %v7835 = vld [vmem:[%s3 + $0x90] sm:$0xff]
    %v7836 = vld [vmem:[%s3 + $0x98] sm:$0xff]
    %v7837 = vld [vmem:[%s3 + $0xa0] sm:$0xff]
    %v7838 = vld [vmem:[%s3 + $0xa8] sm:$0xff]
    %v7839 = vld [vmem:[%s3 + $0xb0] sm:$0xff]
    %v7840 = vld [vmem:[%s3 + $0xb8] sm:$0xff]
    %v7841 = vld [vmem:[%s3 + $0xc0] sm:$0xff]
    %v7842 = vld [vmem:[%s3 + $0xc8] sm:$0xff]
    %v7843 = vld [vmem:[%s3 + $0xd0] sm:$0xff]
    %v7844 = vld [vmem:[%s3 + $0xd8] sm:$0xff]
    %v7845 = vld [vmem:[%s3 + $0xe0] sm:$0xff]
    %v7846 = vld [vmem:[%s3 + $0xe8] sm:$0xff]
    %v7847 = vld [vmem:[%s3 + $0xf0] sm:$0xff]
    %v7848 = vld [vmem:[%s3 + $0xf8] sm:$0xff]
    %v7849 = vld [vmem:[#allocation8] sm:$0x1]
    %v7851 = vlaneseq
    %v7852 = vshrl.u32 %v7851, 7
    %v7853 = vsub.s32 0, %v7852
    %v7854 = vrot.slane %v7849, %v7853
    %7856 = vmatprep.subr.mxu0 0.0
    %7857 = vmatpush1.msra.mxu0 %v7832
    %7858 = vmatprep.subr.mxu0 0.0
    %7859 = vmatpush1.msra.mxu0 %v7831
    %7860 = vmatprep.subr.mxu0 0.0
    %7861 = vmatpush1.msra.mxu0 %v7830
    %7862 = vmatprep.subr.mxu0 0.0
    %7863 = vmatpush1.msra.mxu0 %v7829
    %7864 = vmatprep.subr.mxu0 0.0
    %7865 = vmatpush1.msra.mxu0 %v7828
    %7866 = vmatprep.subr.mxu0 0.0
    %7867 = vmatpush1.msra.mxu0 %v7827
    %7868 = vmatprep.subr.mxu0 0.0
    %7869 = vmatpush1.msra.mxu0 %v7826
    %7870 = vmatprep.subr.mxu0 0.0
    %7871 = vmatpush1.msra.mxu0 %v7825
    %7872 = vmatprep.subr.mxu0 0.0
    %7873 = vmatpush1.msra.mxu0 %v7824
    %7874 = vmatprep.subr.mxu0 0.0
    %7875 = vmatpush1.msra.mxu0 %v7823
    %7876 = vmatprep.subr.mxu0 0.0
    %7877 = vmatpush1.msra.mxu0 %v7822
    %7878 = vmatprep.subr.mxu0 0.0
    %7879 = vmatpush1.msra.mxu0 %v7821
    %7880 = vmatprep.subr.mxu0 0.0
    %7881 = vmatpush1.msra.mxu0 %v7820
    %7882 = vmatprep.subr.mxu0 0.0
    %7883 = vmatpush1.msra.mxu0 %v7819
    %7884 = vmatprep.subr.mxu0 0.0
    %7885 = vmatpush1.msra.mxu0 %v7818
    %7886 = vmatprep.subr.mxu0 0.0
    %7887 = vmatpush1.msra.mxu0 %v7817
    %7888 = vmatprep.subr.mxu0 0.0
    %7889 = vmatpush2.msra.mxu0 %v7848
    %7890 = vmatprep.subr.mxu0 0.0
    %7891 = vmatpush2.msra.mxu0 %v7847
    %7892 = vmatprep.subr.mxu0 0.0
    %7893 = vmatpush2.msra.mxu0 %v7846
    %7894 = vmatprep.subr.mxu0 0.0
    %7895 = vmatpush2.msra.mxu0 %v7845
    %7896 = vmatprep.subr.mxu0 0.0
    %7897 = vmatpush2.msra.mxu0 %v7844
    %7898 = vmatprep.subr.mxu0 0.0
    %7899 = vmatpush2.msra.mxu0 %v7843
    %7900 = vmatprep.subr.mxu0 0.0
    %7901 = vmatpush2.msra.mxu0 %v7842
    %7902 = vmatprep.subr.mxu0 0.0
    %7903 = vmatpush2.msra.mxu0 %v7841
    %7904 = vmatprep.subr.mxu0 0.0
    %7905 = vmatpush2.msra.mxu0 %v7840
    %7906 = vmatprep.subr.mxu0 0.0
    %7907 = vmatpush2.msra.mxu0 %v7839
    %7908 = vmatprep.subr.mxu0 0.0
    %7909 = vmatpush2.msra.mxu0 %v7838
    %7910 = vmatprep.subr.mxu0 0.0
    %7911 = vmatpush2.msra.mxu0 %v7837
    %7912 = vmatprep.subr.mxu0 0.0
    %7913 = vmatpush2.msra.mxu0 %v7836
    %7914 = vmatprep.subr.mxu0 0.0
    %7915 = vmatpush2.msra.mxu0 %v7835
    %7916 = vmatprep.subr.mxu0 0.0
    %7917 = vmatpush2.msra.mxu0 %v7834
    %7918 = vmatprep.subr.mxu0 0.0
    %7919 = vmatpush2.msra.mxu0 %v7833
    %7920 = vmatprep.mubr.f32.mxu0 %v7816
    %7921 = vmatmul.mubr.f32.gmra.mxu0 %v7815
    %v7922 = vpop.f32.mrf.mxu0
    %v7923 = vadd.f32 %v7854, %v7922
    %v7924 = vpop.f32.mrf.mxu0
    %7925 = vdwg.mxu0
    %vm7926 = vcmp.gt.f32.partialorder %v7923, 0.0
    %v7927 = vmul.f32 %v7923, 0.01
    %v7928 = vsel %vm7926, %v7923, %v7927
    %v7929 = vld [vmem:[%s5] sm:$0xff]
    %v7930 = vld [vmem:[%s5 + $0x8] sm:$0xff]
    %v7931 = vld [vmem:[%s5 + $0x10] sm:$0xff]
    %v7932 = vld [vmem:[%s5 + $0x18] sm:$0xff]
    %v7933 = vld [vmem:[#allocation10] sm:$0x1]
    %v7935 = vlaneseq
    %v7936 = vshrl.u32 %v7935, 7
    %v7937 = vsub.s32 0, %v7936
    %v7938 = vrot.slane %v7933, %v7937
    %vm7940 = vcmask 261120
    %v7942 = vsel %vm7940, %v7928, 0
    %7944 = vmatprep.subr.mxu0 0.0
    %7945 = vmatpush1.msra.mxu0 0.0
    %7946 = vmatprep.subr.mxu0 0.0
    %7947 = vmatpush1.msra.mxu0 0.0
    %7948 = vmatprep.subr.mxu0 0.0
    %7949 = vmatpush1.msra.mxu0 0.0
    %7950 = vmatprep.subr.mxu0 0.0
    %7951 = vmatpush1.msra.mxu0 0.0
    %7952 = vmatprep.subr.mxu0 0.0
    %7953 = vmatpush1.msra.mxu0 0.0
    %7954 = vmatprep.subr.mxu0 0.0
    %7955 = vmatpush1.msra.mxu0 0.0
    %7956 = vmatprep.subr.mxu0 0.0
    %7957 = vmatpush1.msra.mxu0 0.0
    %7958 = vmatprep.subr.mxu0 0.0
    %7959 = vmatpush1.msra.mxu0 0.0
    %7960 = vmatprep.subr.mxu0 0.0
    %7961 = vmatpush1.msra.mxu0 0.0
    %7962 = vmatprep.subr.mxu0 0.0
    %7963 = vmatpush1.msra.mxu0 0.0
    %7964 = vmatprep.subr.mxu0 0.0
    %7965 = vmatpush1.msra.mxu0 0.0
    %7966 = vmatprep.subr.mxu0 0.0
    %7967 = vmatpush1.msra.mxu0 0.0
    %7968 = vmatprep.subr.mxu0 0.0
    %7969 = vmatpush1.msra.mxu0 %v7932
    %7970 = vmatprep.subr.mxu0 0.0
    %7971 = vmatpush1.msra.mxu0 %v7931
    %7972 = vmatprep.subr.mxu0 0.0
    %7973 = vmatpush1.msra.mxu0 %v7930
    %7974 = vmatprep.subr.mxu0 0.0
    %7975 = vmatpush1.msra.mxu0 %v7929
    %7976 = vmatprep.subr.mxu0 0.0
    %7977 = vmatpush2.msra.mxu0 0.0
    %7978 = vmatprep.subr.mxu0 0.0
    %7979 = vmatpush2.msra.mxu0 0.0
    %7980 = vmatprep.subr.mxu0 0.0
    %7981 = vmatpush2.msra.mxu0 0.0
    %7982 = vmatprep.subr.mxu0 0.0
    %7983 = vmatpush2.msra.mxu0 0.0
    %7984 = vmatprep.subr.mxu0 0.0
    %7985 = vmatpush2.msra.mxu0 0.0
    %7986 = vmatprep.subr.mxu0 0.0
    %7987 = vmatpush2.msra.mxu0 0.0
    %7988 = vmatprep.subr.mxu0 0.0
    %7989 = vmatpush2.msra.mxu0 0.0
    %7990 = vmatprep.subr.mxu0 0.0
    %7991 = vmatpush2.msra.mxu0 0.0
    %7992 = vmatprep.subr.mxu0 0.0
    %7993 = vmatpush2.msra.mxu0 0.0
    %7994 = vmatprep.subr.mxu0 0.0
    %7995 = vmatpush2.msra.mxu0 0.0
    %7996 = vmatprep.subr.mxu0 0.0
    %7997 = vmatpush2.msra.mxu0 0.0
    %7998 = vmatprep.subr.mxu0 0.0
    %7999 = vmatpush2.msra.mxu0 0.0
    %8000 = vmatprep.subr.mxu0 0.0
    %8001 = vmatpush2.msra.mxu0 0.0
    %8002 = vmatprep.subr.mxu0 0.0
    %8003 = vmatpush2.msra.mxu0 0.0
    %8004 = vmatprep.subr.mxu0 0.0
    %8005 = vmatpush2.msra.mxu0 0.0
    %8006 = vmatprep.subr.mxu0 0.0
    %8007 = vmatpush2.msra.mxu0 0.0
    %8008 = vmatprep.mubr.f32.mxu0 0.0
    %8009 = vmatmul.mubr.f32.gmra.mxu0 %v7942
    %v8010 = vpop.f32.mrf.mxu0
    %v8011 = vadd.f32 %v7938, %v8010
    %v8012 = vpop.f32.mrf.mxu0
    %8013 = vdwg.mxu0
    %vm8014 = vcmp.gt.f32.partialorder %v8011, 0.0
    %v8015 = vmul.f32 %v8011, 0.01
    %v8016 = vsel %vm8014, %v8011, %v8015
    %vm8017 = vcmask 39936
    %v8018 = vsel %vm8017, %v8016, -inf
    %v8019 = vrot.slane %v8018, 4
    %v8020 = vmax.f32 %v8018, %v8019
    %v8021 = vrot.slane %v8020, 2
    %v8022 = vmax.f32 %v8020, %v8021
    %v8023 = vrot.slane %v8022, 1
    %v8024 = vmax.f32 %v8022, %v8023
    %v8025 = vsub.f32 %v8016, %v8024
    %v8026 = vmul.f32 %v8025, 1.442695
    %v8027 = vpow.pop %v8026
    %v8028 = vsel %vm8017, %v8027, 0.0
    %v8029 = vrot.slane %v8028, 4
    %v8030 = vadd.f32 %v8028, %v8029
    %v8031 = vrot.slane %v8030, 2
    %v8032 = vadd.f32 %v8030, %v8031
    %v8033 = vrot.slane %v8032, 1
    %v8034 = vadd.f32 %v8032, %v8033
    %v8035 = vrcp.pop %v8034
    %v8036 = vmul.f32 %v8027, %v8035
    %8037 = vst.msk [vmem:[#allocation11] sm:$0xff] %vm8017, %v8036
    // Predicated region
    $region50: #{tpu_custom_call.1} parent=1 // pred_check
      _
    $region51: #{tpu_custom_call.1} parent=1 // pred_check_branch
      %8039 = sbr.rel (0) target = $region53
    $region52: #{tpu_custom_call.1} parent=1 // pred_region
      %s8041 = ssub.s32 128, 128
      %8042 = vsyncadd [#allocation4], %s8041
      %s8044 = sshll.u32 [#allocation11], 4
      %s8045 = int_to_ptr.vmem [resolvable:$true] %s8044
      %8047 = dma.vmem_to_hbm [thread:$0]  %s8045, 128, %s7, [#allocation4]
    $region53: #{tpu_custom_call.1} parent=1 // pred_fallthru
      _
    // Predicated region
    $region54: #{tpu_custom_call.1} parent=1 // pred_check
      _
    $region55: #{tpu_custom_call.1} parent=1 // pred_check_branch
      %8049 = sbr.rel (0) target = $region57
    $region56: #{tpu_custom_call.1} parent=1 // pred_region
      %8050 = dma.done [#allocation4], 128
    $region57: #{tpu_custom_call.1} parent=1 // pred_fallthru
      _
    %8051 = vsyncpa [#allocation3], 1
    %8052 = vsyncpa [#allocation6], 1
    %8053 = vsyncpa [#allocation9], 1
    %8054 = vsyncpa [#allocation4], 1

</llo_original>
